<compile_context>
chip_gen: v7x
topology: tpu7x:2x2x1
jax: 0.10.0
libtpu: 0.0.40
codegen_flags: <defaults>
</compile_context>

<pallas_src>
import math
import jax
import jax.numpy as jnp
from jax.experimental import pallas as pl
from jax.experimental.pallas import tpu as pltpu

# ------------------------- configuration (small demo shapes) -------------------------
N_LEVELS = 16
N_FEATS_PER_LEVEL = 2
FEAT_DIM = N_LEVELS * N_FEATS_PER_LEVEL          # 32
LOG2_HASHMAP = 15                                 # reduced from 19 for a small demo table
HASHMAP_SIZE = 1 << LOG2_HASHMAP
BASE_RES = 14
MAX_RES = 128                                     # reduced from 4096 for the demo
HIDDEN = 64
GEO_FEAT = 15
NUM_LAYERS = 2
SH_DIM = 16                                       # degree-4 spherical harmonics
HEAD_IN = SH_DIM + GEO_FEAT                       # 31
AABB = jnp.array([-1.0, -1.0, -1.0, 1.0, 1.0, 1.0], jnp.float32)
C2F = (0.1, 0.5)
PROGRESS = 0.3
NUM_FRAME = 4                                     # pose embedding exists but is unused in forward
TILE_N = 512                                      # rows per grid step (sweepable 512..2048)

_PRIMES = (1, 2654435761, 805459861)


# ------------------------- coarse-to-fine weights (tiny scalar glue) -------------------------
def get_weights(progress):
    c2f_start, c2f_end = C2F
    alpha = (progress - c2f_start) / (c2f_end - c2f_start) * (N_LEVELS - 1)
    k = jnp.arange(N_LEVELS - 1, dtype=jnp.float32)
    weight = (1.0 - jnp.cos(jnp.clip(alpha - k, 0.0, 1.0) * jnp.pi)) / 2.0
    weights = jnp.concatenate(
        [jnp.ones((N_FEATS_PER_LEVEL,), jnp.float32),
         jnp.repeat(weight, N_FEATS_PER_LEVEL)])
    return weights  # [32]


# ------------------------- multiresolution hash encoding (JAX glue) -------------------------
def hash_grid_encode(x01, table):
    """x01: [N,3] in [0,1]; table: [L, T, F] -> features [N, L*F] (level-major, tcnn layout)."""
    growth = math.exp((math.log(MAX_RES) - math.log(BASE_RES)) / (N_LEVELS - 1))
    feats = []
    for lvl in range(N_LEVELS):
        res = math.floor(BASE_RES * (growth ** lvl))
        pos = x01 * res
        pos_i = jnp.floor(pos).astype(jnp.int32)
        frac = pos - pos_i.astype(jnp.float32)
        acc = jnp.zeros((x01.shape[0], N_FEATS_PER_LEVEL), jnp.float32)
        for c in range(8):
            offs = jnp.array([(c >> 0) & 1, (c >> 1) & 1, (c >> 2) & 1], jnp.int32)
            corner = (pos_i + offs[None, :]).astype(jnp.uint32)
            idx = (corner[:, 0] * jnp.uint32(_PRIMES[0])
                   ^ corner[:, 1] * jnp.uint32(_PRIMES[1])
                   ^ corner[:, 2] * jnp.uint32(_PRIMES[2])) & jnp.uint32(HASHMAP_SIZE - 1)
            w = jnp.prod(jnp.where(offs[None, :] == 1, frac, 1.0 - frac),
                         axis=-1, keepdims=True)
            acc = acc + w * table[lvl][idx.astype(jnp.int32)]
        feats.append(acc)
    return jnp.concatenate(feats, axis=-1)  # [N, 32]


# ------------------------- spherical harmonics (wrapper-side, lane-dense) -----------------
def sh_deg4(d):
    """tcnn-style degree-4 SH of unit direction d: [N,3] -> [N,16]."""
    x, y, z = d[:, 0:1], d[:, 1:2], d[:, 2:3]
    x2, y2, z2 = x * x, y * y, z * z
    xy, yz, xz = x * y, y * z, x * z
    return jnp.concatenate([
        jnp.full_like(x, 0.28209479177387814),
        -0.48860251190291987 * y,
        0.48860251190291987 * z,
        -0.48860251190291987 * x,
        1.0925484305920792 * xy,
        -1.0925484305920792 * yz,
        0.94617469575756008 * z2 - 0.31539156525252005,
        -1.0925484305920792 * xz,
        0.54627421529603959 * (x2 - y2),
        0.59004358992664352 * y * (-3.0 * x2 + y2),
        2.8906114426405538 * xy * z,
        0.45704579946446572 * y * (1.0 - 5.0 * z2),
        0.3731763325901154 * z * (5.0 * z2 - 3.0),
        0.45704579946446572 * x * (1.0 - 5.0 * z2),
        1.4453057213202769 * z * (x2 - y2),
        0.59004358992664352 * x * (-x2 + 3.0 * y2),
    ], axis=-1)


# ------------------------- Pallas kernel: fused MLPs + activations ---------------------------
def baangp_mlp_kernel(feat_ref, sh_ref, wb1_ref, wb2_ref, wh1s_ref, wh1b_ref,
                      wh2_ref, wh3_ref, out_ref):
    # mlp_base: 32 -> 64 (ReLU) -> 16.  c2f weights are pre-folded into wb1.
    h = jnp.maximum(jnp.dot(feat_ref[...], wb1_ref[...],
                            preferred_element_type=jnp.float32), 0.0)
    base = jnp.dot(h.astype(jnp.bfloat16), wb2_ref[...],
                   preferred_element_type=jnp.float32)                 # (T,16) f32

    # density = trunc_exp(base[:, 0] - 1); selector is applied in the wrapper.
    dens = jnp.exp(base[:, 0:1] - 1.0)                                  # (T,1) f32

    # mlp_head layer 1 without the (T,31) concat:
    #   [sh, geo] @ wh1 == sh @ wh1[:16] + base @ [[0]; wh1[16:]]
    # (row 0 of wh1b is zero, so the density channel contributes nothing).
    h1 = jnp.maximum(
        jnp.dot(sh_ref[...], wh1s_ref[...], preferred_element_type=jnp.float32)
        + jnp.dot(base.astype(jnp.bfloat16), wh1b_ref[...],
                  preferred_element_type=jnp.float32), 0.0)             # (T,64)
    h2 = jnp.maximum(jnp.dot(h1.astype(jnp.bfloat16), wh2_ref[...],
                             preferred_element_type=jnp.float32), 0.0)  # (T,64)
    rgb = jax.nn.sigmoid(jnp.dot(h2.astype(jnp.bfloat16), wh3_ref[...],
                                 preferred_element_type=jnp.float32))   # (T,3)

    # single lane-merged output: [rgb | density]
    out_ref[...] = jnp.concatenate([rgb, dens], axis=-1)                # (T,4)


def baangp_forward_pallas(feat, sh, weights, params):
    """feat: [N,32] f32 hash features, sh: [N,16] f32 SH encoding of viewdirs."""
    wb1, wb2, wh1, wh2, wh3 = params

    # Fold c2f weights into the first base layer; split head layer 1; pad the
    # density row of the geo half with zeros so `base` feeds the MXU unsliced.
    wb1_eff = (weights[:, None] * wb1).astype(jnp.bfloat16)             # (32,64)
    wb2_b = wb2.astype(jnp.bfloat16)                                    # (64,16)
    wh1_sh = wh1[:SH_DIM].astype(jnp.bfloat16)                          # (16,64)
    wh1_base = jnp.concatenate(
        [jnp.zeros((1, HIDDEN), wh1.dtype), wh1[SH_DIM:]], axis=0
    ).astype(jnp.bfloat16)                                              # (16,64)
    wh2_b = wh2.astype(jnp.bfloat16)                                    # (64,64)
    wh3_b = wh3.astype(jnp.bfloat16)                                    # (64,3)

    feat_b = feat.astype(jnp.bfloat16)                                  # (N,32)
    sh_b = sh.astype(jnp.bfloat16)                                      # (N,16)

    n = feat.shape[0]
    n_pad = pl.cdiv(n, TILE_N) * TILE_N
    if n_pad != n:                                                      # remainder handling
        feat_b = jnp.pad(feat_b, ((0, n_pad - n), (0, 0)))
        sh_b = jnp.pad(sh_b, ((0, n_pad - n), (0, 0)))

    def row_spec(c):
        return pl.BlockSpec((TILE_N, c), lambda i: (i, 0))

    def full_spec(shape):
        return pl.BlockSpec(shape, lambda i: (0, 0))

    out = pl.pallas_call(
        baangp_mlp_kernel,
        out_shape=jax.ShapeDtypeStruct((n_pad, 4), jnp.float32),
        grid_spec=pltpu.PrefetchScalarGridSpec(
            num_scalar_prefetch=0,
            grid=(n_pad // TILE_N,),
            in_specs=[row_spec(FEAT_DIM),          # hash features (bf16)
                      row_spec(SH_DIM),            # SH(view dirs) (bf16)
                      full_spec(wb1_eff.shape),
                      full_spec(wb2_b.shape),
                      full_spec(wh1_sh.shape),
                      full_spec(wh1_base.shape),
                      full_spec(wh2_b.shape),
                      full_spec(wh3_b.shape)],
            out_specs=row_spec(4)),
        compiler_params=pltpu.CompilerParams(
            dimension_semantics=("parallel",)),
    )(feat_b, sh_b, wb1_eff, wb2_b, wh1_sh, wh1_base, wh2_b, wh3_b)

    rgb = out[:n, 0:3]
    dens_raw = out[:n, 3:4]
    return rgb, dens_raw


# ------------------------- pure-JAX f32 reference (original math) -----------------------------
def baangp_forward_ref(feat, dirs, sel, weights, params):
    wb1, wb2, wh1, wh2, wh3 = params
    x = feat * weights[None, :]
    h = jax.nn.relu(x @ wb1)
    base = h @ wb2
    dens = jnp.exp(base[:, 0:1] - 1.0) * sel
    geo = base[:, 1:1 + GEO_FEAT]
    hh = jnp.concatenate([sh_deg4(dirs), geo], axis=-1)
    h1 = jax.nn.relu(hh @ wh1)
    h2 = jax.nn.relu(h1 @ wh2)
    rgb = jax.nn.sigmoid(h2 @ wh3)
    return rgb, dens


# ------------------------- end-to-end forward (BAradianceField.forward) -----------------------
def baradiance_field_forward(positions, directions, table, params, progress):
    aabb_min, aabb_max = AABB[:3], AABB[3:]
    x01 = (positions - aabb_min) / (aabb_max - aabb_min)
    sel = jnp.all((x01 > 0.0) & (x01 < 1.0), axis=-1,
                  keepdims=True).astype(jnp.float32)
    feat = hash_grid_encode(x01, table)          # TODO(synk): fuse gather into the kernel later
    weights = get_weights(progress)
    sh = sh_deg4(directions)                     # lane-dense SH computed outside the kernel
    rgb, dens_raw = baangp_forward_pallas(feat, sh, weights, params)
    density = dens_raw * sel                     # selector folded into the output split
    return feat, sel, weights, (rgb, density)


if __name__ == "__main__":
    key = jax.random.PRNGKey(0)
    kp, kd, kt, k1, k2, k3, k4, k5 = jax.random.split(key, 8)

    N = 4096  # number of samples (flattened rays * samples) -> 8 grid steps of TILE_N=512
    positions = jax.random.uniform(kp, (N, 3), jnp.float32, -1.2, 1.2)
    directions = jax.random.normal(kd, (N, 3), jnp.float32)
    directions = directions / jnp.linalg.norm(directions, axis=-1, keepdims=True)

    # hash table + (bias-free, tcnn-style) MLP weights, deterministic init
    table = jax.random.uniform(kt, (N_LEVELS, HASHMAP_SIZE, N_FEATS_PER_LEVEL),
                               jnp.float32, -1e-2, 1e-2)

    def init(k, fan_in, fan_out):
        return jax.random.normal(k, (fan_in, fan_out), jnp.float32) / math.sqrt(fan_in)

    params = (init(k1, FEAT_DIM, HIDDEN),          # mlp_base layer 1  (32 -> 64)
              init(k2, HIDDEN, 1 + GEO_FEAT),      # mlp_base layer 2  (64 -> 16)
              init(k3, HEAD_IN, HIDDEN),           # mlp_head layer 1  (31 -> 64)
              init(k4, HIDDEN, HIDDEN),            # mlp_head layer 2  (64 -> 64)
              init(k5, HIDDEN, 3))                 # mlp_head layer 3  (64 -> 3)

    # se3_refine embedding / pose_noise exist in __init__ but are unused in forward();
    # kept only for shape fidelity.
    se3_refine = jnp.zeros((NUM_FRAME, 6), jnp.float32)
    del se3_refine

    fwd = jax.jit(baradiance_field_forward)
    feat, sel, weights, (rgb, density) = fwd(positions, directions, table, params, PROGRESS)
    jax.block_until_ready((rgb, density))

    # f32 reference of the original (unfused) math; kernel uses bf16 MXU inputs with
    # f32 accumulation, so compare with a bf16-appropriate tolerance.
    rgb_ref, dens_ref = baangp_forward_ref(feat, directions, sel, weights, params)
    assert rgb.shape == (N, 3) and density.shape == (N, 1)
    assert jnp.allclose(rgb, rgb_ref, rtol=2e-2, atol=2e-2)
    assert jnp.allclose(density, dens_ref, rtol=2e-2, atol=2e-2)

    print("KERNEL_OK")
</pallas_src>

<mosaic_0001>
module attributes {stable_mosaic.version = 11 : i64} {
  func.func private @main(%arg0: i32) attributes {dimension_semantics = [#tpu.dimension_semantics<core_parallel>], iteration_bounds = array<i64: 2>, tpu.core_type = #tpu.core_type<sc_scalar_subcore>, window_params = []} {
    return
  }
}

module attributes {stable_mosaic.version = 11 : i64} {
  func.func private @main(%arg0: i32) attributes {dimension_semantics = [#tpu.dimension_semantics<core_parallel>], iteration_bounds = array<i64: 2>, tpu.core_type = #tpu.core_type<sc_scalar_subcore>, window_params = []} {
    return
  }
}

module attributes {stable_mosaic.version = 11 : i64} {
  func.func @baangp_mlp_kernel(%arg0: i32, %arg1: memref<512x32xbf16, #tpu.memory_space<vmem>>, %arg2: memref<512x16xbf16, #tpu.memory_space<vmem>>, %arg3: memref<32x64xbf16, #tpu.memory_space<vmem>>, %arg4: memref<64x16xbf16, #tpu.memory_space<vmem>>, %arg5: memref<16x64xbf16, #tpu.memory_space<vmem>>, %arg6: memref<16x64xbf16, #tpu.memory_space<vmem>>, %arg7: memref<64x64xbf16, #tpu.memory_space<vmem>>, %arg8: memref<64x3xbf16, #tpu.memory_space<vmem>>, %arg9: memref<512x4xf32, #tpu.memory_space<vmem>>) attributes {dimension_semantics = [#tpu.dimension_semantics<parallel>], iteration_bounds = array<i64: 8>, scalar_prefetch = 0 : i64, scratch_operands = 0 : i64, tpu.core_type = #tpu.core_type<tc>, window_params = [{transform_indices = @transform_0, window_bounds = array<i64: 512, 32>}, {transform_indices = @transform_1, window_bounds = array<i64: 512, 16>}, {pipeline_mode = #tpu.pipeline_mode<synchronous>, transform_indices = @transform_2, window_bounds = array<i64: 32, 64>}, {pipeline_mode = #tpu.pipeline_mode<synchronous>, transform_indices = @transform_3, window_bounds = array<i64: 64, 16>}, {pipeline_mode = #tpu.pipeline_mode<synchronous>, transform_indices = @transform_4, window_bounds = array<i64: 16, 64>}, {pipeline_mode = #tpu.pipeline_mode<synchronous>, transform_indices = @transform_5, window_bounds = array<i64: 16, 64>}, {pipeline_mode = #tpu.pipeline_mode<synchronous>, transform_indices = @transform_6, window_bounds = array<i64: 64, 64>}, {pipeline_mode = #tpu.pipeline_mode<synchronous>, transform_indices = @transform_7, window_bounds = array<i64: 64, 3>}, {transform_indices = @transform_8, window_bounds = array<i64: 512, 4>}]} {
    %c0 = arith.constant 0 : index
    %c0_0 = arith.constant 0 : index
    %0 = vector.load %arg1[%c0, %c0_0] : memref<512x32xbf16, #tpu.memory_space<vmem>>, vector<512x32xbf16>
    %c0_1 = arith.constant 0 : index
    %c0_2 = arith.constant 0 : index
    %1 = vector.load %arg3[%c0_1, %c0_2] : memref<32x64xbf16, #tpu.memory_space<vmem>>, vector<32x64xbf16>
    %cst = arith.constant dense<0.000000e+00> : vector<512x64xf32>
    %2 = tpu.matmul %0, %1, %cst {dimension_numbers = #tpu.dot_dimension_numbers<[1], [0], [0], [1], [0, 0, 1, 1], [], []>} : vector<512x32xbf16>, vector<32x64xbf16>, vector<512x64xf32> -> vector<512x64xf32>
    %cst_3 = arith.constant 0.000000e+00 : f32
    %3 = vector.broadcast %cst_3 : f32 to vector<512x64xf32>
    %4 = arith.maximumf %2, %3 : vector<512x64xf32>
    %5 = arith.truncf %4 : vector<512x64xf32> to vector<512x64xbf16>
    %c0_4 = arith.constant 0 : index
    %c0_5 = arith.constant 0 : index
    %6 = vector.load %arg4[%c0_4, %c0_5] : memref<64x16xbf16, #tpu.memory_space<vmem>>, vector<64x16xbf16>
    %cst_6 = arith.constant dense<0.000000e+00> : vector<512x16xf32>
    %7 = tpu.matmul %5, %6, %cst_6 {dimension_numbers = #tpu.dot_dimension_numbers<[1], [0], [0], [1], [0, 0, 1, 1], [], []>} : vector<512x64xbf16>, vector<64x16xbf16>, vector<512x16xf32> -> vector<512x16xf32>
    %8 = vector.extract_strided_slice %7 {offsets = [0, 0], sizes = [512, 1], strides = [1, 1]} : vector<512x16xf32> to vector<512x1xf32>
    %cst_7 = arith.constant 1.000000e+00 : f32
    %9 = vector.broadcast %cst_7 : f32 to vector<512x1xf32>
    %10 = arith.subf %8, %9 : vector<512x1xf32>
    %11 = math.exp %10 : vector<512x1xf32>
    %c0_8 = arith.constant 0 : index
    %c0_9 = arith.constant 0 : index
    %12 = vector.load %arg2[%c0_8, %c0_9] : memref<512x16xbf16, #tpu.memory_space<vmem>>, vector<512x16xbf16>
    %c0_10 = arith.constant 0 : index
    %c0_11 = arith.constant 0 : index
    %13 = vector.load %arg5[%c0_10, %c0_11] : memref<16x64xbf16, #tpu.memory_space<vmem>>, vector<16x64xbf16>
    %cst_12 = arith.constant dense<0.000000e+00> : vector<512x64xf32>
    %14 = tpu.matmul %12, %13, %cst_12 {dimension_numbers = #tpu.dot_dimension_numbers<[1], [0], [0], [1], [0, 0, 1, 1], [], []>} : vector<512x16xbf16>, vector<16x64xbf16>, vector<512x64xf32> -> vector<512x64xf32>
    %15 = arith.truncf %7 : vector<512x16xf32> to vector<512x16xbf16>
    %c0_13 = arith.constant 0 : index
    %c0_14 = arith.constant 0 : index
    %16 = vector.load %arg6[%c0_13, %c0_14] : memref<16x64xbf16, #tpu.memory_space<vmem>>, vector<16x64xbf16>
    %cst_15 = arith.constant dense<0.000000e+00> : vector<512x64xf32>
    %17 = tpu.matmul %15, %16, %cst_15 {dimension_numbers = #tpu.dot_dimension_numbers<[1], [0], [0], [1], [0, 0, 1, 1], [], []>} : vector<512x16xbf16>, vector<16x64xbf16>, vector<512x64xf32> -> vector<512x64xf32>
    %18 = arith.addf %14, %17 : vector<512x64xf32>
    %cst_16 = arith.constant 0.000000e+00 : f32
    %19 = vector.broadcast %cst_16 : f32 to vector<512x64xf32>
    %20 = arith.maximumf %18, %19 : vector<512x64xf32>
    %21 = arith.truncf %20 : vector<512x64xf32> to vector<512x64xbf16>
    %c0_17 = arith.constant 0 : index
    %c0_18 = arith.constant 0 : index
    %22 = vector.load %arg7[%c0_17, %c0_18] : memref<64x64xbf16, #tpu.memory_space<vmem>>, vector<64x64xbf16>
    %cst_19 = arith.constant dense<0.000000e+00> : vector<512x64xf32>
    %23 = tpu.matmul %21, %22, %cst_19 {dimension_numbers = #tpu.dot_dimension_numbers<[1], [0], [0], [1], [0, 0, 1, 1], [], []>} : vector<512x64xbf16>, vector<64x64xbf16>, vector<512x64xf32> -> vector<512x64xf32>
    %cst_20 = arith.constant 0.000000e+00 : f32
    %24 = vector.broadcast %cst_20 : f32 to vector<512x64xf32>
    %25 = arith.maximumf %23, %24 : vector<512x64xf32>
    %26 = arith.truncf %25 : vector<512x64xf32> to vector<512x64xbf16>
    %c0_21 = arith.constant 0 : index
    %c0_22 = arith.constant 0 : index
    %27 = vector.load %arg8[%c0_21, %c0_22] : memref<64x3xbf16, #tpu.memory_space<vmem>>, vector<64x3xbf16>
    %cst_23 = arith.constant dense<0.000000e+00> : vector<512x3xf32>
    %28 = tpu.matmul %26, %27, %cst_23 {dimension_numbers = #tpu.dot_dimension_numbers<[1], [0], [0], [1], [0, 0, 1, 1], [], []>} : vector<512x64xbf16>, vector<64x3xbf16>, vector<512x3xf32> -> vector<512x3xf32>
    %29 = arith.negf %28 : vector<512x3xf32>
    %30 = math.exp %29 : vector<512x3xf32>
    %cst_24 = arith.constant 1.000000e+00 : f32
    %31 = vector.broadcast %cst_24 : f32 to vector<512x3xf32>
    %32 = arith.addf %31, %30 : vector<512x3xf32>
    %33 = arith.divf %31, %32 : vector<512x3xf32>
    %34 = tpu.concatenate %33, %11 in 1 : vector<512x3xf32>, vector<512x1xf32> -> vector<512x4xf32>
    %c0_25 = arith.constant 0 : index
    %c0_26 = arith.constant 0 : index
    %35 = vector.load %arg9[%c0_25, %c0_26] : memref<512x4xf32, #tpu.memory_space<vmem>>, vector<512x4xf32>
    tpu.vector_store %arg9[%c0_25, %c0_26], %34 {strides = array<i32>} : memref<512x4xf32, #tpu.memory_space<vmem>>, vector<512x4xf32>,
    return
  }
  func.func @transform_0(%arg0: i32) -> (i32, i32) {
    %c0_i32 = arith.constant 0 : i32
    %c0_i32_0 = arith.constant 0 : i32
    return %arg0, %c0_i32 : i32, i32
  }
  func.func @transform_1(%arg0: i32) -> (i32, i32) {
    %c0_i32 = arith.constant 0 : i32
    %c0_i32_0 = arith.constant 0 : i32
    return %arg0, %c0_i32 : i32, i32
  }
  func.func @transform_2(%arg0: i32) -> (i32, i32) {
    %c0_i32 = arith.constant 0 : i32
    %c0_i32_0 = arith.constant 0 : i32
    %c0_i32_1 = arith.constant 0 : i32
    return %c0_i32, %c0_i32_0 : i32, i32
  }
  func.func @transform_3(%arg0: i32) -> (i32, i32) {
    %c0_i32 = arith.constant 0 : i32
    %c0_i32_0 = arith.constant 0 : i32
    %c0_i32_1 = arith.constant 0 : i32
    return %c0_i32, %c0_i32_0 : i32, i32
  }
  func.func @transform_4(%arg0: i32) -> (i32, i32) {
    %c0_i32 = arith.constant 0 : i32
    %c0_i32_0 = arith.constant 0 : i32
    %c0_i32_1 = arith.constant 0 : i32
    return %c0_i32, %c0_i32_0 : i32, i32
  }
  func.func @transform_5(%arg0: i32) -> (i32, i32) {
    %c0_i32 = arith.constant 0 : i32
    %c0_i32_0 = arith.constant 0 : i32
    %c0_i32_1 = arith.constant 0 : i32
    return %c0_i32, %c0_i32_0 : i32, i32
  }
  func.func @transform_6(%arg0: i32) -> (i32, i32) {
    %c0_i32 = arith.constant 0 : i32
    %c0_i32_0 = arith.constant 0 : i32
    %c0_i32_1 = arith.constant 0 : i32
    return %c0_i32, %c0_i32_0 : i32, i32
  }
  func.func @transform_7(%arg0: i32) -> (i32, i32) {
    %c0_i32 = arith.constant 0 : i32
    %c0_i32_0 = arith.constant 0 : i32
    %c0_i32_1 = arith.constant 0 : i32
    return %c0_i32, %c0_i32_0 : i32, i32
  }
  func.func @transform_8(%arg0: i32) -> (i32, i32) {
    %c0_i32 = arith.constant 0 : i32
    %c0_i32_0 = arith.constant 0 : i32
    return %arg0, %c0_i32 : i32, i32
  }
}

</mosaic_0001>

<llo_original>
// kernel: baradiance_field_forward.1
$region0: #{baradiance_field_forward.1}
  #allocation0 [shape = 'u32[]', space=smem, size = 0x4, offset = 0x4, fixed_abs, tag = 'smem constant byte address 0x4 - core index']
  #allocation1 [shape = 'u32[144,128]{1,0:T(1,128)}', space=vmem, size = 0x12000, scoped, tag = 'internal scratch']
  %s0 = inlined_call_operand.vmem [shape: bf16[4096,32], index: 0, kind: input, shape index: {}]
  %s1 = inlined_call_operand.vmem [shape: bf16[4096,16], index: 1, kind: input, shape index: {}]
  %s2 = inlined_call_operand.vmem [shape: bf16[32,64], index: 2, kind: input, shape index: {}]
  %s3 = inlined_call_operand.vmem [shape: bf16[64,16], index: 3, kind: input, shape index: {}]
  %s4 = inlined_call_operand.vmem [shape: bf16[16,64], index: 4, kind: input, shape index: {}]
  %s5 = inlined_call_operand.vmem [shape: bf16[16,64], index: 5, kind: input, shape index: {}]
  %s6 = inlined_call_operand.vmem [shape: bf16[64,64], index: 6, kind: input, shape index: {}]
  %s7 = inlined_call_operand.vmem [shape: bf16[64,3], index: 7, kind: input, shape index: {}]
  %s8 = inlined_call_operand.vmem [shape: f32[4096,4], index: 8, kind: output, shape index: {}]
  %s9 = sld [smem:[#allocation0]]
  $region65: #{baradiance_field_forward.1} parent=0
    _
  %s11 = ssub.s32 1, %s9
  %s12 = scalar_select 0, %s11, %s9
  loop: start=0, step=1, limit=10
  $region2: #{baradiance_field_forward.1} parent=0 // loop_pre_header
    _
  $region3: #{baradiance_field_forward.1} parent=0 // loop_header
    %s14 = sphi 0, %s18
    %p15 = scmp.ge.s32.totalorder %s14, 10
    %s24 = sphi 0, %s26
    %s27 = sphi 0, %s24
    %s28 = sphi 0, %s27
    %s44 = sphi 0, %s28
    %s50 = sphi 0, %s52
    %s53 = sphi 0, %s50
    %s54 = sphi 0, %s53
    %s70 = sphi 0, %s54
    %s74 = sphi 0, %s74
    %s76 = sphi 0, %s74
    %s77 = sphi 0, %s76
    %s91 = sphi 0, %s77
    %s95 = sphi 0, %s95
    %s97 = sphi 0, %s95
    %s98 = sphi 0, %s97
    %s112 = sphi 0, %s98
    %s116 = sphi 0, %s116
    %s118 = sphi 0, %s116
    %s119 = sphi 0, %s118
    %s133 = sphi 0, %s119
    %s137 = sphi 0, %s137
    %s139 = sphi 0, %s137
    %s140 = sphi 0, %s139
    %s154 = sphi 0, %s140
    %s158 = sphi 0, %s158
    %s160 = sphi 0, %s158
    %s161 = sphi 0, %s160
    %s175 = sphi 0, %s161
    %s179 = sphi 0, %s179
    %s181 = sphi 0, %s179
    %s182 = sphi 0, %s181
    %s196 = sphi 0, %s182
    %s202 = sphi 0, %s204
    %s205 = sphi 0, %s202
    %s206 = sphi 0, %s205
    %s222 = sphi 0, %s206
  $region4: #{baradiance_field_forward.1} parent=0 // loop_header_branch
    %17 = sbr.rel (%p15) target = $region8
  $region5: #{baradiance_field_forward.1} parent=0 // loop_body
    %s19 = ssub.s32 %s14, 1
    %s20 = ssub.s32 %s14, 2
    %s21 = sadd.s32 %s14, 1
    %s22 = ssub.s32 %s14, %s21
    %p23 = scmp.eq.s32.totalorder %s22, 0
    %s25 = sadd.s32 %s24, 1
    %s26 = scalar_select %p23, %s24, %s25
    %p29 = pneg %p23
    %p30 = scmp.eq.s32.totalorder %s14, 7
    %p31 = por %p29, %p30
    %p32 = scmp.ne.s32.totalorder %s24, %s27
    %p33 = scmp.eq.s32.totalorder %s14, 0
    %p34 = por %p32, %p33
    %p35 = scmp.ne.s32.totalorder %s24, %s27
    %p36 = scmp.eq.s32.totalorder %s19, 7
    %p37 = por %p35, %p36
    %p38 = scmp.ne.s32.totalorder %s27, %s28
    %p39 = scmp.eq.s32.totalorder %s19, 0
    %p40 = por %p38, %p39
    %p41 = scmp.ne.s32.totalorder %s27, %s28
    %p42 = scmp.eq.s32.totalorder %s20, 7
    %p43 = por %p41, %p42
    %p45 = scmp.ne.s32.totalorder %s28, %s44
    %p46 = scmp.eq.s32.totalorder %s20, 0
    %p47 = por %p45, %p46
    %s48 = ssub.s32 %s14, %s21
    %p49 = scmp.eq.s32.totalorder %s48, 0
    %s51 = sadd.s32 %s50, 1
    %s52 = scalar_select %p49, %s50, %s51
    %p55 = pneg %p49
    %p56 = scmp.eq.s32.totalorder %s14, 7
    %p57 = por %p55, %p56
    %p58 = scmp.ne.s32.totalorder %s50, %s53
    %p59 = scmp.eq.s32.totalorder %s14, 0
    %p60 = por %p58, %p59
    %p61 = scmp.ne.s32.totalorder %s50, %s53
    %p62 = scmp.eq.s32.totalorder %s19, 7
    %p63 = por %p61, %p62
    %p64 = scmp.ne.s32.totalorder %s53, %s54
    %p65 = scmp.eq.s32.totalorder %s19, 0
    %p66 = por %p64, %p65
    %p67 = scmp.ne.s32.totalorder %s53, %s54
    %p68 = scmp.eq.s32.totalorder %s20, 7
    %p69 = por %p67, %p68
    %p71 = scmp.ne.s32.totalorder %s54, %s70
    %p72 = scmp.eq.s32.totalorder %s20, 0
    %p73 = por %p71, %p72
    %s75 = sadd.s32 %s74, 1
    %p78 = scmp.eq.s32.totalorder %s14, 7
    %p79 = scmp.ne.s32.totalorder %s74, %s76
    %p80 = scmp.eq.s32.totalorder %s14, 0
    %p81 = por %p79, %p80
    %p82 = scmp.ne.s32.totalorder %s74, %s76
    %p83 = scmp.eq.s32.totalorder %s19, 7
    %p84 = por %p82, %p83
    %p85 = scmp.ne.s32.totalorder %s76, %s77
    %p86 = scmp.eq.s32.totalorder %s19, 0
    %p87 = por %p85, %p86
    %p88 = scmp.ne.s32.totalorder %s76, %s77
    %p89 = scmp.eq.s32.totalorder %s20, 7
    %p90 = por %p88, %p89
    %p92 = scmp.ne.s32.totalorder %s77, %s91
    %p93 = scmp.eq.s32.totalorder %s20, 0
    %p94 = por %p92, %p93
    %s96 = sadd.s32 %s95, 1
    %p99 = scmp.eq.s32.totalorder %s14, 7
    %p100 = scmp.ne.s32.totalorder %s95, %s97
    %p101 = scmp.eq.s32.totalorder %s14, 0
    %p102 = por %p100, %p101
    %p103 = scmp.ne.s32.totalorder %s95, %s97
    %p104 = scmp.eq.s32.totalorder %s19, 7
    %p105 = por %p103, %p104
    %p106 = scmp.ne.s32.totalorder %s97, %s98
    %p107 = scmp.eq.s32.totalorder %s19, 0
    %p108 = por %p106, %p107
    %p109 = scmp.ne.s32.totalorder %s97, %s98
    %p110 = scmp.eq.s32.totalorder %s20, 7
    %p111 = por %p109, %p110
    %p113 = scmp.ne.s32.totalorder %s98, %s112
    %p114 = scmp.eq.s32.totalorder %s20, 0
    %p115 = por %p113, %p114
    %s117 = sadd.s32 %s116, 1
    %p120 = scmp.eq.s32.totalorder %s14, 7
    %p121 = scmp.ne.s32.totalorder %s116, %s118
    %p122 = scmp.eq.s32.totalorder %s14, 0
    %p123 = por %p121, %p122
    %p124 = scmp.ne.s32.totalorder %s116, %s118
    %p125 = scmp.eq.s32.totalorder %s19, 7
    %p126 = por %p124, %p125
    %p127 = scmp.ne.s32.totalorder %s118, %s119
    %p128 = scmp.eq.s32.totalorder %s19, 0
    %p129 = por %p127, %p128
    %p130 = scmp.ne.s32.totalorder %s118, %s119
    %p131 = scmp.eq.s32.totalorder %s20, 7
    %p132 = por %p130, %p131
    %p134 = scmp.ne.s32.totalorder %s119, %s133
    %p135 = scmp.eq.s32.totalorder %s20, 0
    %p136 = por %p134, %p135
    %s138 = sadd.s32 %s137, 1
    %p141 = scmp.eq.s32.totalorder %s14, 7
    %p142 = scmp.ne.s32.totalorder %s137, %s139
    %p143 = scmp.eq.s32.totalorder %s14, 0
    %p144 = por %p142, %p143
    %p145 = scmp.ne.s32.totalorder %s137, %s139
    %p146 = scmp.eq.s32.totalorder %s19, 7
    %p147 = por %p145, %p146
    %p148 = scmp.ne.s32.totalorder %s139, %s140
    %p149 = scmp.eq.s32.totalorder %s19, 0
    %p150 = por %p148, %p149
    %p151 = scmp.ne.s32.totalorder %s139, %s140
    %p152 = scmp.eq.s32.totalorder %s20, 7
    %p153 = por %p151, %p152
    %p155 = scmp.ne.s32.totalorder %s140, %s154
    %p156 = scmp.eq.s32.totalorder %s20, 0
    %p157 = por %p155, %p156
    %s159 = sadd.s32 %s158, 1
    %p162 = scmp.eq.s32.totalorder %s14, 7
    %p163 = scmp.ne.s32.totalorder %s158, %s160
    %p164 = scmp.eq.s32.totalorder %s14, 0
    %p165 = por %p163, %p164
    %p166 = scmp.ne.s32.totalorder %s158, %s160
    %p167 = scmp.eq.s32.totalorder %s19, 7
    %p168 = por %p166, %p167
    %p169 = scmp.ne.s32.totalorder %s160, %s161
    %p170 = scmp.eq.s32.totalorder %s19, 0
    %p171 = por %p169, %p170
    %p172 = scmp.ne.s32.totalorder %s160, %s161
    %p173 = scmp.eq.s32.totalorder %s20, 7
    %p174 = por %p172, %p173
    %p176 = scmp.ne.s32.totalorder %s161, %s175
    %p177 = scmp.eq.s32.totalorder %s20, 0
    %p178 = por %p176, %p177
    %s180 = sadd.s32 %s179, 1
    %p183 = scmp.eq.s32.totalorder %s14, 7
    %p184 = scmp.ne.s32.totalorder %s179, %s181
    %p185 = scmp.eq.s32.totalorder %s14, 0
    %p186 = por %p184, %p185
    %p187 = scmp.ne.s32.totalorder %s179, %s181
    %p188 = scmp.eq.s32.totalorder %s19, 7
    %p189 = por %p187, %p188
    %p190 = scmp.ne.s32.totalorder %s181, %s182
    %p191 = scmp.eq.s32.totalorder %s19, 0
    %p192 = por %p190, %p191
    %p193 = scmp.ne.s32.totalorder %s181, %s182
    %p194 = scmp.eq.s32.totalorder %s20, 7
    %p195 = por %p193, %p194
    %p197 = scmp.ne.s32.totalorder %s182, %s196
    %p198 = scmp.eq.s32.totalorder %s20, 0
    %p199 = por %p197, %p198
    %s200 = ssub.s32 %s14, %s21
    %p201 = scmp.eq.s32.totalorder %s200, 0
    %s203 = sadd.s32 %s202, 1
    %s204 = scalar_select %p201, %s202, %s203
    %p207 = pneg %p201
    %p208 = scmp.eq.s32.totalorder %s14, 7
    %p209 = por %p207, %p208
    %p210 = scmp.ne.s32.totalorder %s202, %s205
    %p211 = scmp.eq.s32.totalorder %s14, 0
    %p212 = por %p210, %p211
    %p213 = scmp.ne.s32.totalorder %s202, %s205
    %p214 = scmp.eq.s32.totalorder %s19, 7
    %p215 = por %p213, %p214
    %p216 = scmp.ne.s32.totalorder %s205, %s206
    %p217 = scmp.eq.s32.totalorder %s19, 0
    %p218 = por %p216, %p217
    %p219 = scmp.ne.s32.totalorder %s205, %s206
    %p220 = scmp.eq.s32.totalorder %s20, 7
    %p221 = por %p219, %p220
    %p223 = scmp.ne.s32.totalorder %s206, %s222
    %p224 = scmp.eq.s32.totalorder %s20, 0
    %p225 = por %p223, %p224
    %p226 = scmp.le.s32.totalorder 1, %s14
    %p227 = scmp.lt.s32.totalorder %s14, 9
    %p228 = pnand %p226, %p227
    %p229 = pneg %p228
    // Predicated region
    $region9: #{baradiance_field_forward.1} parent=5 // pred_check
      _
    $region10: #{baradiance_field_forward.1} parent=5 // pred_check_branch
      %231 = sbr.rel (%p228) target = $region12
    $region11: #{baradiance_field_forward.1} parent=5 // pred_region
      %s232 = ssub.s32 %s14, 1
      // Predicated region
      $region13: #{baradiance_field_forward.1} parent=11 // pred_check
        %p233 = pneg %p87
      $region14: #{baradiance_field_forward.1} parent=11 // pred_check_branch
        %235 = sbr.rel (%p233) target = $region16
      $region15: #{baradiance_field_forward.1} parent=11 // pred_region
        _
      $region16: #{baradiance_field_forward.1} parent=11 // pred_fallthru
        _
      // Predicated region
      $region17: #{baradiance_field_forward.1} parent=11 // pred_check
        %p236 = pneg %p108
      $region18: #{baradiance_field_forward.1} parent=11 // pred_check_branch
        %238 = sbr.rel (%p236) target = $region20
      $region19: #{baradiance_field_forward.1} parent=11 // pred_region
        _
      $region20: #{baradiance_field_forward.1} parent=11 // pred_fallthru
        _
      // Predicated region
      $region21: #{baradiance_field_forward.1} parent=11 // pred_check
        %p239 = pneg %p129
      $region22: #{baradiance_field_forward.1} parent=11 // pred_check_branch
        %241 = sbr.rel (%p239) target = $region24
      $region23: #{baradiance_field_forward.1} parent=11 // pred_region
        _
      $region24: #{baradiance_field_forward.1} parent=11 // pred_fallthru
        _
      // Predicated region
      $region25: #{baradiance_field_forward.1} parent=11 // pred_check
        %p242 = pneg %p150
      $region26: #{baradiance_field_forward.1} parent=11 // pred_check_branch
        %244 = sbr.rel (%p242) target = $region28
      $region27: #{baradiance_field_forward.1} parent=11 // pred_region
        _
      $region28: #{baradiance_field_forward.1} parent=11 // pred_fallthru
        _
      // Predicated region
      $region29: #{baradiance_field_forward.1} parent=11 // pred_check
        %p245 = pneg %p171
      $region30: #{baradiance_field_forward.1} parent=11 // pred_check_branch
        %247 = sbr.rel (%p245) target = $region32
      $region31: #{baradiance_field_forward.1} parent=11 // pred_region
        _
      $region32: #{baradiance_field_forward.1} parent=11 // pred_fallthru
        _
      // Predicated region
      $region33: #{baradiance_field_forward.1} parent=11 // pred_check
        %p248 = pneg %p192
      $region34: #{baradiance_field_forward.1} parent=11 // pred_check_branch
        %250 = sbr.rel (%p248) target = $region36
      $region35: #{baradiance_field_forward.1} parent=11 // pred_region
        _
      $region36: #{baradiance_field_forward.1} parent=11 // pred_fallthru
        _
    $region12: #{baradiance_field_forward.1} parent=5 // pred_fallthru
      _
    %p251 = scmp.lt.s32.totalorder %s14, 8
    // Predicated region
    $region37: #{baradiance_field_forward.1} parent=5 // pred_check
      %p252 = pneg %p251
    $region38: #{baradiance_field_forward.1} parent=5 // pred_check_branch
      %254 = sbr.rel (%p252) target = $region40
    $region39: #{baradiance_field_forward.1} parent=5 // pred_region
      // Predicated region
      $region41: #{baradiance_field_forward.1} parent=39 // pred_check
        %p255 = pneg %p34
      $region42: #{baradiance_field_forward.1} parent=39 // pred_check_branch
        %257 = sbr.rel (%p255) target = $region44
      $region43: #{baradiance_field_forward.1} parent=39 // pred_region
        %s258 = smul.u32 64, %s14
        %p259 = scmp.lt.s32.totalorder %s258, 511
        %s260 = scalar_select %p259, %s258, 511
        %s261 = smul.addr %s260, 4
        %s262 = scalar_lea.vmem %s0, %s261
        %s263 = smul.u32 64, %s14
      $region44: #{baradiance_field_forward.1} parent=39 // pred_fallthru
        _
      // Predicated region
      $region45: #{baradiance_field_forward.1} parent=39 // pred_check
        %p264 = pneg %p60
      $region46: #{baradiance_field_forward.1} parent=39 // pred_check_branch
        %266 = sbr.rel (%p264) target = $region48
      $region47: #{baradiance_field_forward.1} parent=39 // pred_region
        %s267 = smul.u32 64, %s14
        %p268 = scmp.lt.s32.totalorder %s267, 511
        %s269 = scalar_select %p268, %s267, 511
        %s270 = smul.addr %s269, 4
        %s271 = scalar_lea.vmem %s1, %s270
        %s272 = smul.u32 64, %s14
      $region48: #{baradiance_field_forward.1} parent=39 // pred_fallthru
        _
    $region40: #{baradiance_field_forward.1} parent=5 // pred_fallthru
      _
    %p273 = scmp.le.s32.totalorder 1, %s14
    %p274 = scmp.lt.s32.totalorder %s14, 9
    %p275 = pnand %p273, %p274
    %p276 = pneg %p275
    // Predicated region
    $region49: #{baradiance_field_forward.1} parent=5 // pred_check
      _
    $region50: #{baradiance_field_forward.1} parent=5 // pred_check_branch
      %278 = sbr.rel (%p275) target = $region52
    $region51: #{baradiance_field_forward.1} parent=5 // pred_region
      %s279 = ssub.s32 %s14, 1
      %s280 = smul.u32 64, %s19
      %p281 = scmp.lt.s32.totalorder %s280, 511
      %s282 = scalar_select %p281, %s280, 511
      %s283 = smul.addr %s282, 4
      %s284 = scalar_lea.vmem %s0, %s283
      %p285 = pneg %p40
      %p286 = pneg %p37
      %s287 = smul.u32 64, %s19
      %p288 = scmp.lt.s32.totalorder %s287, 511
      %s289 = scalar_select %p288, %s287, 511
      %s290 = smul.addr %s289, 4
      %s291 = scalar_lea.vmem %s1, %s290
      %p292 = pneg %p66
      %p293 = pneg %p63
      %p294 = pneg %p87
      %p295 = pneg %p84
      %p296 = pneg %p108
      %p297 = pneg %p105
      %p298 = pneg %p129
      %p299 = pneg %p126
      %p300 = pneg %p150
      %p301 = pneg %p147
      %p302 = pneg %p171
      %p303 = pneg %p168
      %p304 = pneg %p192
      %p305 = pneg %p189
      %p306 = pneg %p218
      %p307 = pneg %p215
      %s308 = smul.u32 64, %s19
      %p309 = scmp.lt.s32.totalorder %s308, 511
      %s310 = scalar_select %p309, %s308, 511
      %s311 = smul.addr %s310, 8
      %s312 = scalar_lea.vmem %s8, %s311
      %s313 = smul.u32 64, %s19
      %p314 = scmp.lt.s32.totalorder %s313, 511
      %s315 = scalar_select %p314, %s313, 511
      %s316 = smul.addr %s315, 4
      %s317 = scalar_lea.vmem %s0, %s316
      %s318 = smul.u32 64, %s19
      %s319 = smul.u32 64, %s19
      %p320 = scmp.lt.s32.totalorder %s319, 511
      %s321 = scalar_select %p320, %s319, 511
      %s322 = smul.addr %s321, 4
      %s323 = scalar_lea.vmem %s1, %s322
      %s324 = smul.u32 64, %s19
      %s325 = smul.u32 64, %s19
      %p326 = scmp.lt.s32.totalorder %s325, 511
      %s327 = scalar_select %p326, %s325, 511
      %s328 = smul.addr %s327, 8
      %s329 = scalar_lea.vmem %s8, %s328
      %s330 = smul.u32 64, %s19
      %v332 = vld [vmem:[%s317] sm:$0xf]
      %v333 = vld [vmem:[%s317 + $0x4] sm:$0xf]
      %v334 = vld [vmem:[%s317 + $0x8] sm:$0xf]
      %v335 = vld [vmem:[%s317 + $0xc] sm:$0xf]
      %v336 = vld [vmem:[%s317 + $0x10] sm:$0xf]
      %v337 = vld [vmem:[%s317 + $0x14] sm:$0xf]
      %v338 = vld [vmem:[%s317 + $0x18] sm:$0xf]
      %v339 = vld [vmem:[%s317 + $0x1c] sm:$0xf]
      %v340 = vld [vmem:[%s317 + $0x20] sm:$0xf]
      %v341 = vld [vmem:[%s317 + $0x24] sm:$0xf]
      %v342 = vld [vmem:[%s317 + $0x28] sm:$0xf]
      %v343 = vld [vmem:[%s317 + $0x2c] sm:$0xf]
      %v344 = vld [vmem:[%s317 + $0x30] sm:$0xf]
      %v345 = vld [vmem:[%s317 + $0x34] sm:$0xf]
      %v346 = vld [vmem:[%s317 + $0x38] sm:$0xf]
      %v347 = vld [vmem:[%s317 + $0x3c] sm:$0xf]
      %v348 = vld [vmem:[%s317 + $0x40] sm:$0xf]
      %v349 = vld [vmem:[%s317 + $0x44] sm:$0xf]
      %v350 = vld [vmem:[%s317 + $0x48] sm:$0xf]
      %v351 = vld [vmem:[%s317 + $0x4c] sm:$0xf]
      %v352 = vld [vmem:[%s317 + $0x50] sm:$0xf]
      %v353 = vld [vmem:[%s317 + $0x54] sm:$0xf]
      %v354 = vld [vmem:[%s317 + $0x58] sm:$0xf]
      %v355 = vld [vmem:[%s317 + $0x5c] sm:$0xf]
      %v356 = vld [vmem:[%s317 + $0x60] sm:$0xf]
      %v357 = vld [vmem:[%s317 + $0x64] sm:$0xf]
      %v358 = vld [vmem:[%s317 + $0x68] sm:$0xf]
      %v359 = vld [vmem:[%s317 + $0x6c] sm:$0xf]
      %v360 = vld [vmem:[%s317 + $0x70] sm:$0xf]
      %v361 = vld [vmem:[%s317 + $0x74] sm:$0xf]
      %v362 = vld [vmem:[%s317 + $0x78] sm:$0xf]
      %v363 = vld [vmem:[%s317 + $0x7c] sm:$0xf]
      %v364 = vld [vmem:[%s317 + $0x80] sm:$0xf]
      %v365 = vld [vmem:[%s317 + $0x84] sm:$0xf]
      %v366 = vld [vmem:[%s317 + $0x88] sm:$0xf]
      %v367 = vld [vmem:[%s317 + $0x8c] sm:$0xf]
      %v368 = vld [vmem:[%s317 + $0x90] sm:$0xf]
      %v369 = vld [vmem:[%s317 + $0x94] sm:$0xf]
      %v370 = vld [vmem:[%s317 + $0x98] sm:$0xf]
      %v371 = vld [vmem:[%s317 + $0x9c] sm:$0xf]
      %v372 = vld [vmem:[%s317 + $0xa0] sm:$0xf]
      %v373 = vld [vmem:[%s317 + $0xa4] sm:$0xf]
      %v374 = vld [vmem:[%s317 + $0xa8] sm:$0xf]
      %v375 = vld [vmem:[%s317 + $0xac] sm:$0xf]
      %v376 = vld [vmem:[%s317 + $0xb0] sm:$0xf]
      %v377 = vld [vmem:[%s317 + $0xb4] sm:$0xf]
      %v378 = vld [vmem:[%s317 + $0xb8] sm:$0xf]
      %v379 = vld [vmem:[%s317 + $0xbc] sm:$0xf]
      %v380 = vld [vmem:[%s317 + $0xc0] sm:$0xf]
      %v381 = vld [vmem:[%s317 + $0xc4] sm:$0xf]
      %v382 = vld [vmem:[%s317 + $0xc8] sm:$0xf]
      %v383 = vld [vmem:[%s317 + $0xcc] sm:$0xf]
      %v384 = vld [vmem:[%s317 + $0xd0] sm:$0xf]
      %v385 = vld [vmem:[%s317 + $0xd4] sm:$0xf]
      %v386 = vld [vmem:[%s317 + $0xd8] sm:$0xf]
      %v387 = vld [vmem:[%s317 + $0xdc] sm:$0xf]
      %v388 = vld [vmem:[%s317 + $0xe0] sm:$0xf]
      %v389 = vld [vmem:[%s317 + $0xe4] sm:$0xf]
      %v390 = vld [vmem:[%s317 + $0xe8] sm:$0xf]
      %v391 = vld [vmem:[%s317 + $0xec] sm:$0xf]
      %v392 = vld [vmem:[%s317 + $0xf0] sm:$0xf]
      %v393 = vld [vmem:[%s317 + $0xf4] sm:$0xf]
      %v394 = vld [vmem:[%s317 + $0xf8] sm:$0xf]
      %v395 = vld [vmem:[%s317 + $0xfc] sm:$0xf]
      %v396 = vld [vmem:[%s2] sm:$0xf]
      %v397 = vld [vmem:[%s2 + $0x4] sm:$0xf]
      %v398 = vld [vmem:[%s2 + $0x8] sm:$0xf]
      %v399 = vld [vmem:[%s2 + $0xc] sm:$0xf]
      %v464 = vunpack.c.l.b16 %v332
      %v465 = vunpack.c.l.b16 %v333
      %v466 = vunpack.c.l.b16 %v334
      %v467 = vunpack.c.l.b16 %v335
      %v468 = vunpack.c.l.b16 %v336
      %v469 = vunpack.c.l.b16 %v337
      %v470 = vunpack.c.l.b16 %v338
      %v471 = vunpack.c.l.b16 %v339
      %v472 = vunpack.c.l.b16 %v340
      %v473 = vunpack.c.l.b16 %v341
      %v474 = vunpack.c.l.b16 %v342
      %v475 = vunpack.c.l.b16 %v343
      %v476 = vunpack.c.l.b16 %v344
      %v477 = vunpack.c.l.b16 %v345
      %v478 = vunpack.c.l.b16 %v346
      %v479 = vunpack.c.l.b16 %v347
      %v480 = vunpack.c.l.b16 %v348
      %v481 = vunpack.c.l.b16 %v349
      %v482 = vunpack.c.l.b16 %v350
      %v483 = vunpack.c.l.b16 %v351
      %v484 = vunpack.c.l.b16 %v352
      %v485 = vunpack.c.l.b16 %v353
      %v486 = vunpack.c.l.b16 %v354
      %v487 = vunpack.c.l.b16 %v355
      %v488 = vunpack.c.l.b16 %v356
      %v489 = vunpack.c.l.b16 %v357
      %v490 = vunpack.c.l.b16 %v358
      %v491 = vunpack.c.l.b16 %v359
      %v492 = vunpack.c.l.b16 %v360
      %v493 = vunpack.c.l.b16 %v361
      %v494 = vunpack.c.l.b16 %v362
      %v495 = vunpack.c.l.b16 %v363
      %v496 = vunpack.c.l.b16 %v364
      %v497 = vunpack.c.l.b16 %v365
      %v498 = vunpack.c.l.b16 %v366
      %v499 = vunpack.c.l.b16 %v367
      %v500 = vunpack.c.l.b16 %v368
      %v501 = vunpack.c.l.b16 %v369
      %v502 = vunpack.c.l.b16 %v370
      %v503 = vunpack.c.l.b16 %v371
      %v504 = vunpack.c.l.b16 %v372
      %v505 = vunpack.c.l.b16 %v373
      %v506 = vunpack.c.l.b16 %v374
      %v507 = vunpack.c.l.b16 %v375
      %v508 = vunpack.c.l.b16 %v376
      %v509 = vunpack.c.l.b16 %v377
      %v510 = vunpack.c.l.b16 %v378
      %v511 = vunpack.c.l.b16 %v379
      %v512 = vunpack.c.l.b16 %v380
      %v513 = vunpack.c.l.b16 %v381
      %v514 = vunpack.c.l.b16 %v382
      %v515 = vunpack.c.l.b16 %v383
      %v516 = vunpack.c.l.b16 %v384
      %v517 = vunpack.c.l.b16 %v385
      %v518 = vunpack.c.l.b16 %v386
      %v519 = vunpack.c.l.b16 %v387
      %v520 = vunpack.c.l.b16 %v388
      %v521 = vunpack.c.l.b16 %v389
      %v522 = vunpack.c.l.b16 %v390
      %v523 = vunpack.c.l.b16 %v391
      %v524 = vunpack.c.l.b16 %v392
      %v525 = vunpack.c.l.b16 %v393
      %v526 = vunpack.c.l.b16 %v394
      %v527 = vunpack.c.l.b16 %v395
      %v528 = vpack.c.b16 %v465, %v464
      %v529 = vpack.c.b16 %v467, %v466
      %v530 = vpack.c.b16 %v469, %v468
      %v531 = vpack.c.b16 %v471, %v470
      %v532 = vpack.c.b16 %v473, %v472
      %v533 = vpack.c.b16 %v475, %v474
      %v534 = vpack.c.b16 %v477, %v476
      %v535 = vpack.c.b16 %v479, %v478
      %v536 = vpack.c.b16 %v481, %v480
      %v537 = vpack.c.b16 %v483, %v482
      %v538 = vpack.c.b16 %v485, %v484
      %v539 = vpack.c.b16 %v487, %v486
      %v540 = vpack.c.b16 %v489, %v488
      %v541 = vpack.c.b16 %v491, %v490
      %v542 = vpack.c.b16 %v493, %v492
      %v543 = vpack.c.b16 %v495, %v494
      %v544 = vpack.c.b16 %v497, %v496
      %v545 = vpack.c.b16 %v499, %v498
      %v546 = vpack.c.b16 %v501, %v500
      %v547 = vpack.c.b16 %v503, %v502
      %v548 = vpack.c.b16 %v505, %v504
      %v549 = vpack.c.b16 %v507, %v506
      %v550 = vpack.c.b16 %v509, %v508
      %v551 = vpack.c.b16 %v511, %v510
      %v552 = vpack.c.b16 %v513, %v512
      %v553 = vpack.c.b16 %v515, %v514
      %v554 = vpack.c.b16 %v517, %v516
      %v555 = vpack.c.b16 %v519, %v518
      %v556 = vpack.c.b16 %v521, %v520
      %v557 = vpack.c.b16 %v523, %v522
      %v558 = vpack.c.b16 %v525, %v524
      %v559 = vpack.c.b16 %v527, %v526
      %v564 = vunpack.c.l.b16 %v396
      %v565 = vunpack.c.l.b16 %v397
      %v566 = vunpack.c.l.b16 %v398
      %v567 = vunpack.c.l.b16 %v399
      %v568 = vpack.c.b16 %v565, %v564
      %v569 = vpack.c.b16 %v567, %v566
      %vm572 = vcmask 261120
      %v574 = vsel %vm572, %v528, 0
      %v577 = vsel %vm572, %v529, 0
      %v580 = vsel %vm572, %v530, 0
      %v583 = vsel %vm572, %v531, 0
      %v586 = vsel %vm572, %v532, 0
      %v589 = vsel %vm572, %v533, 0
      %v592 = vsel %vm572, %v534, 0
      %v595 = vsel %vm572, %v535, 0
      %v598 = vsel %vm572, %v536, 0
      %v601 = vsel %vm572, %v537, 0
      %v604 = vsel %vm572, %v538, 0
      %v607 = vsel %vm572, %v539, 0
      %v610 = vsel %vm572, %v540, 0
      %v613 = vsel %vm572, %v541, 0
      %v616 = vsel %vm572, %v542, 0
      %v619 = vsel %vm572, %v543, 0
      %v622 = vsel %vm572, %v544, 0
      %v625 = vsel %vm572, %v545, 0
      %v628 = vsel %vm572, %v546, 0
      %v631 = vsel %vm572, %v547, 0
      %v634 = vsel %vm572, %v548, 0
      %v637 = vsel %vm572, %v549, 0
      %v640 = vsel %vm572, %v550, 0
      %v643 = vsel %vm572, %v551, 0
      %v646 = vsel %vm572, %v552, 0
      %v649 = vsel %vm572, %v553, 0
      %v652 = vsel %vm572, %v554, 0
      %v655 = vsel %vm572, %v555, 0
      %v658 = vsel %vm572, %v556, 0
      %v661 = vsel %vm572, %v557, 0
      %v664 = vsel %vm572, %v558, 0
      %v667 = vsel %vm572, %v559, 0
      %669 = vmatprep.subr.bf16.mxu0 0
      %670 = vmatpush1.bf16.msra.mxu0 %v568
      %671 = vmatprep.subr.bf16.mxu0 0
      %672 = vmatpush1.bf16.msra.mxu0 %v569
      %673 = vmatprep.subr.bf16.mxu0 0
      %674 = vmatpush1.bf16.msra.mxu0 0
      %675 = vmatprep.subr.bf16.mxu0 0
      %676 = vmatpush1.bf16.msra.mxu0 0
      %677 = vmatprep.subr.bf16.mxu0 0
      %678 = vmatpush1.bf16.msra.mxu0 0
      %679 = vmatprep.subr.bf16.mxu0 0
      %680 = vmatpush1.bf16.msra.mxu0 0
      %681 = vmatprep.subr.bf16.mxu0 0
      %682 = vmatpush1.bf16.msra.mxu0 0
      %683 = vmatprep.subr.bf16.mxu0 0
      %684 = vmatpush1.bf16.msra.mxu0 0
      %685 = vmatprep.subr.bf16.mxu0 0
      %686 = vmatpush1.bf16.msra.mxu0 0
      %687 = vmatprep.subr.bf16.mxu0 0
      %688 = vmatpush1.bf16.msra.mxu0 0
      %689 = vmatprep.subr.bf16.mxu0 0
      %690 = vmatpush1.bf16.msra.mxu0 0
      %691 = vmatprep.subr.bf16.mxu0 0
      %692 = vmatpush1.bf16.msra.mxu0 0
      %693 = vmatprep.subr.bf16.mxu0 0
      %694 = vmatpush1.bf16.msra.mxu0 0
      %695 = vmatprep.subr.bf16.mxu0 0
      %696 = vmatpush1.bf16.msra.mxu0 0
      %697 = vmatprep.subr.bf16.mxu0 0
      %698 = vmatpush1.bf16.msra.mxu0 0
      %699 = vmatprep.subr.bf16.mxu0 0
      %700 = vmatpush1.bf16.msra.mxu0 0
      %701 = vmatprep.mubr.bf16.mxu0 0
      %702 = vmatmul.mubr.bf16.gmra.mrb[0].mxu0 %v574
      %v703 = vpop.f32.mrb[0].mxu0
      %v704 = vadd.f32 0.0, %v703
      %v705 = vpop.f32.mrb[0].mxu0
      %v706 = vpop.f32.mrb[0].mxu0
      %v707 = vadd.f32 0.0, %v706
      %v708 = vpop.f32.mrb[0].mxu0
      %709 = vmatprep.mubr.bf16.mxu0 0
      %710 = vmatmul.mubr.bf16.gmra.mrb[0].mxu0 %v577
      %v711 = vpop.f32.mrb[0].mxu0
      %v712 = vadd.f32 0.0, %v711
      %v713 = vpop.f32.mrb[0].mxu0
      %v714 = vpop.f32.mrb[0].mxu0
      %v715 = vadd.f32 0.0, %v714
      %v716 = vpop.f32.mrb[0].mxu0
      %717 = vmatprep.mubr.bf16.mxu0 0
      %718 = vmatmul.mubr.bf16.gmra.mrb[0].mxu0 %v580
      %v719 = vpop.f32.mrb[0].mxu0
      %v720 = vadd.f32 0.0, %v719
      %v721 = vpop.f32.mrb[0].mxu0
      %v722 = vpop.f32.mrb[0].mxu0
      %v723 = vadd.f32 0.0, %v722
      %v724 = vpop.f32.mrb[0].mxu0
      %725 = vmatprep.mubr.bf16.mxu0 0
      %726 = vmatmul.mubr.bf16.gmra.mrb[0].mxu0 %v583
      %v727 = vpop.f32.mrb[0].mxu0
      %v728 = vadd.f32 0.0, %v727
      %v729 = vpop.f32.mrb[0].mxu0
      %v730 = vpop.f32.mrb[0].mxu0
      %v731 = vadd.f32 0.0, %v730
      %v732 = vpop.f32.mrb[0].mxu0
      %733 = vmatprep.mubr.bf16.mxu0 0
      %734 = vmatmul.mubr.bf16.gmra.mrb[0].mxu0 %v586
      %v735 = vpop.f32.mrb[0].mxu0
      %v736 = vadd.f32 0.0, %v735
      %v737 = vpop.f32.mrb[0].mxu0
      %v738 = vpop.f32.mrb[0].mxu0
      %v739 = vadd.f32 0.0, %v738
      %v740 = vpop.f32.mrb[0].mxu0
      %741 = vmatprep.mubr.bf16.mxu0 0
      %742 = vmatmul.mubr.bf16.gmra.mrb[0].mxu0 %v589
      %v743 = vpop.f32.mrb[0].mxu0
      %v744 = vadd.f32 0.0, %v743
      %v745 = vpop.f32.mrb[0].mxu0
      %v746 = vpop.f32.mrb[0].mxu0
      %v747 = vadd.f32 0.0, %v746
      %v748 = vpop.f32.mrb[0].mxu0
      %749 = vmatprep.mubr.bf16.mxu0 0
      %750 = vmatmul.mubr.bf16.gmra.mrb[0].mxu0 %v592
      %v751 = vpop.f32.mrb[0].mxu0
      %v752 = vadd.f32 0.0, %v751
      %v753 = vpop.f32.mrb[0].mxu0
      %v754 = vpop.f32.mrb[0].mxu0
      %v755 = vadd.f32 0.0, %v754
      %v756 = vpop.f32.mrb[0].mxu0
      %757 = vmatprep.mubr.bf16.mxu0 0
      %758 = vmatmul.mubr.bf16.gmra.mrb[0].mxu0 %v595
      %v759 = vpop.f32.mrb[0].mxu0
      %v760 = vadd.f32 0.0, %v759
      %v761 = vpop.f32.mrb[0].mxu0
      %v762 = vpop.f32.mrb[0].mxu0
      %v763 = vadd.f32 0.0, %v762
      %v764 = vpop.f32.mrb[0].mxu0
      %765 = vmatprep.mubr.bf16.mxu0 0
      %766 = vmatmul.mubr.bf16.gmra.mrb[0].mxu0 %v598
      %v767 = vpop.f32.mrb[0].mxu0
      %v768 = vadd.f32 0.0, %v767
      %v769 = vpop.f32.mrb[0].mxu0
      %v770 = vpop.f32.mrb[0].mxu0
      %v771 = vadd.f32 0.0, %v770
      %v772 = vpop.f32.mrb[0].mxu0
      %773 = vmatprep.mubr.bf16.mxu0 0
      %774 = vmatmul.mubr.bf16.gmra.mrb[0].mxu0 %v601
      %v775 = vpop.f32.mrb[0].mxu0
      %v776 = vadd.f32 0.0, %v775
      %v777 = vpop.f32.mrb[0].mxu0
      %v778 = vpop.f32.mrb[0].mxu0
      %v779 = vadd.f32 0.0, %v778
      %v780 = vpop.f32.mrb[0].mxu0
      %781 = vmatprep.mubr.bf16.mxu0 0
      %782 = vmatmul.mubr.bf16.gmra.mrb[0].mxu0 %v604
      %v783 = vpop.f32.mrb[0].mxu0
      %v784 = vadd.f32 0.0, %v783
      %v785 = vpop.f32.mrb[0].mxu0
      %v786 = vpop.f32.mrb[0].mxu0
      %v787 = vadd.f32 0.0, %v786
      %v788 = vpop.f32.mrb[0].mxu0
      %789 = vmatprep.mubr.bf16.mxu0 0
      %790 = vmatmul.mubr.bf16.gmra.mrb[0].mxu0 %v607
      %v791 = vpop.f32.mrb[0].mxu0
      %v792 = vadd.f32 0.0, %v791
      %v793 = vpop.f32.mrb[0].mxu0
      %v794 = vpop.f32.mrb[0].mxu0
      %v795 = vadd.f32 0.0, %v794
      %v796 = vpop.f32.mrb[0].mxu0
      %797 = vmatprep.mubr.bf16.mxu0 0
      %798 = vmatmul.mubr.bf16.gmra.mrb[0].mxu0 %v610
      %v799 = vpop.f32.mrb[0].mxu0
      %v800 = vadd.f32 0.0, %v799
      %v801 = vpop.f32.mrb[0].mxu0
      %v802 = vpop.f32.mrb[0].mxu0
      %v803 = vadd.f32 0.0, %v802
      %v804 = vpop.f32.mrb[0].mxu0
      %805 = vmatprep.mubr.bf16.mxu0 0
      %806 = vmatmul.mubr.bf16.gmra.mrb[0].mxu0 %v613
      %v807 = vpop.f32.mrb[0].mxu0
      %v808 = vadd.f32 0.0, %v807
      %v809 = vpop.f32.mrb[0].mxu0
      %v810 = vpop.f32.mrb[0].mxu0
      %v811 = vadd.f32 0.0, %v810
      %v812 = vpop.f32.mrb[0].mxu0
      %813 = vmatprep.mubr.bf16.mxu0 0
      %814 = vmatmul.mubr.bf16.gmra.mrb[0].mxu0 %v616
      %v815 = vpop.f32.mrb[0].mxu0
      %v816 = vadd.f32 0.0, %v815
      %v817 = vpop.f32.mrb[0].mxu0
      %v818 = vpop.f32.mrb[0].mxu0
      %v819 = vadd.f32 0.0, %v818
      %v820 = vpop.f32.mrb[0].mxu0
      %821 = vmatprep.mubr.bf16.mxu0 0
      %822 = vmatmul.mubr.bf16.gmra.mrb[0].mxu0 %v619
      %v823 = vpop.f32.mrb[0].mxu0
      %v824 = vadd.f32 0.0, %v823
      %v825 = vpop.f32.mrb[0].mxu0
      %v826 = vpop.f32.mrb[0].mxu0
      %v827 = vadd.f32 0.0, %v826
      %v828 = vpop.f32.mrb[0].mxu0
      %829 = vmatprep.mubr.bf16.mxu0 0
      %830 = vmatmul.mubr.bf16.gmra.mrb[0].mxu0 %v622
      %v831 = vpop.f32.mrb[0].mxu0
      %v832 = vadd.f32 0.0, %v831
      %v833 = vpop.f32.mrb[0].mxu0
      %v834 = vpop.f32.mrb[0].mxu0
      %v835 = vadd.f32 0.0, %v834
      %v836 = vpop.f32.mrb[0].mxu0
      %837 = vmatprep.mubr.bf16.mxu0 0
      %838 = vmatmul.mubr.bf16.gmra.mrb[0].mxu0 %v625
      %v839 = vpop.f32.mrb[0].mxu0
      %v840 = vadd.f32 0.0, %v839
      %v841 = vpop.f32.mrb[0].mxu0
      %v842 = vpop.f32.mrb[0].mxu0
      %v843 = vadd.f32 0.0, %v842
      %v844 = vpop.f32.mrb[0].mxu0
      %845 = vmatprep.mubr.bf16.mxu0 0
      %846 = vmatmul.mubr.bf16.gmra.mrb[0].mxu0 %v628
      %v847 = vpop.f32.mrb[0].mxu0
      %v848 = vadd.f32 0.0, %v847
      %v849 = vpop.f32.mrb[0].mxu0
      %v850 = vpop.f32.mrb[0].mxu0
      %v851 = vadd.f32 0.0, %v850
      %v852 = vpop.f32.mrb[0].mxu0
      %853 = vmatprep.mubr.bf16.mxu0 0
      %854 = vmatmul.mubr.bf16.gmra.mrb[0].mxu0 %v631
      %v855 = vpop.f32.mrb[0].mxu0
      %v856 = vadd.f32 0.0, %v855
      %v857 = vpop.f32.mrb[0].mxu0
      %v858 = vpop.f32.mrb[0].mxu0
      %v859 = vadd.f32 0.0, %v858
      %v860 = vpop.f32.mrb[0].mxu0
      %861 = vmatprep.mubr.bf16.mxu0 0
      %862 = vmatmul.mubr.bf16.gmra.mrb[0].mxu0 %v634
      %v863 = vpop.f32.mrb[0].mxu0
      %v864 = vadd.f32 0.0, %v863
      %v865 = vpop.f32.mrb[0].mxu0
      %v866 = vpop.f32.mrb[0].mxu0
      %v867 = vadd.f32 0.0, %v866
      %v868 = vpop.f32.mrb[0].mxu0
      %869 = vmatprep.mubr.bf16.mxu0 0
      %870 = vmatmul.mubr.bf16.gmra.mrb[0].mxu0 %v637
      %v871 = vpop.f32.mrb[0].mxu0
      %v872 = vadd.f32 0.0, %v871
      %v873 = vpop.f32.mrb[0].mxu0
      %v874 = vpop.f32.mrb[0].mxu0
      %v875 = vadd.f32 0.0, %v874
      %v876 = vpop.f32.mrb[0].mxu0
      %877 = vmatprep.mubr.bf16.mxu0 0
      %878 = vmatmul.mubr.bf16.gmra.mrb[0].mxu0 %v640
      %v879 = vpop.f32.mrb[0].mxu0
      %v880 = vadd.f32 0.0, %v879
      %v881 = vpop.f32.mrb[0].mxu0
      %v882 = vpop.f32.mrb[0].mxu0
      %v883 = vadd.f32 0.0, %v882
      %v884 = vpop.f32.mrb[0].mxu0
      %885 = vmatprep.mubr.bf16.mxu0 0
      %886 = vmatmul.mubr.bf16.gmra.mrb[0].mxu0 %v643
      %v887 = vpop.f32.mrb[0].mxu0
      %v888 = vadd.f32 0.0, %v887
      %v889 = vpop.f32.mrb[0].mxu0
      %v890 = vpop.f32.mrb[0].mxu0
      %v891 = vadd.f32 0.0, %v890
      %v892 = vpop.f32.mrb[0].mxu0
      %893 = vmatprep.mubr.bf16.mxu0 0
      %894 = vmatmul.mubr.bf16.gmra.mrb[0].mxu0 %v646
      %v895 = vpop.f32.mrb[0].mxu0
      %v896 = vadd.f32 0.0, %v895
      %v897 = vpop.f32.mrb[0].mxu0
      %v898 = vpop.f32.mrb[0].mxu0
      %v899 = vadd.f32 0.0, %v898
      %v900 = vpop.f32.mrb[0].mxu0
      %901 = vmatprep.mubr.bf16.mxu0 0
      %902 = vmatmul.mubr.bf16.gmra.mrb[0].mxu0 %v649
      %v903 = vpop.f32.mrb[0].mxu0
      %v904 = vadd.f32 0.0, %v903
      %v905 = vpop.f32.mrb[0].mxu0
      %v906 = vpop.f32.mrb[0].mxu0
      %v907 = vadd.f32 0.0, %v906
      %v908 = vpop.f32.mrb[0].mxu0
      %909 = vmatprep.mubr.bf16.mxu0 0
      %910 = vmatmul.mubr.bf16.gmra.mrb[0].mxu0 %v652
      %v911 = vpop.f32.mrb[0].mxu0
      %v912 = vadd.f32 0.0, %v911
      %v913 = vpop.f32.mrb[0].mxu0
      %v914 = vpop.f32.mrb[0].mxu0
      %v915 = vadd.f32 0.0, %v914
      %v916 = vpop.f32.mrb[0].mxu0
      %917 = vmatprep.mubr.bf16.mxu0 0
      %918 = vmatmul.mubr.bf16.gmra.mrb[0].mxu0 %v655
      %v919 = vpop.f32.mrb[0].mxu0
      %v920 = vadd.f32 0.0, %v919
      %v921 = vpop.f32.mrb[0].mxu0
      %v922 = vpop.f32.mrb[0].mxu0
      %v923 = vadd.f32 0.0, %v922
      %v924 = vpop.f32.mrb[0].mxu0
      %925 = vmatprep.mubr.bf16.mxu0 0
      %926 = vmatmul.mubr.bf16.gmra.mrb[0].mxu0 %v658
      %v927 = vpop.f32.mrb[0].mxu0
      %v928 = vadd.f32 0.0, %v927
      %v929 = vpop.f32.mrb[0].mxu0
      %v930 = vpop.f32.mrb[0].mxu0
      %v931 = vadd.f32 0.0, %v930
      %v932 = vpop.f32.mrb[0].mxu0
      %933 = vmatprep.mubr.bf16.mxu0 0
      %934 = vmatmul.mubr.bf16.gmra.mrb[0].mxu0 %v661
      %v935 = vpop.f32.mrb[0].mxu0
      %v936 = vadd.f32 0.0, %v935
      %v937 = vpop.f32.mrb[0].mxu0
      %v938 = vpop.f32.mrb[0].mxu0
      %v939 = vadd.f32 0.0, %v938
      %v940 = vpop.f32.mrb[0].mxu0
      %941 = vmatprep.mubr.bf16.mxu0 0
      %942 = vmatmul.mubr.bf16.gmra.mrb[0].mxu0 %v664
      %v943 = vpop.f32.mrb[0].mxu0
      %v944 = vadd.f32 0.0, %v943
      %v945 = vpop.f32.mrb[0].mxu0
      %v946 = vpop.f32.mrb[0].mxu0
      %v947 = vadd.f32 0.0, %v946
      %v948 = vpop.f32.mrb[0].mxu0
      %949 = vmatprep.mubr.bf16.mxu0 0
      %950 = vmatmul.mubr.bf16.gmra.mrb[0].mxu0 %v667
      %v951 = vpop.f32.mrb[0].mxu0
      %v952 = vadd.f32 0.0, %v951
      %v953 = vpop.f32.mrb[0].mxu0
      %v954 = vpop.f32.mrb[0].mxu0
      %v955 = vadd.f32 0.0, %v954
      %v956 = vpop.f32.mrb[0].mxu0
      %957 = vdwg.mxu0
      %v958 = vmax.f32 %v704, 0.0
      %v959 = vmax.f32 %v707, 0.0
      %v960 = vmax.f32 %v712, 0.0
      %v961 = vmax.f32 %v715, 0.0
      %v962 = vmax.f32 %v720, 0.0
      %v963 = vmax.f32 %v723, 0.0
      %v964 = vmax.f32 %v728, 0.0
      %v965 = vmax.f32 %v731, 0.0
      %v966 = vmax.f32 %v736, 0.0
      %v967 = vmax.f32 %v739, 0.0
      %v968 = vmax.f32 %v744, 0.0
      %v969 = vmax.f32 %v747, 0.0
      %v970 = vmax.f32 %v752, 0.0
      %v971 = vmax.f32 %v755, 0.0
      %v972 = vmax.f32 %v760, 0.0
      %v973 = vmax.f32 %v763, 0.0
      %v974 = vmax.f32 %v768, 0.0
      %v975 = vmax.f32 %v771, 0.0
      %v976 = vmax.f32 %v776, 0.0
      %v977 = vmax.f32 %v779, 0.0
      %v978 = vmax.f32 %v784, 0.0
      %v979 = vmax.f32 %v787, 0.0
      %v980 = vmax.f32 %v792, 0.0
      %v981 = vmax.f32 %v795, 0.0
      %v982 = vmax.f32 %v800, 0.0
      %v983 = vmax.f32 %v803, 0.0
      %v984 = vmax.f32 %v808, 0.0
      %v985 = vmax.f32 %v811, 0.0
      %v986 = vmax.f32 %v816, 0.0
      %v987 = vmax.f32 %v819, 0.0
      %v988 = vmax.f32 %v824, 0.0
      %v989 = vmax.f32 %v827, 0.0
      %v990 = vmax.f32 %v832, 0.0
      %v991 = vmax.f32 %v835, 0.0
      %v992 = vmax.f32 %v840, 0.0
      %v993 = vmax.f32 %v843, 0.0
      %v994 = vmax.f32 %v848, 0.0
      %v995 = vmax.f32 %v851, 0.0
      %v996 = vmax.f32 %v856, 0.0
      %v997 = vmax.f32 %v859, 0.0
      %v998 = vmax.f32 %v864, 0.0
      %v999 = vmax.f32 %v867, 0.0
      %v1000 = vmax.f32 %v872, 0.0
      %v1001 = vmax.f32 %v875, 0.0
      %v1002 = vmax.f32 %v880, 0.0
      %v1003 = vmax.f32 %v883, 0.0
      %v1004 = vmax.f32 %v888, 0.0
      %v1005 = vmax.f32 %v891, 0.0
      %v1006 = vmax.f32 %v896, 0.0
      %v1007 = vmax.f32 %v899, 0.0
      %v1008 = vmax.f32 %v904, 0.0
      %v1009 = vmax.f32 %v907, 0.0
      %v1010 = vmax.f32 %v912, 0.0
      %v1011 = vmax.f32 %v915, 0.0
      %v1012 = vmax.f32 %v920, 0.0
      %v1013 = vmax.f32 %v923, 0.0
      %v1014 = vmax.f32 %v928, 0.0
      %v1015 = vmax.f32 %v931, 0.0
      %v1016 = vmax.f32 %v936, 0.0
      %v1017 = vmax.f32 %v939, 0.0
      %v1018 = vmax.f32 %v944, 0.0
      %v1019 = vmax.f32 %v947, 0.0
      %v1020 = vmax.f32 %v952, 0.0
      %v1021 = vmax.f32 %v955, 0.0
      %v1022 = vpack.c.bf16 %v959, %v958
      %v1023 = vpack.c.bf16 %v961, %v960
      %v1024 = vpack.c.bf16 %v963, %v962
      %v1025 = vpack.c.bf16 %v965, %v964
      %v1026 = vpack.c.bf16 %v967, %v966
      %v1027 = vpack.c.bf16 %v969, %v968
      %v1028 = vpack.c.bf16 %v971, %v970
      %v1029 = vpack.c.bf16 %v973, %v972
      %v1030 = vpack.c.bf16 %v975, %v974
      %v1031 = vpack.c.bf16 %v977, %v976
      %v1032 = vpack.c.bf16 %v979, %v978
      %v1033 = vpack.c.bf16 %v981, %v980
      %v1034 = vpack.c.bf16 %v983, %v982
      %v1035 = vpack.c.bf16 %v985, %v984
      %v1036 = vpack.c.bf16 %v987, %v986
      %v1037 = vpack.c.bf16 %v989, %v988
      %v1038 = vpack.c.bf16 %v991, %v990
      %v1039 = vpack.c.bf16 %v993, %v992
      %v1040 = vpack.c.bf16 %v995, %v994
      %v1041 = vpack.c.bf16 %v997, %v996
      %v1042 = vpack.c.bf16 %v999, %v998
      %v1043 = vpack.c.bf16 %v1001, %v1000
      %v1044 = vpack.c.bf16 %v1003, %v1002
      %v1045 = vpack.c.bf16 %v1005, %v1004
      %v1046 = vpack.c.bf16 %v1007, %v1006
      %v1047 = vpack.c.bf16 %v1009, %v1008
      %v1048 = vpack.c.bf16 %v1011, %v1010
      %v1049 = vpack.c.bf16 %v1013, %v1012
      %v1050 = vpack.c.bf16 %v1015, %v1014
      %v1051 = vpack.c.bf16 %v1017, %v1016
      %v1052 = vpack.c.bf16 %v1019, %v1018
      %v1053 = vpack.c.bf16 %v1021, %v1020
      %v1054 = vld [vmem:[%s3] sm:$0xf]
      %v1055 = vld [vmem:[%s3 + $0x4] sm:$0xf]
      %v1056 = vld [vmem:[%s3 + $0x8] sm:$0xf]
      %v1057 = vld [vmem:[%s3 + $0xc] sm:$0xf]
      %v1058 = vld [vmem:[%s3 + $0x10] sm:$0xf]
      %v1059 = vld [vmem:[%s3 + $0x14] sm:$0xf]
      %v1060 = vld [vmem:[%s3 + $0x18] sm:$0xf]
      %v1061 = vld [vmem:[%s3 + $0x1c] sm:$0xf]
      %v1070 = vunpack.c.l.b16 %v1054
      %v1071 = vunpack.c.l.b16 %v1055
      %v1072 = vunpack.c.l.b16 %v1056
      %v1073 = vunpack.c.l.b16 %v1057
      %v1074 = vunpack.c.l.b16 %v1058
      %v1075 = vunpack.c.l.b16 %v1059
      %v1076 = vunpack.c.l.b16 %v1060
      %v1077 = vunpack.c.l.b16 %v1061
      %v1078 = vpack.c.b16 %v1071, %v1070
      %v1079 = vpack.c.b16 %v1073, %v1072
      %v1080 = vpack.c.b16 %v1075, %v1074
      %v1081 = vpack.c.b16 %v1077, %v1076
      %vm1086 = vcmask 523264
      %v1088 = vsel %vm1086, %v1022, 0
      %v1091 = vsel %vm1086, %v1023, 0
      %v1094 = vsel %vm1086, %v1024, 0
      %v1097 = vsel %vm1086, %v1025, 0
      %v1100 = vsel %vm1086, %v1026, 0
      %v1103 = vsel %vm1086, %v1027, 0
      %v1106 = vsel %vm1086, %v1028, 0
      %v1109 = vsel %vm1086, %v1029, 0
      %v1112 = vsel %vm1086, %v1030, 0
      %v1115 = vsel %vm1086, %v1031, 0
      %v1118 = vsel %vm1086, %v1032, 0
      %v1121 = vsel %vm1086, %v1033, 0
      %v1124 = vsel %vm1086, %v1034, 0
      %v1127 = vsel %vm1086, %v1035, 0
      %v1130 = vsel %vm1086, %v1036, 0
      %v1133 = vsel %vm1086, %v1037, 0
      %v1136 = vsel %vm1086, %v1038, 0
      %v1139 = vsel %vm1086, %v1039, 0
      %v1142 = vsel %vm1086, %v1040, 0
      %v1145 = vsel %vm1086, %v1041, 0
      %v1148 = vsel %vm1086, %v1042, 0
      %v1151 = vsel %vm1086, %v1043, 0
      %v1154 = vsel %vm1086, %v1044, 0
      %v1157 = vsel %vm1086, %v1045, 0
      %v1160 = vsel %vm1086, %v1046, 0
      %v1163 = vsel %vm1086, %v1047, 0
      %v1166 = vsel %vm1086, %v1048, 0
      %v1169 = vsel %vm1086, %v1049, 0
      %v1172 = vsel %vm1086, %v1050, 0
      %v1175 = vsel %vm1086, %v1051, 0
      %v1178 = vsel %vm1086, %v1052, 0
      %v1181 = vsel %vm1086, %v1053, 0
      %1183 = vmatprep.subr.bf16.mxu0 0
      %1184 = vmatpush1.bf16.msra.mxu0 %v1078
      %1185 = vmatprep.subr.bf16.mxu0 0
      %1186 = vmatpush1.bf16.msra.mxu0 %v1079
      %1187 = vmatprep.subr.bf16.mxu0 0
      %1188 = vmatpush1.bf16.msra.mxu0 %v1080
      %1189 = vmatprep.subr.bf16.mxu0 0
      %1190 = vmatpush1.bf16.msra.mxu0 %v1081
      %1191 = vmatprep.subr.bf16.mxu0 0
      %1192 = vmatpush1.bf16.msra.mxu0 0
      %1193 = vmatprep.subr.bf16.mxu0 0
      %1194 = vmatpush1.bf16.msra.mxu0 0
      %1195 = vmatprep.subr.bf16.mxu0 0
      %1196 = vmatpush1.bf16.msra.mxu0 0
      %1197 = vmatprep.subr.bf16.mxu0 0
      %1198 = vmatpush1.bf16.msra.mxu0 0
      %1199 = vmatprep.subr.bf16.mxu0 0
      %1200 = vmatpush1.bf16.msra.mxu0 0
      %1201 = vmatprep.subr.bf16.mxu0 0
      %1202 = vmatpush1.bf16.msra.mxu0 0
      %1203 = vmatprep.subr.bf16.mxu0 0
      %1204 = vmatpush1.bf16.msra.mxu0 0
      %1205 = vmatprep.subr.bf16.mxu0 0
      %1206 = vmatpush1.bf16.msra.mxu0 0
      %1207 = vmatprep.subr.bf16.mxu0 0
      %1208 = vmatpush1.bf16.msra.mxu0 0
      %1209 = vmatprep.subr.bf16.mxu0 0
      %1210 = vmatpush1.bf16.msra.mxu0 0
      %1211 = vmatprep.subr.bf16.mxu0 0
      %1212 = vmatpush1.bf16.msra.mxu0 0
      %1213 = vmatprep.subr.bf16.mxu0 0
      %1214 = vmatpush1.bf16.msra.mxu0 0
      %1215 = vmatprep.mubr.bf16.mxu0 0
      %1216 = vmatmul.mubr.bf16.gmra.mrb[0].mxu0 %v1088
      %v1217 = vpop.f32.mrb[0].mxu0
      %v1218 = vadd.f32 0.0, %v1217
      %v1219 = vpop.f32.mrb[0].mxu0
      %v1220 = vpop.f32.mrb[0].mxu0
      %v1221 = vadd.f32 0.0, %v1220
      %v1222 = vpop.f32.mrb[0].mxu0
      %1223 = vmatprep.mubr.bf16.mxu0 0
      %1224 = vmatmul.mubr.bf16.gmra.mrb[0].mxu0 %v1091
      %v1225 = vpop.f32.mrb[0].mxu0
      %v1226 = vadd.f32 0.0, %v1225
      %v1227 = vpop.f32.mrb[0].mxu0
      %v1228 = vpop.f32.mrb[0].mxu0
      %v1229 = vadd.f32 0.0, %v1228
      %v1230 = vpop.f32.mrb[0].mxu0
      %1231 = vmatprep.mubr.bf16.mxu0 0
      %1232 = vmatmul.mubr.bf16.gmra.mrb[0].mxu0 %v1094
      %v1233 = vpop.f32.mrb[0].mxu0
      %v1234 = vadd.f32 0.0, %v1233
      %v1235 = vpop.f32.mrb[0].mxu0
      %v1236 = vpop.f32.mrb[0].mxu0
      %v1237 = vadd.f32 0.0, %v1236
      %v1238 = vpop.f32.mrb[0].mxu0
      %1239 = vmatprep.mubr.bf16.mxu0 0
      %1240 = vmatmul.mubr.bf16.gmra.mrb[0].mxu0 %v1097
      %v1241 = vpop.f32.mrb[0].mxu0
      %v1242 = vadd.f32 0.0, %v1241
      %v1243 = vpop.f32.mrb[0].mxu0
      %v1244 = vpop.f32.mrb[0].mxu0
      %v1245 = vadd.f32 0.0, %v1244
      %v1246 = vpop.f32.mrb[0].mxu0
      %1247 = vmatprep.mubr.bf16.mxu0 0
      %1248 = vmatmul.mubr.bf16.gmra.mrb[0].mxu0 %v1100
      %v1249 = vpop.f32.mrb[0].mxu0
      %v1250 = vadd.f32 0.0, %v1249
      %v1251 = vpop.f32.mrb[0].mxu0
      %v1252 = vpop.f32.mrb[0].mxu0
      %v1253 = vadd.f32 0.0, %v1252
      %v1254 = vpop.f32.mrb[0].mxu0
      %1255 = vmatprep.mubr.bf16.mxu0 0
      %1256 = vmatmul.mubr.bf16.gmra.mrb[0].mxu0 %v1103
      %v1257 = vpop.f32.mrb[0].mxu0
      %v1258 = vadd.f32 0.0, %v1257
      %v1259 = vpop.f32.mrb[0].mxu0
      %v1260 = vpop.f32.mrb[0].mxu0
      %v1261 = vadd.f32 0.0, %v1260
      %v1262 = vpop.f32.mrb[0].mxu0
      %1263 = vmatprep.mubr.bf16.mxu0 0
      %1264 = vmatmul.mubr.bf16.gmra.mrb[0].mxu0 %v1106
      %v1265 = vpop.f32.mrb[0].mxu0
      %v1266 = vadd.f32 0.0, %v1265
      %v1267 = vpop.f32.mrb[0].mxu0
      %v1268 = vpop.f32.mrb[0].mxu0
      %v1269 = vadd.f32 0.0, %v1268
      %v1270 = vpop.f32.mrb[0].mxu0
      %1271 = vmatprep.mubr.bf16.mxu0 0
      %1272 = vmatmul.mubr.bf16.gmra.mrb[0].mxu0 %v1109
      %v1273 = vpop.f32.mrb[0].mxu0
      %v1274 = vadd.f32 0.0, %v1273
      %v1275 = vpop.f32.mrb[0].mxu0
      %v1276 = vpop.f32.mrb[0].mxu0
      %v1277 = vadd.f32 0.0, %v1276
      %v1278 = vpop.f32.mrb[0].mxu0
      %1279 = vmatprep.mubr.bf16.mxu0 0
      %1280 = vmatmul.mubr.bf16.gmra.mrb[0].mxu0 %v1112
      %v1281 = vpop.f32.mrb[0].mxu0
      %v1282 = vadd.f32 0.0, %v1281
      %v1283 = vpop.f32.mrb[0].mxu0
      %v1284 = vpop.f32.mrb[0].mxu0
      %v1285 = vadd.f32 0.0, %v1284
      %v1286 = vpop.f32.mrb[0].mxu0
      %1287 = vmatprep.mubr.bf16.mxu0 0
      %1288 = vmatmul.mubr.bf16.gmra.mrb[0].mxu0 %v1115
      %v1289 = vpop.f32.mrb[0].mxu0
      %v1290 = vadd.f32 0.0, %v1289
      %v1291 = vpop.f32.mrb[0].mxu0
      %v1292 = vpop.f32.mrb[0].mxu0
      %v1293 = vadd.f32 0.0, %v1292
      %v1294 = vpop.f32.mrb[0].mxu0
      %1295 = vmatprep.mubr.bf16.mxu0 0
      %1296 = vmatmul.mubr.bf16.gmra.mrb[0].mxu0 %v1118
      %v1297 = vpop.f32.mrb[0].mxu0
      %v1298 = vadd.f32 0.0, %v1297
      %v1299 = vpop.f32.mrb[0].mxu0
      %v1300 = vpop.f32.mrb[0].mxu0
      %v1301 = vadd.f32 0.0, %v1300
      %v1302 = vpop.f32.mrb[0].mxu0
      %1303 = vmatprep.mubr.bf16.mxu0 0
      %1304 = vmatmul.mubr.bf16.gmra.mrb[0].mxu0 %v1121
      %v1305 = vpop.f32.mrb[0].mxu0
      %v1306 = vadd.f32 0.0, %v1305
      %v1307 = vpop.f32.mrb[0].mxu0
      %v1308 = vpop.f32.mrb[0].mxu0
      %v1309 = vadd.f32 0.0, %v1308
      %v1310 = vpop.f32.mrb[0].mxu0
      %1311 = vmatprep.mubr.bf16.mxu0 0
      %1312 = vmatmul.mubr.bf16.gmra.mrb[0].mxu0 %v1124
      %v1313 = vpop.f32.mrb[0].mxu0
      %v1314 = vadd.f32 0.0, %v1313
      %v1315 = vpop.f32.mrb[0].mxu0
      %v1316 = vpop.f32.mrb[0].mxu0
      %v1317 = vadd.f32 0.0, %v1316
      %v1318 = vpop.f32.mrb[0].mxu0
      %1319 = vmatprep.mubr.bf16.mxu0 0
      %1320 = vmatmul.mubr.bf16.gmra.mrb[0].mxu0 %v1127
      %v1321 = vpop.f32.mrb[0].mxu0
      %v1322 = vadd.f32 0.0, %v1321
      %v1323 = vpop.f32.mrb[0].mxu0
      %v1324 = vpop.f32.mrb[0].mxu0
      %v1325 = vadd.f32 0.0, %v1324
      %v1326 = vpop.f32.mrb[0].mxu0
      %1327 = vmatprep.mubr.bf16.mxu0 0
      %1328 = vmatmul.mubr.bf16.gmra.mrb[0].mxu0 %v1130
      %v1329 = vpop.f32.mrb[0].mxu0
      %v1330 = vadd.f32 0.0, %v1329
      %v1331 = vpop.f32.mrb[0].mxu0
      %v1332 = vpop.f32.mrb[0].mxu0
      %v1333 = vadd.f32 0.0, %v1332
      %v1334 = vpop.f32.mrb[0].mxu0
      %1335 = vmatprep.mubr.bf16.mxu0 0
      %1336 = vmatmul.mubr.bf16.gmra.mrb[0].mxu0 %v1133
      %v1337 = vpop.f32.mrb[0].mxu0
      %v1338 = vadd.f32 0.0, %v1337
      %v1339 = vpop.f32.mrb[0].mxu0
      %v1340 = vpop.f32.mrb[0].mxu0
      %v1341 = vadd.f32 0.0, %v1340
      %v1342 = vpop.f32.mrb[0].mxu0
      %1343 = vmatprep.mubr.bf16.mxu0 0
      %1344 = vmatmul.mubr.bf16.gmra.mrb[0].mxu0 %v1136
      %v1345 = vpop.f32.mrb[0].mxu0
      %v1346 = vadd.f32 0.0, %v1345
      %v1347 = vpop.f32.mrb[0].mxu0
      %v1348 = vpop.f32.mrb[0].mxu0
      %v1349 = vadd.f32 0.0, %v1348
      %v1350 = vpop.f32.mrb[0].mxu0
      %1351 = vmatprep.mubr.bf16.mxu0 0
      %1352 = vmatmul.mubr.bf16.gmra.mrb[0].mxu0 %v1139
      %v1353 = vpop.f32.mrb[0].mxu0
      %v1354 = vadd.f32 0.0, %v1353
      %v1355 = vpop.f32.mrb[0].mxu0
      %v1356 = vpop.f32.mrb[0].mxu0
      %v1357 = vadd.f32 0.0, %v1356
      %v1358 = vpop.f32.mrb[0].mxu0
      %1359 = vmatprep.mubr.bf16.mxu0 0
      %1360 = vmatmul.mubr.bf16.gmra.mrb[0].mxu0 %v1142
      %v1361 = vpop.f32.mrb[0].mxu0
      %v1362 = vadd.f32 0.0, %v1361
      %v1363 = vpop.f32.mrb[0].mxu0
      %v1364 = vpop.f32.mrb[0].mxu0
      %v1365 = vadd.f32 0.0, %v1364
      %v1366 = vpop.f32.mrb[0].mxu0
      %1367 = vmatprep.mubr.bf16.mxu0 0
      %1368 = vmatmul.mubr.bf16.gmra.mrb[0].mxu0 %v1145
      %v1369 = vpop.f32.mrb[0].mxu0
      %v1370 = vadd.f32 0.0, %v1369
      %v1371 = vpop.f32.mrb[0].mxu0
      %v1372 = vpop.f32.mrb[0].mxu0
      %v1373 = vadd.f32 0.0, %v1372
      %v1374 = vpop.f32.mrb[0].mxu0
      %1375 = vmatprep.mubr.bf16.mxu0 0
      %1376 = vmatmul.mubr.bf16.gmra.mrb[0].mxu0 %v1148
      %v1377 = vpop.f32.mrb[0].mxu0
      %v1378 = vadd.f32 0.0, %v1377
      %v1379 = vpop.f32.mrb[0].mxu0
      %v1380 = vpop.f32.mrb[0].mxu0
      %v1381 = vadd.f32 0.0, %v1380
      %v1382 = vpop.f32.mrb[0].mxu0
      %1383 = vmatprep.mubr.bf16.mxu0 0
      %1384 = vmatmul.mubr.bf16.gmra.mrb[0].mxu0 %v1151
      %v1385 = vpop.f32.mrb[0].mxu0
      %v1386 = vadd.f32 0.0, %v1385
      %v1387 = vpop.f32.mrb[0].mxu0
      %v1388 = vpop.f32.mrb[0].mxu0
      %v1389 = vadd.f32 0.0, %v1388
      %v1390 = vpop.f32.mrb[0].mxu0
      %1391 = vmatprep.mubr.bf16.mxu0 0
      %1392 = vmatmul.mubr.bf16.gmra.mrb[0].mxu0 %v1154
      %v1393 = vpop.f32.mrb[0].mxu0
      %v1394 = vadd.f32 0.0, %v1393
      %v1395 = vpop.f32.mrb[0].mxu0
      %v1396 = vpop.f32.mrb[0].mxu0
      %v1397 = vadd.f32 0.0, %v1396
      %v1398 = vpop.f32.mrb[0].mxu0
      %1399 = vmatprep.mubr.bf16.mxu0 0
      %1400 = vmatmul.mubr.bf16.gmra.mrb[0].mxu0 %v1157
      %v1401 = vpop.f32.mrb[0].mxu0
      %v1402 = vadd.f32 0.0, %v1401
      %v1403 = vpop.f32.mrb[0].mxu0
      %v1404 = vpop.f32.mrb[0].mxu0
      %v1405 = vadd.f32 0.0, %v1404
      %v1406 = vpop.f32.mrb[0].mxu0
      %1407 = vmatprep.mubr.bf16.mxu0 0
      %1408 = vmatmul.mubr.bf16.gmra.mrb[0].mxu0 %v1160
      %v1409 = vpop.f32.mrb[0].mxu0
      %v1410 = vadd.f32 0.0, %v1409
      %v1411 = vpop.f32.mrb[0].mxu0
      %v1412 = vpop.f32.mrb[0].mxu0
      %v1413 = vadd.f32 0.0, %v1412
      %v1414 = vpop.f32.mrb[0].mxu0
      %1415 = vmatprep.mubr.bf16.mxu0 0
      %1416 = vmatmul.mubr.bf16.gmra.mrb[0].mxu0 %v1163
      %v1417 = vpop.f32.mrb[0].mxu0
      %v1418 = vadd.f32 0.0, %v1417
      %v1419 = vpop.f32.mrb[0].mxu0
      %v1420 = vpop.f32.mrb[0].mxu0
      %v1421 = vadd.f32 0.0, %v1420
      %v1422 = vpop.f32.mrb[0].mxu0
      %1423 = vmatprep.mubr.bf16.mxu0 0
      %1424 = vmatmul.mubr.bf16.gmra.mrb[0].mxu0 %v1166
      %v1425 = vpop.f32.mrb[0].mxu0
      %v1426 = vadd.f32 0.0, %v1425
      %v1427 = vpop.f32.mrb[0].mxu0
      %v1428 = vpop.f32.mrb[0].mxu0
      %v1429 = vadd.f32 0.0, %v1428
      %v1430 = vpop.f32.mrb[0].mxu0
      %1431 = vmatprep.mubr.bf16.mxu0 0
      %1432 = vmatmul.mubr.bf16.gmra.mrb[0].mxu0 %v1169
      %v1433 = vpop.f32.mrb[0].mxu0
      %v1434 = vadd.f32 0.0, %v1433
      %v1435 = vpop.f32.mrb[0].mxu0
      %v1436 = vpop.f32.mrb[0].mxu0
      %v1437 = vadd.f32 0.0, %v1436
      %v1438 = vpop.f32.mrb[0].mxu0
      %1439 = vmatprep.mubr.bf16.mxu0 0
      %1440 = vmatmul.mubr.bf16.gmra.mrb[0].mxu0 %v1172
      %v1441 = vpop.f32.mrb[0].mxu0
      %v1442 = vadd.f32 0.0, %v1441
      %v1443 = vpop.f32.mrb[0].mxu0
      %v1444 = vpop.f32.mrb[0].mxu0
      %v1445 = vadd.f32 0.0, %v1444
      %v1446 = vpop.f32.mrb[0].mxu0
      %1447 = vmatprep.mubr.bf16.mxu0 0
      %1448 = vmatmul.mubr.bf16.gmra.mrb[0].mxu0 %v1175
      %v1449 = vpop.f32.mrb[0].mxu0
      %v1450 = vadd.f32 0.0, %v1449
      %v1451 = vpop.f32.mrb[0].mxu0
      %v1452 = vpop.f32.mrb[0].mxu0
      %v1453 = vadd.f32 0.0, %v1452
      %v1454 = vpop.f32.mrb[0].mxu0
      %1455 = vmatprep.mubr.bf16.mxu0 0
      %1456 = vmatmul.mubr.bf16.gmra.mrb[0].mxu0 %v1178
      %v1457 = vpop.f32.mrb[0].mxu0
      %v1458 = vadd.f32 0.0, %v1457
      %v1459 = vpop.f32.mrb[0].mxu0
      %v1460 = vpop.f32.mrb[0].mxu0
      %v1461 = vadd.f32 0.0, %v1460
      %v1462 = vpop.f32.mrb[0].mxu0
      %1463 = vmatprep.mubr.bf16.mxu0 0
      %1464 = vmatmul.mubr.bf16.gmra.mrb[0].mxu0 %v1181
      %v1465 = vpop.f32.mrb[0].mxu0
      %v1466 = vadd.f32 0.0, %v1465
      %v1467 = vpop.f32.mrb[0].mxu0
      %v1468 = vpop.f32.mrb[0].mxu0
      %v1469 = vadd.f32 0.0, %v1468
      %v1470 = vpop.f32.mrb[0].mxu0
      %1471 = vdwg.mxu0
      %v1472 = vsub.f32 %v1218, 1.0
      %v1473 = vsub.f32 %v1221, 1.0
      %v1474 = vsub.f32 %v1226, 1.0
      %v1475 = vsub.f32 %v1229, 1.0
      %v1476 = vsub.f32 %v1234, 1.0
      %v1477 = vsub.f32 %v1237, 1.0
      %v1478 = vsub.f32 %v1242, 1.0
      %v1479 = vsub.f32 %v1245, 1.0
      %v1480 = vsub.f32 %v1250, 1.0
      %v1481 = vsub.f32 %v1253, 1.0
      %v1482 = vsub.f32 %v1258, 1.0
      %v1483 = vsub.f32 %v1261, 1.0
      %v1484 = vsub.f32 %v1266, 1.0
      %v1485 = vsub.f32 %v1269, 1.0
      %v1486 = vsub.f32 %v1274, 1.0
      %v1487 = vsub.f32 %v1277, 1.0
      %v1488 = vsub.f32 %v1282, 1.0
      %v1489 = vsub.f32 %v1285, 1.0
      %v1490 = vsub.f32 %v1290, 1.0
      %v1491 = vsub.f32 %v1293, 1.0
      %v1492 = vsub.f32 %v1298, 1.0
      %v1493 = vsub.f32 %v1301, 1.0
      %v1494 = vsub.f32 %v1306, 1.0
      %v1495 = vsub.f32 %v1309, 1.0
      %v1496 = vsub.f32 %v1314, 1.0
      %v1497 = vsub.f32 %v1317, 1.0
      %v1498 = vsub.f32 %v1322, 1.0
      %v1499 = vsub.f32 %v1325, 1.0
      %v1500 = vsub.f32 %v1330, 1.0
      %v1501 = vsub.f32 %v1333, 1.0
      %v1502 = vsub.f32 %v1338, 1.0
      %v1503 = vsub.f32 %v1341, 1.0
      %v1504 = vsub.f32 %v1346, 1.0
      %v1505 = vsub.f32 %v1349, 1.0
      %v1506 = vsub.f32 %v1354, 1.0
      %v1507 = vsub.f32 %v1357, 1.0
      %v1508 = vsub.f32 %v1362, 1.0
      %v1509 = vsub.f32 %v1365, 1.0
      %v1510 = vsub.f32 %v1370, 1.0
      %v1511 = vsub.f32 %v1373, 1.0
      %v1512 = vsub.f32 %v1378, 1.0
      %v1513 = vsub.f32 %v1381, 1.0
      %v1514 = vsub.f32 %v1386, 1.0
      %v1515 = vsub.f32 %v1389, 1.0
      %v1516 = vsub.f32 %v1394, 1.0
      %v1517 = vsub.f32 %v1397, 1.0
      %v1518 = vsub.f32 %v1402, 1.0
      %v1519 = vsub.f32 %v1405, 1.0
      %v1520 = vsub.f32 %v1410, 1.0
      %v1521 = vsub.f32 %v1413, 1.0
      %v1522 = vsub.f32 %v1418, 1.0
      %v1523 = vsub.f32 %v1421, 1.0
      %v1524 = vsub.f32 %v1426, 1.0
      %v1525 = vsub.f32 %v1429, 1.0
      %v1526 = vsub.f32 %v1434, 1.0
      %v1527 = vsub.f32 %v1437, 1.0
      %v1528 = vsub.f32 %v1442, 1.0
      %v1529 = vsub.f32 %v1445, 1.0
      %v1530 = vsub.f32 %v1450, 1.0
      %v1531 = vsub.f32 %v1453, 1.0
      %v1532 = vsub.f32 %v1458, 1.0
      %v1533 = vsub.f32 %v1461, 1.0
      %v1534 = vsub.f32 %v1466, 1.0
      %v1535 = vsub.f32 %v1469, 1.0
      %v1536 = vmul.f32 %v1472, 1.442695
      %v1537 = vpow.pop %v1536
      %v1538 = vmul.f32 %v1473, 1.442695
      %v1539 = vpow.pop %v1538
      %v1540 = vmul.f32 %v1474, 1.442695
      %v1541 = vpow.pop %v1540
      %v1542 = vmul.f32 %v1475, 1.442695
      %v1543 = vpow.pop %v1542
      %v1544 = vmul.f32 %v1476, 1.442695
      %v1545 = vpow.pop %v1544
      %v1546 = vmul.f32 %v1477, 1.442695
      %v1547 = vpow.pop %v1546
      %v1548 = vmul.f32 %v1478, 1.442695
      %v1549 = vpow.pop %v1548
      %v1550 = vmul.f32 %v1479, 1.442695
      %v1551 = vpow.pop %v1550
      %v1552 = vmul.f32 %v1480, 1.442695
      %v1553 = vpow.pop %v1552
      %v1554 = vmul.f32 %v1481, 1.442695
      %v1555 = vpow.pop %v1554
      %v1556 = vmul.f32 %v1482, 1.442695
      %v1557 = vpow.pop %v1556
      %v1558 = vmul.f32 %v1483, 1.442695
      %v1559 = vpow.pop %v1558
      %v1560 = vmul.f32 %v1484, 1.442695
      %v1561 = vpow.pop %v1560
      %v1562 = vmul.f32 %v1485, 1.442695
      %v1563 = vpow.pop %v1562
      %v1564 = vmul.f32 %v1486, 1.442695
      %v1565 = vpow.pop %v1564
      %v1566 = vmul.f32 %v1487, 1.442695
      %v1567 = vpow.pop %v1566
      %v1568 = vmul.f32 %v1488, 1.442695
      %v1569 = vpow.pop %v1568
      %v1570 = vmul.f32 %v1489, 1.442695
      %v1571 = vpow.pop %v1570
      %v1572 = vmul.f32 %v1490, 1.442695
      %v1573 = vpow.pop %v1572
      %v1574 = vmul.f32 %v1491, 1.442695
      %v1575 = vpow.pop %v1574
      %v1576 = vmul.f32 %v1492, 1.442695
      %v1577 = vpow.pop %v1576
      %v1578 = vmul.f32 %v1493, 1.442695
      %v1579 = vpow.pop %v1578
      %v1580 = vmul.f32 %v1494, 1.442695
      %v1581 = vpow.pop %v1580
      %v1582 = vmul.f32 %v1495, 1.442695
      %v1583 = vpow.pop %v1582
      %v1584 = vmul.f32 %v1496, 1.442695
      %v1585 = vpow.pop %v1584
      %v1586 = vmul.f32 %v1497, 1.442695
      %v1587 = vpow.pop %v1586
      %v1588 = vmul.f32 %v1498, 1.442695
      %v1589 = vpow.pop %v1588
      %v1590 = vmul.f32 %v1499, 1.442695
      %v1591 = vpow.pop %v1590
      %v1592 = vmul.f32 %v1500, 1.442695
      %v1593 = vpow.pop %v1592
      %v1594 = vmul.f32 %v1501, 1.442695
      %v1595 = vpow.pop %v1594
      %v1596 = vmul.f32 %v1502, 1.442695
      %v1597 = vpow.pop %v1596
      %v1598 = vmul.f32 %v1503, 1.442695
      %v1599 = vpow.pop %v1598
      %v1600 = vmul.f32 %v1504, 1.442695
      %v1601 = vpow.pop %v1600
      %v1602 = vmul.f32 %v1505, 1.442695
      %v1603 = vpow.pop %v1602
      %v1604 = vmul.f32 %v1506, 1.442695
      %v1605 = vpow.pop %v1604
      %v1606 = vmul.f32 %v1507, 1.442695
      %v1607 = vpow.pop %v1606
      %v1608 = vmul.f32 %v1508, 1.442695
      %v1609 = vpow.pop %v1608
      %v1610 = vmul.f32 %v1509, 1.442695
      %v1611 = vpow.pop %v1610
      %v1612 = vmul.f32 %v1510, 1.442695
      %v1613 = vpow.pop %v1612
      %v1614 = vmul.f32 %v1511, 1.442695
      %v1615 = vpow.pop %v1614
      %v1616 = vmul.f32 %v1512, 1.442695
      %v1617 = vpow.pop %v1616
      %v1618 = vmul.f32 %v1513, 1.442695
      %v1619 = vpow.pop %v1618
      %v1620 = vmul.f32 %v1514, 1.442695
      %v1621 = vpow.pop %v1620
      %v1622 = vmul.f32 %v1515, 1.442695
      %v1623 = vpow.pop %v1622
      %v1624 = vmul.f32 %v1516, 1.442695
      %v1625 = vpow.pop %v1624
      %v1626 = vmul.f32 %v1517, 1.442695
      %v1627 = vpow.pop %v1626
      %v1628 = vmul.f32 %v1518, 1.442695
      %v1629 = vpow.pop %v1628
      %v1630 = vmul.f32 %v1519, 1.442695
      %v1631 = vpow.pop %v1630
      %v1632 = vmul.f32 %v1520, 1.442695
      %v1633 = vpow.pop %v1632
      %v1634 = vmul.f32 %v1521, 1.442695
      %v1635 = vpow.pop %v1634
      %v1636 = vmul.f32 %v1522, 1.442695
      %v1637 = vpow.pop %v1636
      %v1638 = vmul.f32 %v1523, 1.442695
      %v1639 = vpow.pop %v1638
      %v1640 = vmul.f32 %v1524, 1.442695
      %v1641 = vpow.pop %v1640
      %v1642 = vmul.f32 %v1525, 1.442695
      %v1643 = vpow.pop %v1642
      %v1644 = vmul.f32 %v1526, 1.442695
      %v1645 = vpow.pop %v1644
      %v1646 = vmul.f32 %v1527, 1.442695
      %v1647 = vpow.pop %v1646
      %v1648 = vmul.f32 %v1528, 1.442695
      %v1649 = vpow.pop %v1648
      %v1650 = vmul.f32 %v1529, 1.442695
      %v1651 = vpow.pop %v1650
      %v1652 = vmul.f32 %v1530, 1.442695
      %v1653 = vpow.pop %v1652
      %v1654 = vmul.f32 %v1531, 1.442695
      %v1655 = vpow.pop %v1654
      %v1656 = vmul.f32 %v1532, 1.442695
      %v1657 = vpow.pop %v1656
      %v1658 = vmul.f32 %v1533, 1.442695
      %v1659 = vpow.pop %v1658
      %v1660 = vmul.f32 %v1534, 1.442695
      %v1661 = vpow.pop %v1660
      %v1662 = vmul.f32 %v1535, 1.442695
      %v1663 = vpow.pop %v1662
      %v1664 = vld [vmem:[%s323] sm:$0xf]
      %v1665 = vld [vmem:[%s323 + $0x4] sm:$0xf]
      %v1666 = vld [vmem:[%s323 + $0x8] sm:$0xf]
      %v1667 = vld [vmem:[%s323 + $0xc] sm:$0xf]
      %v1668 = vld [vmem:[%s323 + $0x10] sm:$0xf]
      %v1669 = vld [vmem:[%s323 + $0x14] sm:$0xf]
      %v1670 = vld [vmem:[%s323 + $0x18] sm:$0xf]
      %v1671 = vld [vmem:[%s323 + $0x1c] sm:$0xf]
      %v1672 = vld [vmem:[%s323 + $0x20] sm:$0xf]
      %v1673 = vld [vmem:[%s323 + $0x24] sm:$0xf]
      %v1674 = vld [vmem:[%s323 + $0x28] sm:$0xf]
      %v1675 = vld [vmem:[%s323 + $0x2c] sm:$0xf]
      %v1676 = vld [vmem:[%s323 + $0x30] sm:$0xf]
      %v1677 = vld [vmem:[%s323 + $0x34] sm:$0xf]
      %v1678 = vld [vmem:[%s323 + $0x38] sm:$0xf]
      %v1679 = vld [vmem:[%s323 + $0x3c] sm:$0xf]
      %v1680 = vld [vmem:[%s323 + $0x40] sm:$0xf]
      %v1681 = vld [vmem:[%s323 + $0x44] sm:$0xf]
      %v1682 = vld [vmem:[%s323 + $0x48] sm:$0xf]
      %v1683 = vld [vmem:[%s323 + $0x4c] sm:$0xf]
      %v1684 = vld [vmem:[%s323 + $0x50] sm:$0xf]
      %v1685 = vld [vmem:[%s323 + $0x54] sm:$0xf]
      %v1686 = vld [vmem:[%s323 + $0x58] sm:$0xf]
      %v1687 = vld [vmem:[%s323 + $0x5c] sm:$0xf]
      %v1688 = vld [vmem:[%s323 + $0x60] sm:$0xf]
      %v1689 = vld [vmem:[%s323 + $0x64] sm:$0xf]
      %v1690 = vld [vmem:[%s323 + $0x68] sm:$0xf]
      %v1691 = vld [vmem:[%s323 + $0x6c] sm:$0xf]
      %v1692 = vld [vmem:[%s323 + $0x70] sm:$0xf]
      %v1693 = vld [vmem:[%s323 + $0x74] sm:$0xf]
      %v1694 = vld [vmem:[%s323 + $0x78] sm:$0xf]
      %v1695 = vld [vmem:[%s323 + $0x7c] sm:$0xf]
      %v1696 = vld [vmem:[%s323 + $0x80] sm:$0xf]
      %v1697 = vld [vmem:[%s323 + $0x84] sm:$0xf]
      %v1698 = vld [vmem:[%s323 + $0x88] sm:$0xf]
      %v1699 = vld [vmem:[%s323 + $0x8c] sm:$0xf]
      %v1700 = vld [vmem:[%s323 + $0x90] sm:$0xf]
      %v1701 = vld [vmem:[%s323 + $0x94] sm:$0xf]
      %v1702 = vld [vmem:[%s323 + $0x98] sm:$0xf]
      %v1703 = vld [vmem:[%s323 + $0x9c] sm:$0xf]
      %v1704 = vld [vmem:[%s323 + $0xa0] sm:$0xf]
      %v1705 = vld [vmem:[%s323 + $0xa4] sm:$0xf]
      %v1706 = vld [vmem:[%s323 + $0xa8] sm:$0xf]
      %v1707 = vld [vmem:[%s323 + $0xac] sm:$0xf]
      %v1708 = vld [vmem:[%s323 + $0xb0] sm:$0xf]
      %v1709 = vld [vmem:[%s323 + $0xb4] sm:$0xf]
      %v1710 = vld [vmem:[%s323 + $0xb8] sm:$0xf]
      %v1711 = vld [vmem:[%s323 + $0xbc] sm:$0xf]
      %v1712 = vld [vmem:[%s323 + $0xc0] sm:$0xf]
      %v1713 = vld [vmem:[%s323 + $0xc4] sm:$0xf]
      %v1714 = vld [vmem:[%s323 + $0xc8] sm:$0xf]
      %v1715 = vld [vmem:[%s323 + $0xcc] sm:$0xf]
      %v1716 = vld [vmem:[%s323 + $0xd0] sm:$0xf]
      %v1717 = vld [vmem:[%s323 + $0xd4] sm:$0xf]
      %v1718 = vld [vmem:[%s323 + $0xd8] sm:$0xf]
      %v1719 = vld [vmem:[%s323 + $0xdc] sm:$0xf]
      %v1720 = vld [vmem:[%s323 + $0xe0] sm:$0xf]
      %v1721 = vld [vmem:[%s323 + $0xe4] sm:$0xf]
      %v1722 = vld [vmem:[%s323 + $0xe8] sm:$0xf]
      %v1723 = vld [vmem:[%s323 + $0xec] sm:$0xf]
      %v1724 = vld [vmem:[%s323 + $0xf0] sm:$0xf]
      %v1725 = vld [vmem:[%s323 + $0xf4] sm:$0xf]
      %v1726 = vld [vmem:[%s323 + $0xf8] sm:$0xf]
      %v1727 = vld [vmem:[%s323 + $0xfc] sm:$0xf]
      %v1728 = vld [vmem:[%s4] sm:$0xf]
      %v1729 = vld [vmem:[%s4 + $0x4] sm:$0xf]
      %v1730 = vpack.c.bf16 %v1221, %v1218
      %v1731 = vpack.c.bf16 %v1229, %v1226
      %v1732 = vpack.c.bf16 %v1237, %v1234
      %v1733 = vpack.c.bf16 %v1245, %v1242
      %v1734 = vpack.c.bf16 %v1253, %v1250
      %v1735 = vpack.c.bf16 %v1261, %v1258
      %v1736 = vpack.c.bf16 %v1269, %v1266
      %v1737 = vpack.c.bf16 %v1277, %v1274
      %v1738 = vpack.c.bf16 %v1285, %v1282
      %v1739 = vpack.c.bf16 %v1293, %v1290
      %v1740 = vpack.c.bf16 %v1301, %v1298
      %v1741 = vpack.c.bf16 %v1309, %v1306
      %v1742 = vpack.c.bf16 %v1317, %v1314
      %v1743 = vpack.c.bf16 %v1325, %v1322
      %v1744 = vpack.c.bf16 %v1333, %v1330
      %v1745 = vpack.c.bf16 %v1341, %v1338
      %v1746 = vpack.c.bf16 %v1349, %v1346
      %v1747 = vpack.c.bf16 %v1357, %v1354
      %v1748 = vpack.c.bf16 %v1365, %v1362
      %v1749 = vpack.c.bf16 %v1373, %v1370
      %v1750 = vpack.c.bf16 %v1381, %v1378
      %v1751 = vpack.c.bf16 %v1389, %v1386
      %v1752 = vpack.c.bf16 %v1397, %v1394
      %v1753 = vpack.c.bf16 %v1405, %v1402
      %v1754 = vpack.c.bf16 %v1413, %v1410
      %v1755 = vpack.c.bf16 %v1421, %v1418
      %v1756 = vpack.c.bf16 %v1429, %v1426
      %v1757 = vpack.c.bf16 %v1437, %v1434
      %v1758 = vpack.c.bf16 %v1445, %v1442
      %v1759 = vpack.c.bf16 %v1453, %v1450
      %v1760 = vpack.c.bf16 %v1461, %v1458
      %v1761 = vpack.c.bf16 %v1469, %v1466
      %v1762 = vld [vmem:[%s5] sm:$0xf]
      %v1763 = vld [vmem:[%s5 + $0x4] sm:$0xf]
      %v1766 = vunpack.c.l.b16 %v1762
      %v1767 = vunpack.c.l.b16 %v1763
      %v1768 = vpack.c.b16 %v1767, %v1766
      %vm1770 = vcmask 130048
      %v1772 = vsel %vm1770, %v1730, 0
      %v1775 = vsel %vm1770, %v1731, 0
      %v1778 = vsel %vm1770, %v1732, 0
      %v1781 = vsel %vm1770, %v1733, 0
      %v1784 = vsel %vm1770, %v1734, 0
      %v1787 = vsel %vm1770, %v1735, 0
      %v1790 = vsel %vm1770, %v1736, 0
      %v1793 = vsel %vm1770, %v1737, 0
      %v1796 = vsel %vm1770, %v1738, 0
      %v1799 = vsel %vm1770, %v1739, 0
      %v1802 = vsel %vm1770, %v1740, 0
      %v1805 = vsel %vm1770, %v1741, 0
      %v1808 = vsel %vm1770, %v1742, 0
      %v1811 = vsel %vm1770, %v1743, 0
      %v1814 = vsel %vm1770, %v1744, 0
      %v1817 = vsel %vm1770, %v1745, 0
      %v1820 = vsel %vm1770, %v1746, 0
      %v1823 = vsel %vm1770, %v1747, 0
      %v1826 = vsel %vm1770, %v1748, 0
      %v1829 = vsel %vm1770, %v1749, 0
      %v1832 = vsel %vm1770, %v1750, 0
      %v1835 = vsel %vm1770, %v1751, 0
      %v1838 = vsel %vm1770, %v1752, 0
      %v1841 = vsel %vm1770, %v1753, 0
      %v1844 = vsel %vm1770, %v1754, 0
      %v1847 = vsel %vm1770, %v1755, 0
      %v1850 = vsel %vm1770, %v1756, 0
      %v1853 = vsel %vm1770, %v1757, 0
      %v1856 = vsel %vm1770, %v1758, 0
      %v1859 = vsel %vm1770, %v1759, 0
      %v1862 = vsel %vm1770, %v1760, 0
      %v1865 = vsel %vm1770, %v1761, 0
      %1867 = vmatprep.subr.bf16.mxu0 0
      %1868 = vmatpush1.bf16.msra.mxu0 %v1768
      %1869 = vmatprep.subr.bf16.mxu0 0
      %1870 = vmatpush1.bf16.msra.mxu0 0
      %1871 = vmatprep.subr.bf16.mxu0 0
      %1872 = vmatpush1.bf16.msra.mxu0 0
      %1873 = vmatprep.subr.bf16.mxu0 0
      %1874 = vmatpush1.bf16.msra.mxu0 0
      %1875 = vmatprep.subr.bf16.mxu0 0
      %1876 = vmatpush1.bf16.msra.mxu0 0
      %1877 = vmatprep.subr.bf16.mxu0 0
      %1878 = vmatpush1.bf16.msra.mxu0 0
      %1879 = vmatprep.subr.bf16.mxu0 0
      %1880 = vmatpush1.bf16.msra.mxu0 0
      %1881 = vmatprep.subr.bf16.mxu0 0
      %1882 = vmatpush1.bf16.msra.mxu0 0
      %1883 = vmatprep.subr.bf16.mxu0 0
      %1884 = vmatpush1.bf16.msra.mxu0 0
      %1885 = vmatprep.subr.bf16.mxu0 0
      %1886 = vmatpush1.bf16.msra.mxu0 0
      %1887 = vmatprep.subr.bf16.mxu0 0
      %1888 = vmatpush1.bf16.msra.mxu0 0
      %1889 = vmatprep.subr.bf16.mxu0 0
      %1890 = vmatpush1.bf16.msra.mxu0 0
      %1891 = vmatprep.subr.bf16.mxu0 0
      %1892 = vmatpush1.bf16.msra.mxu0 0
      %1893 = vmatprep.subr.bf16.mxu0 0
      %1894 = vmatpush1.bf16.msra.mxu0 0
      %1895 = vmatprep.subr.bf16.mxu0 0
      %1896 = vmatpush1.bf16.msra.mxu0 0
      %1897 = vmatprep.subr.bf16.mxu0 0
      %1898 = vmatpush1.bf16.msra.mxu0 0
      %1899 = vmatprep.mubr.bf16.mxu0 0
      %1900 = vmatmul.mubr.bf16.gmra.mrb[0].mxu0 %v1772
      %v1901 = vpop.f32.mrb[0].mxu0
      %v1902 = vadd.f32 0.0, %v1901
      %v1903 = vpop.f32.mrb[0].mxu0
      %v1904 = vpop.f32.mrb[0].mxu0
      %v1905 = vadd.f32 0.0, %v1904
      %v1906 = vpop.f32.mrb[0].mxu0
      %1907 = vmatprep.mubr.bf16.mxu0 0
      %1908 = vmatmul.mubr.bf16.gmra.mrb[0].mxu0 %v1775
      %v1909 = vpop.f32.mrb[0].mxu0
      %v1910 = vadd.f32 0.0, %v1909
      %v1911 = vpop.f32.mrb[0].mxu0
      %v1912 = vpop.f32.mrb[0].mxu0
      %v1913 = vadd.f32 0.0, %v1912
      %v1914 = vpop.f32.mrb[0].mxu0
      %1915 = vmatprep.mubr.bf16.mxu0 0
      %1916 = vmatmul.mubr.bf16.gmra.mrb[0].mxu0 %v1778
      %v1917 = vpop.f32.mrb[0].mxu0
      %v1918 = vadd.f32 0.0, %v1917
      %v1919 = vpop.f32.mrb[0].mxu0
      %v1920 = vpop.f32.mrb[0].mxu0
      %v1921 = vadd.f32 0.0, %v1920
      %v1922 = vpop.f32.mrb[0].mxu0
      %1923 = vmatprep.mubr.bf16.mxu0 0
      %1924 = vmatmul.mubr.bf16.gmra.mrb[0].mxu0 %v1781
      %v1925 = vpop.f32.mrb[0].mxu0
      %v1926 = vadd.f32 0.0, %v1925
      %v1927 = vpop.f32.mrb[0].mxu0
      %v1928 = vpop.f32.mrb[0].mxu0
      %v1929 = vadd.f32 0.0, %v1928
      %v1930 = vpop.f32.mrb[0].mxu0
      %1931 = vmatprep.mubr.bf16.mxu0 0
      %1932 = vmatmul.mubr.bf16.gmra.mrb[0].mxu0 %v1784
      %v1933 = vpop.f32.mrb[0].mxu0
      %v1934 = vadd.f32 0.0, %v1933
      %v1935 = vpop.f32.mrb[0].mxu0
      %v1936 = vpop.f32.mrb[0].mxu0
      %v1937 = vadd.f32 0.0, %v1936
      %v1938 = vpop.f32.mrb[0].mxu0
      %1939 = vmatprep.mubr.bf16.mxu0 0
      %1940 = vmatmul.mubr.bf16.gmra.mrb[0].mxu0 %v1787
      %v1941 = vpop.f32.mrb[0].mxu0
      %v1942 = vadd.f32 0.0, %v1941
      %v1943 = vpop.f32.mrb[0].mxu0
      %v1944 = vpop.f32.mrb[0].mxu0
      %v1945 = vadd.f32 0.0, %v1944
      %v1946 = vpop.f32.mrb[0].mxu0
      %1947 = vmatprep.mubr.bf16.mxu0 0
      %1948 = vmatmul.mubr.bf16.gmra.mrb[0].mxu0 %v1790
      %v1949 = vpop.f32.mrb[0].mxu0
      %v1950 = vadd.f32 0.0, %v1949
      %v1951 = vpop.f32.mrb[0].mxu0
      %v1952 = vpop.f32.mrb[0].mxu0
      %v1953 = vadd.f32 0.0, %v1952
      %v1954 = vpop.f32.mrb[0].mxu0
      %1955 = vmatprep.mubr.bf16.mxu0 0
      %1956 = vmatmul.mubr.bf16.gmra.mrb[0].mxu0 %v1793
      %v1957 = vpop.f32.mrb[0].mxu0
      %v1958 = vadd.f32 0.0, %v1957
      %v1959 = vpop.f32.mrb[0].mxu0
      %v1960 = vpop.f32.mrb[0].mxu0
      %v1961 = vadd.f32 0.0, %v1960
      %v1962 = vpop.f32.mrb[0].mxu0
      %1963 = vmatprep.mubr.bf16.mxu0 0
      %1964 = vmatmul.mubr.bf16.gmra.mrb[0].mxu0 %v1796
      %v1965 = vpop.f32.mrb[0].mxu0
      %v1966 = vadd.f32 0.0, %v1965
      %v1967 = vpop.f32.mrb[0].mxu0
      %v1968 = vpop.f32.mrb[0].mxu0
      %v1969 = vadd.f32 0.0, %v1968
      %v1970 = vpop.f32.mrb[0].mxu0
      %1971 = vmatprep.mubr.bf16.mxu0 0
      %1972 = vmatmul.mubr.bf16.gmra.mrb[0].mxu0 %v1799
      %v1973 = vpop.f32.mrb[0].mxu0
      %v1974 = vadd.f32 0.0, %v1973
      %v1975 = vpop.f32.mrb[0].mxu0
      %v1976 = vpop.f32.mrb[0].mxu0
      %v1977 = vadd.f32 0.0, %v1976
      %v1978 = vpop.f32.mrb[0].mxu0
      %1979 = vmatprep.mubr.bf16.mxu0 0
      %1980 = vmatmul.mubr.bf16.gmra.mrb[0].mxu0 %v1802
      %v1981 = vpop.f32.mrb[0].mxu0
      %v1982 = vadd.f32 0.0, %v1981
      %v1983 = vpop.f32.mrb[0].mxu0
      %v1984 = vpop.f32.mrb[0].mxu0
      %v1985 = vadd.f32 0.0, %v1984
      %v1986 = vpop.f32.mrb[0].mxu0
      %1987 = vmatprep.mubr.bf16.mxu0 0
      %1988 = vmatmul.mubr.bf16.gmra.mrb[0].mxu0 %v1805
      %v1989 = vpop.f32.mrb[0].mxu0
      %v1990 = vadd.f32 0.0, %v1989
      %v1991 = vpop.f32.mrb[0].mxu0
      %v1992 = vpop.f32.mrb[0].mxu0
      %v1993 = vadd.f32 0.0, %v1992
      %v1994 = vpop.f32.mrb[0].mxu0
      %1995 = vmatprep.mubr.bf16.mxu0 0
      %1996 = vmatmul.mubr.bf16.gmra.mrb[0].mxu0 %v1808
      %v1997 = vpop.f32.mrb[0].mxu0
      %v1998 = vadd.f32 0.0, %v1997
      %v1999 = vpop.f32.mrb[0].mxu0
      %v2000 = vpop.f32.mrb[0].mxu0
      %v2001 = vadd.f32 0.0, %v2000
      %v2002 = vpop.f32.mrb[0].mxu0
      %2003 = vmatprep.mubr.bf16.mxu0 0
      %2004 = vmatmul.mubr.bf16.gmra.mrb[0].mxu0 %v1811
      %v2005 = vpop.f32.mrb[0].mxu0
      %v2006 = vadd.f32 0.0, %v2005
      %v2007 = vpop.f32.mrb[0].mxu0
      %v2008 = vpop.f32.mrb[0].mxu0
      %v2009 = vadd.f32 0.0, %v2008
      %v2010 = vpop.f32.mrb[0].mxu0
      %2011 = vmatprep.mubr.bf16.mxu0 0
      %2012 = vmatmul.mubr.bf16.gmra.mrb[0].mxu0 %v1814
      %v2013 = vpop.f32.mrb[0].mxu0
      %v2014 = vadd.f32 0.0, %v2013
      %v2015 = vpop.f32.mrb[0].mxu0
      %v2016 = vpop.f32.mrb[0].mxu0
      %v2017 = vadd.f32 0.0, %v2016
      %v2018 = vpop.f32.mrb[0].mxu0
      %2019 = vmatprep.mubr.bf16.mxu0 0
      %2020 = vmatmul.mubr.bf16.gmra.mrb[0].mxu0 %v1817
      %v2021 = vpop.f32.mrb[0].mxu0
      %v2022 = vadd.f32 0.0, %v2021
      %v2023 = vpop.f32.mrb[0].mxu0
      %v2024 = vpop.f32.mrb[0].mxu0
      %v2025 = vadd.f32 0.0, %v2024
      %v2026 = vpop.f32.mrb[0].mxu0
      %2027 = vmatprep.mubr.bf16.mxu0 0
      %2028 = vmatmul.mubr.bf16.gmra.mrb[0].mxu0 %v1820
      %v2029 = vpop.f32.mrb[0].mxu0
      %v2030 = vadd.f32 0.0, %v2029
      %v2031 = vpop.f32.mrb[0].mxu0
      %v2032 = vpop.f32.mrb[0].mxu0
      %v2033 = vadd.f32 0.0, %v2032
      %v2034 = vpop.f32.mrb[0].mxu0
      %2035 = vmatprep.mubr.bf16.mxu0 0
      %2036 = vmatmul.mubr.bf16.gmra.mrb[0].mxu0 %v1823
      %v2037 = vpop.f32.mrb[0].mxu0
      %v2038 = vadd.f32 0.0, %v2037
      %v2039 = vpop.f32.mrb[0].mxu0
      %v2040 = vpop.f32.mrb[0].mxu0
      %v2041 = vadd.f32 0.0, %v2040
      %v2042 = vpop.f32.mrb[0].mxu0
      %2043 = vmatprep.mubr.bf16.mxu0 0
      %2044 = vmatmul.mubr.bf16.gmra.mrb[0].mxu0 %v1826
      %v2045 = vpop.f32.mrb[0].mxu0
      %v2046 = vadd.f32 0.0, %v2045
      %v2047 = vpop.f32.mrb[0].mxu0
      %v2048 = vpop.f32.mrb[0].mxu0
      %v2049 = vadd.f32 0.0, %v2048
      %v2050 = vpop.f32.mrb[0].mxu0
      %2051 = vmatprep.mubr.bf16.mxu0 0
      %2052 = vmatmul.mubr.bf16.gmra.mrb[0].mxu0 %v1829
      %v2053 = vpop.f32.mrb[0].mxu0
      %v2054 = vadd.f32 0.0, %v2053
      %v2055 = vpop.f32.mrb[0].mxu0
      %v2056 = vpop.f32.mrb[0].mxu0
      %v2057 = vadd.f32 0.0, %v2056
      %v2058 = vpop.f32.mrb[0].mxu0
      %2059 = vmatprep.mubr.bf16.mxu0 0
      %2060 = vmatmul.mubr.bf16.gmra.mrb[0].mxu0 %v1832
      %v2061 = vpop.f32.mrb[0].mxu0
      %v2062 = vadd.f32 0.0, %v2061
      %v2063 = vpop.f32.mrb[0].mxu0
      %v2064 = vpop.f32.mrb[0].mxu0
      %v2065 = vadd.f32 0.0, %v2064
      %v2066 = vpop.f32.mrb[0].mxu0
      %2067 = vmatprep.mubr.bf16.mxu0 0
      %2068 = vmatmul.mubr.bf16.gmra.mrb[0].mxu0 %v1835
      %v2069 = vpop.f32.mrb[0].mxu0
      %v2070 = vadd.f32 0.0, %v2069
      %v2071 = vpop.f32.mrb[0].mxu0
      %v2072 = vpop.f32.mrb[0].mxu0
      %v2073 = vadd.f32 0.0, %v2072
      %v2074 = vpop.f32.mrb[0].mxu0
      %2075 = vmatprep.mubr.bf16.mxu0 0
      %2076 = vmatmul.mubr.bf16.gmra.mrb[0].mxu0 %v1838
      %v2077 = vpop.f32.mrb[0].mxu0
      %v2078 = vadd.f32 0.0, %v2077
      %v2079 = vpop.f32.mrb[0].mxu0
      %v2080 = vpop.f32.mrb[0].mxu0
      %v2081 = vadd.f32 0.0, %v2080
      %v2082 = vpop.f32.mrb[0].mxu0
      %2083 = vmatprep.mubr.bf16.mxu0 0
      %2084 = vmatmul.mubr.bf16.gmra.mrb[0].mxu0 %v1841
      %v2085 = vpop.f32.mrb[0].mxu0
      %v2086 = vadd.f32 0.0, %v2085
      %v2087 = vpop.f32.mrb[0].mxu0
      %v2088 = vpop.f32.mrb[0].mxu0
      %v2089 = vadd.f32 0.0, %v2088
      %v2090 = vpop.f32.mrb[0].mxu0
      %2091 = vmatprep.mubr.bf16.mxu0 0
      %2092 = vmatmul.mubr.bf16.gmra.mrb[0].mxu0 %v1844
      %v2093 = vpop.f32.mrb[0].mxu0
      %v2094 = vadd.f32 0.0, %v2093
      %v2095 = vpop.f32.mrb[0].mxu0
      %v2096 = vpop.f32.mrb[0].mxu0
      %v2097 = vadd.f32 0.0, %v2096
      %v2098 = vpop.f32.mrb[0].mxu0
      %2099 = vmatprep.mubr.bf16.mxu0 0
      %2100 = vmatmul.mubr.bf16.gmra.mrb[0].mxu0 %v1847
      %v2101 = vpop.f32.mrb[0].mxu0
      %v2102 = vadd.f32 0.0, %v2101
      %v2103 = vpop.f32.mrb[0].mxu0
      %v2104 = vpop.f32.mrb[0].mxu0
      %v2105 = vadd.f32 0.0, %v2104
      %v2106 = vpop.f32.mrb[0].mxu0
      %2107 = vmatprep.mubr.bf16.mxu0 0
      %2108 = vmatmul.mubr.bf16.gmra.mrb[0].mxu0 %v1850
      %v2109 = vpop.f32.mrb[0].mxu0
      %v2110 = vadd.f32 0.0, %v2109
      %v2111 = vpop.f32.mrb[0].mxu0
      %v2112 = vpop.f32.mrb[0].mxu0
      %v2113 = vadd.f32 0.0, %v2112
      %v2114 = vpop.f32.mrb[0].mxu0
      %2115 = vmatprep.mubr.bf16.mxu0 0
      %2116 = vmatmul.mubr.bf16.gmra.mrb[0].mxu0 %v1853
      %v2117 = vpop.f32.mrb[0].mxu0
      %v2118 = vadd.f32 0.0, %v2117
      %v2119 = vpop.f32.mrb[0].mxu0
      %v2120 = vpop.f32.mrb[0].mxu0
      %v2121 = vadd.f32 0.0, %v2120
      %v2122 = vpop.f32.mrb[0].mxu0
      %2123 = vmatprep.mubr.bf16.mxu0 0
      %2124 = vmatmul.mubr.bf16.gmra.mrb[0].mxu0 %v1856
      %v2125 = vpop.f32.mrb[0].mxu0
      %v2126 = vadd.f32 0.0, %v2125
      %v2127 = vpop.f32.mrb[0].mxu0
      %v2128 = vpop.f32.mrb[0].mxu0
      %v2129 = vadd.f32 0.0, %v2128
      %v2130 = vpop.f32.mrb[0].mxu0
      %2131 = vmatprep.mubr.bf16.mxu0 0
      %2132 = vmatmul.mubr.bf16.gmra.mrb[0].mxu0 %v1859
      %v2133 = vpop.f32.mrb[0].mxu0
      %v2134 = vadd.f32 0.0, %v2133
      %v2135 = vpop.f32.mrb[0].mxu0
      %v2136 = vpop.f32.mrb[0].mxu0
      %v2137 = vadd.f32 0.0, %v2136
      %v2138 = vpop.f32.mrb[0].mxu0
      %2139 = vmatprep.mubr.bf16.mxu0 0
      %2140 = vmatmul.mubr.bf16.gmra.mrb[0].mxu0 %v1862
      %v2141 = vpop.f32.mrb[0].mxu0
      %v2142 = vadd.f32 0.0, %v2141
      %v2143 = vpop.f32.mrb[0].mxu0
      %v2144 = vpop.f32.mrb[0].mxu0
      %v2145 = vadd.f32 0.0, %v2144
      %v2146 = vpop.f32.mrb[0].mxu0
      %2147 = vmatprep.mubr.bf16.mxu0 0
      %2148 = vmatmul.mubr.bf16.gmra.mrb[0].mxu0 %v1865
      %v2149 = vpop.f32.mrb[0].mxu0
      %v2150 = vadd.f32 0.0, %v2149
      %v2151 = vpop.f32.mrb[0].mxu0
      %v2152 = vpop.f32.mrb[0].mxu0
      %v2153 = vadd.f32 0.0, %v2152
      %v2154 = vpop.f32.mrb[0].mxu0
      %2155 = vdwg.mxu0
      %v2220 = vunpack.c.l.b16 %v1664
      %v2221 = vunpack.c.l.b16 %v1665
      %v2222 = vunpack.c.l.b16 %v1666
      %v2223 = vunpack.c.l.b16 %v1667
      %v2224 = vunpack.c.l.b16 %v1668
      %v2225 = vunpack.c.l.b16 %v1669
      %v2226 = vunpack.c.l.b16 %v1670
      %v2227 = vunpack.c.l.b16 %v1671
      %v2228 = vunpack.c.l.b16 %v1672
      %v2229 = vunpack.c.l.b16 %v1673
      %v2230 = vunpack.c.l.b16 %v1674
      %v2231 = vunpack.c.l.b16 %v1675
      %v2232 = vunpack.c.l.b16 %v1676
      %v2233 = vunpack.c.l.b16 %v1677
      %v2234 = vunpack.c.l.b16 %v1678
      %v2235 = vunpack.c.l.b16 %v1679
      %v2236 = vunpack.c.l.b16 %v1680
      %v2237 = vunpack.c.l.b16 %v1681
      %v2238 = vunpack.c.l.b16 %v1682
      %v2239 = vunpack.c.l.b16 %v1683
      %v2240 = vunpack.c.l.b16 %v1684
      %v2241 = vunpack.c.l.b16 %v1685
      %v2242 = vunpack.c.l.b16 %v1686
      %v2243 = vunpack.c.l.b16 %v1687
      %v2244 = vunpack.c.l.b16 %v1688
      %v2245 = vunpack.c.l.b16 %v1689
      %v2246 = vunpack.c.l.b16 %v1690
      %v2247 = vunpack.c.l.b16 %v1691
      %v2248 = vunpack.c.l.b16 %v1692
      %v2249 = vunpack.c.l.b16 %v1693
      %v2250 = vunpack.c.l.b16 %v1694
      %v2251 = vunpack.c.l.b16 %v1695
      %v2252 = vunpack.c.l.b16 %v1696
      %v2253 = vunpack.c.l.b16 %v1697
      %v2254 = vunpack.c.l.b16 %v1698
      %v2255 = vunpack.c.l.b16 %v1699
      %v2256 = vunpack.c.l.b16 %v1700
      %v2257 = vunpack.c.l.b16 %v1701
      %v2258 = vunpack.c.l.b16 %v1702
      %v2259 = vunpack.c.l.b16 %v1703
      %v2260 = vunpack.c.l.b16 %v1704
      %v2261 = vunpack.c.l.b16 %v1705
      %v2262 = vunpack.c.l.b16 %v1706
      %v2263 = vunpack.c.l.b16 %v1707
      %v2264 = vunpack.c.l.b16 %v1708
      %v2265 = vunpack.c.l.b16 %v1709
      %v2266 = vunpack.c.l.b16 %v1710
      %v2267 = vunpack.c.l.b16 %v1711
      %v2268 = vunpack.c.l.b16 %v1712
      %v2269 = vunpack.c.l.b16 %v1713
      %v2270 = vunpack.c.l.b16 %v1714
      %v2271 = vunpack.c.l.b16 %v1715
      %v2272 = vunpack.c.l.b16 %v1716
      %v2273 = vunpack.c.l.b16 %v1717
      %v2274 = vunpack.c.l.b16 %v1718
      %v2275 = vunpack.c.l.b16 %v1719
      %v2276 = vunpack.c.l.b16 %v1720
      %v2277 = vunpack.c.l.b16 %v1721
      %v2278 = vunpack.c.l.b16 %v1722
      %v2279 = vunpack.c.l.b16 %v1723
      %v2280 = vunpack.c.l.b16 %v1724
      %v2281 = vunpack.c.l.b16 %v1725
      %v2282 = vunpack.c.l.b16 %v1726
      %v2283 = vunpack.c.l.b16 %v1727
      %v2284 = vpack.c.b16 %v2221, %v2220
      %v2285 = vpack.c.b16 %v2223, %v2222
      %v2286 = vpack.c.b16 %v2225, %v2224
      %v2287 = vpack.c.b16 %v2227, %v2226
      %v2288 = vpack.c.b16 %v2229, %v2228
      %v2289 = vpack.c.b16 %v2231, %v2230
      %v2290 = vpack.c.b16 %v2233, %v2232
      %v2291 = vpack.c.b16 %v2235, %v2234
      %v2292 = vpack.c.b16 %v2237, %v2236
      %v2293 = vpack.c.b16 %v2239, %v2238
      %v2294 = vpack.c.b16 %v2241, %v2240
      %v2295 = vpack.c.b16 %v2243, %v2242
      %v2296 = vpack.c.b16 %v2245, %v2244
      %v2297 = vpack.c.b16 %v2247, %v2246
      %v2298 = vpack.c.b16 %v2249, %v2248
      %v2299 = vpack.c.b16 %v2251, %v2250
      %v2300 = vpack.c.b16 %v2253, %v2252
      %v2301 = vpack.c.b16 %v2255, %v2254
      %v2302 = vpack.c.b16 %v2257, %v2256
      %v2303 = vpack.c.b16 %v2259, %v2258
      %v2304 = vpack.c.b16 %v2261, %v2260
      %v2305 = vpack.c.b16 %v2263, %v2262
      %v2306 = vpack.c.b16 %v2265, %v2264
      %v2307 = vpack.c.b16 %v2267, %v2266
      %v2308 = vpack.c.b16 %v2269, %v2268
      %v2309 = vpack.c.b16 %v2271, %v2270
      %v2310 = vpack.c.b16 %v2273, %v2272
      %v2311 = vpack.c.b16 %v2275, %v2274
      %v2312 = vpack.c.b16 %v2277, %v2276
      %v2313 = vpack.c.b16 %v2279, %v2278
      %v2314 = vpack.c.b16 %v2281, %v2280
      %v2315 = vpack.c.b16 %v2283, %v2282
      %v2318 = vunpack.c.l.b16 %v1728
      %v2319 = vunpack.c.l.b16 %v1729
      %v2320 = vpack.c.b16 %v2319, %v2318
      %v2323 = vsel %vm1770, %v2284, 0
      %v2326 = vsel %vm1770, %v2285, 0
      %v2329 = vsel %vm1770, %v2286, 0
      %v2332 = vsel %vm1770, %v2287, 0
      %v2335 = vsel %vm1770, %v2288, 0
      %v2338 = vsel %vm1770, %v2289, 0
      %v2341 = vsel %vm1770, %v2290, 0
      %v2344 = vsel %vm1770, %v2291, 0
      %v2347 = vsel %vm1770, %v2292, 0
      %v2350 = vsel %vm1770, %v2293, 0
      %v2353 = vsel %vm1770, %v2294, 0
      %v2356 = vsel %vm1770, %v2295, 0
      %v2359 = vsel %vm1770, %v2296, 0
      %v2362 = vsel %vm1770, %v2297, 0
      %v2365 = vsel %vm1770, %v2298, 0
      %v2368 = vsel %vm1770, %v2299, 0
      %v2371 = vsel %vm1770, %v2300, 0
      %v2374 = vsel %vm1770, %v2301, 0
      %v2377 = vsel %vm1770, %v2302, 0
      %v2380 = vsel %vm1770, %v2303, 0
      %v2383 = vsel %vm1770, %v2304, 0
      %v2386 = vsel %vm1770, %v2305, 0
      %v2389 = vsel %vm1770, %v2306, 0
      %v2392 = vsel %vm1770, %v2307, 0
      %v2395 = vsel %vm1770, %v2308, 0
      %v2398 = vsel %vm1770, %v2309, 0
      %v2401 = vsel %vm1770, %v2310, 0
      %v2404 = vsel %vm1770, %v2311, 0
      %v2407 = vsel %vm1770, %v2312, 0
      %v2410 = vsel %vm1770, %v2313, 0
      %v2413 = vsel %vm1770, %v2314, 0
      %v2416 = vsel %vm1770, %v2315, 0
      %2418 = vmatprep.subr.bf16.mxu0 0
      %2419 = vmatpush1.bf16.msra.mxu0 %v2320
      %2420 = vmatprep.subr.bf16.mxu0 0
      %2421 = vmatpush1.bf16.msra.mxu0 0
      %2422 = vmatprep.subr.bf16.mxu0 0
      %2423 = vmatpush1.bf16.msra.mxu0 0
      %2424 = vmatprep.subr.bf16.mxu0 0
      %2425 = vmatpush1.bf16.msra.mxu0 0
      %2426 = vmatprep.subr.bf16.mxu0 0
      %2427 = vmatpush1.bf16.msra.mxu0 0
      %2428 = vmatprep.subr.bf16.mxu0 0
      %2429 = vmatpush1.bf16.msra.mxu0 0
      %2430 = vmatprep.subr.bf16.mxu0 0
      %2431 = vmatpush1.bf16.msra.mxu0 0
      %2432 = vmatprep.subr.bf16.mxu0 0
      %2433 = vmatpush1.bf16.msra.mxu0 0
      %2434 = vmatprep.subr.bf16.mxu0 0
      %2435 = vmatpush1.bf16.msra.mxu0 0
      %2436 = vmatprep.subr.bf16.mxu0 0
      %2437 = vmatpush1.bf16.msra.mxu0 0
      %2438 = vmatprep.subr.bf16.mxu0 0
      %2439 = vmatpush1.bf16.msra.mxu0 0
      %2440 = vmatprep.subr.bf16.mxu0 0
      %2441 = vmatpush1.bf16.msra.mxu0 0
      %2442 = vmatprep.subr.bf16.mxu0 0
      %2443 = vmatpush1.bf16.msra.mxu0 0
      %2444 = vmatprep.subr.bf16.mxu0 0
      %2445 = vmatpush1.bf16.msra.mxu0 0
      %2446 = vmatprep.subr.bf16.mxu0 0
      %2447 = vmatpush1.bf16.msra.mxu0 0
      %2448 = vmatprep.subr.bf16.mxu0 0
      %2449 = vmatpush1.bf16.msra.mxu0 0
      %2450 = vmatprep.mubr.bf16.mxu0 0
      %2451 = vmatmul.mubr.bf16.gmra.mrb[0].mxu0 %v2323
      %v2452 = vpop.f32.mrb[0].mxu0
      %v2453 = vadd.f32 %v1902, %v2452
      %v2454 = vpop.f32.mrb[0].mxu0
      %v2455 = vpop.f32.mrb[0].mxu0
      %v2456 = vadd.f32 %v1905, %v2455
      %v2457 = vpop.f32.mrb[0].mxu0
      %2458 = vmatprep.mubr.bf16.mxu0 0
      %2459 = vmatmul.mubr.bf16.gmra.mrb[0].mxu0 %v2326
      %v2460 = vpop.f32.mrb[0].mxu0
      %v2461 = vadd.f32 %v1910, %v2460
      %v2462 = vpop.f32.mrb[0].mxu0
      %v2463 = vpop.f32.mrb[0].mxu0
      %v2464 = vadd.f32 %v1913, %v2463
      %v2465 = vpop.f32.mrb[0].mxu0
      %2466 = vmatprep.mubr.bf16.mxu0 0
      %2467 = vmatmul.mubr.bf16.gmra.mrb[0].mxu0 %v2329
      %v2468 = vpop.f32.mrb[0].mxu0
      %v2469 = vadd.f32 %v1918, %v2468
      %v2470 = vpop.f32.mrb[0].mxu0
      %v2471 = vpop.f32.mrb[0].mxu0
      %v2472 = vadd.f32 %v1921, %v2471
      %v2473 = vpop.f32.mrb[0].mxu0
      %2474 = vmatprep.mubr.bf16.mxu0 0
      %2475 = vmatmul.mubr.bf16.gmra.mrb[0].mxu0 %v2332
      %v2476 = vpop.f32.mrb[0].mxu0
      %v2477 = vadd.f32 %v1926, %v2476
      %v2478 = vpop.f32.mrb[0].mxu0
      %v2479 = vpop.f32.mrb[0].mxu0
      %v2480 = vadd.f32 %v1929, %v2479
      %v2481 = vpop.f32.mrb[0].mxu0
      %2482 = vmatprep.mubr.bf16.mxu0 0
      %2483 = vmatmul.mubr.bf16.gmra.mrb[0].mxu0 %v2335
      %v2484 = vpop.f32.mrb[0].mxu0
      %v2485 = vadd.f32 %v1934, %v2484
      %v2486 = vpop.f32.mrb[0].mxu0
      %v2487 = vpop.f32.mrb[0].mxu0
      %v2488 = vadd.f32 %v1937, %v2487
      %v2489 = vpop.f32.mrb[0].mxu0
      %2490 = vmatprep.mubr.bf16.mxu0 0
      %2491 = vmatmul.mubr.bf16.gmra.mrb[0].mxu0 %v2338
      %v2492 = vpop.f32.mrb[0].mxu0
      %v2493 = vadd.f32 %v1942, %v2492
      %v2494 = vpop.f32.mrb[0].mxu0
      %v2495 = vpop.f32.mrb[0].mxu0
      %v2496 = vadd.f32 %v1945, %v2495
      %v2497 = vpop.f32.mrb[0].mxu0
      %2498 = vmatprep.mubr.bf16.mxu0 0
      %2499 = vmatmul.mubr.bf16.gmra.mrb[0].mxu0 %v2341
      %v2500 = vpop.f32.mrb[0].mxu0
      %v2501 = vadd.f32 %v1950, %v2500
      %v2502 = vpop.f32.mrb[0].mxu0
      %v2503 = vpop.f32.mrb[0].mxu0
      %v2504 = vadd.f32 %v1953, %v2503
      %v2505 = vpop.f32.mrb[0].mxu0
      %2506 = vmatprep.mubr.bf16.mxu0 0
      %2507 = vmatmul.mubr.bf16.gmra.mrb[0].mxu0 %v2344
      %v2508 = vpop.f32.mrb[0].mxu0
      %v2509 = vadd.f32 %v1958, %v2508
      %v2510 = vpop.f32.mrb[0].mxu0
      %v2511 = vpop.f32.mrb[0].mxu0
      %v2512 = vadd.f32 %v1961, %v2511
      %v2513 = vpop.f32.mrb[0].mxu0
      %2514 = vmatprep.mubr.bf16.mxu0 0
      %2515 = vmatmul.mubr.bf16.gmra.mrb[0].mxu0 %v2347
      %v2516 = vpop.f32.mrb[0].mxu0
      %v2517 = vadd.f32 %v1966, %v2516
      %v2518 = vpop.f32.mrb[0].mxu0
      %v2519 = vpop.f32.mrb[0].mxu0
      %v2520 = vadd.f32 %v1969, %v2519
      %v2521 = vpop.f32.mrb[0].mxu0
      %2522 = vmatprep.mubr.bf16.mxu0 0
      %2523 = vmatmul.mubr.bf16.gmra.mrb[0].mxu0 %v2350
      %v2524 = vpop.f32.mrb[0].mxu0
      %v2525 = vadd.f32 %v1974, %v2524
      %v2526 = vpop.f32.mrb[0].mxu0
      %v2527 = vpop.f32.mrb[0].mxu0
      %v2528 = vadd.f32 %v1977, %v2527
      %v2529 = vpop.f32.mrb[0].mxu0
      %2530 = vmatprep.mubr.bf16.mxu0 0
      %2531 = vmatmul.mubr.bf16.gmra.mrb[0].mxu0 %v2353
      %v2532 = vpop.f32.mrb[0].mxu0
      %v2533 = vadd.f32 %v1982, %v2532
      %v2534 = vpop.f32.mrb[0].mxu0
      %v2535 = vpop.f32.mrb[0].mxu0
      %v2536 = vadd.f32 %v1985, %v2535
      %v2537 = vpop.f32.mrb[0].mxu0
      %2538 = vmatprep.mubr.bf16.mxu0 0
      %2539 = vmatmul.mubr.bf16.gmra.mrb[0].mxu0 %v2356
      %v2540 = vpop.f32.mrb[0].mxu0
      %v2541 = vadd.f32 %v1990, %v2540
      %v2542 = vpop.f32.mrb[0].mxu0
      %v2543 = vpop.f32.mrb[0].mxu0
      %v2544 = vadd.f32 %v1993, %v2543
      %v2545 = vpop.f32.mrb[0].mxu0
      %2546 = vmatprep.mubr.bf16.mxu0 0
      %2547 = vmatmul.mubr.bf16.gmra.mrb[0].mxu0 %v2359
      %v2548 = vpop.f32.mrb[0].mxu0
      %v2549 = vadd.f32 %v1998, %v2548
      %v2550 = vpop.f32.mrb[0].mxu0
      %v2551 = vpop.f32.mrb[0].mxu0
      %v2552 = vadd.f32 %v2001, %v2551
      %v2553 = vpop.f32.mrb[0].mxu0
      %2554 = vmatprep.mubr.bf16.mxu0 0
      %2555 = vmatmul.mubr.bf16.gmra.mrb[0].mxu0 %v2362
      %v2556 = vpop.f32.mrb[0].mxu0
      %v2557 = vadd.f32 %v2006, %v2556
      %v2558 = vpop.f32.mrb[0].mxu0
      %v2559 = vpop.f32.mrb[0].mxu0
      %v2560 = vadd.f32 %v2009, %v2559
      %v2561 = vpop.f32.mrb[0].mxu0
      %2562 = vmatprep.mubr.bf16.mxu0 0
      %2563 = vmatmul.mubr.bf16.gmra.mrb[0].mxu0 %v2365
      %v2564 = vpop.f32.mrb[0].mxu0
      %v2565 = vadd.f32 %v2014, %v2564
      %v2566 = vpop.f32.mrb[0].mxu0
      %v2567 = vpop.f32.mrb[0].mxu0
      %v2568 = vadd.f32 %v2017, %v2567
      %v2569 = vpop.f32.mrb[0].mxu0
      %2570 = vmatprep.mubr.bf16.mxu0 0
      %2571 = vmatmul.mubr.bf16.gmra.mrb[0].mxu0 %v2368
      %v2572 = vpop.f32.mrb[0].mxu0
      %v2573 = vadd.f32 %v2022, %v2572
      %v2574 = vpop.f32.mrb[0].mxu0
      %v2575 = vpop.f32.mrb[0].mxu0
      %v2576 = vadd.f32 %v2025, %v2575
      %v2577 = vpop.f32.mrb[0].mxu0
      %2578 = vmatprep.mubr.bf16.mxu0 0
      %2579 = vmatmul.mubr.bf16.gmra.mrb[0].mxu0 %v2371
      %v2580 = vpop.f32.mrb[0].mxu0
      %v2581 = vadd.f32 %v2030, %v2580
      %v2582 = vpop.f32.mrb[0].mxu0
      %v2583 = vpop.f32.mrb[0].mxu0
      %v2584 = vadd.f32 %v2033, %v2583
      %v2585 = vpop.f32.mrb[0].mxu0
      %2586 = vmatprep.mubr.bf16.mxu0 0
      %2587 = vmatmul.mubr.bf16.gmra.mrb[0].mxu0 %v2374
      %v2588 = vpop.f32.mrb[0].mxu0
      %v2589 = vadd.f32 %v2038, %v2588
      %v2590 = vpop.f32.mrb[0].mxu0
      %v2591 = vpop.f32.mrb[0].mxu0
      %v2592 = vadd.f32 %v2041, %v2591
      %v2593 = vpop.f32.mrb[0].mxu0
      %2594 = vmatprep.mubr.bf16.mxu0 0
      %2595 = vmatmul.mubr.bf16.gmra.mrb[0].mxu0 %v2377
      %v2596 = vpop.f32.mrb[0].mxu0
      %v2597 = vadd.f32 %v2046, %v2596
      %v2598 = vpop.f32.mrb[0].mxu0
      %v2599 = vpop.f32.mrb[0].mxu0
      %v2600 = vadd.f32 %v2049, %v2599
      %v2601 = vpop.f32.mrb[0].mxu0
      %2602 = vmatprep.mubr.bf16.mxu0 0
      %2603 = vmatmul.mubr.bf16.gmra.mrb[0].mxu0 %v2380
      %v2604 = vpop.f32.mrb[0].mxu0
      %v2605 = vadd.f32 %v2054, %v2604
      %v2606 = vpop.f32.mrb[0].mxu0
      %v2607 = vpop.f32.mrb[0].mxu0
      %v2608 = vadd.f32 %v2057, %v2607
      %v2609 = vpop.f32.mrb[0].mxu0
      %2610 = vmatprep.mubr.bf16.mxu0 0
      %2611 = vmatmul.mubr.bf16.gmra.mrb[0].mxu0 %v2383
      %v2612 = vpop.f32.mrb[0].mxu0
      %v2613 = vadd.f32 %v2062, %v2612
      %v2614 = vpop.f32.mrb[0].mxu0
      %v2615 = vpop.f32.mrb[0].mxu0
      %v2616 = vadd.f32 %v2065, %v2615
      %v2617 = vpop.f32.mrb[0].mxu0
      %2618 = vmatprep.mubr.bf16.mxu0 0
      %2619 = vmatmul.mubr.bf16.gmra.mrb[0].mxu0 %v2386
      %v2620 = vpop.f32.mrb[0].mxu0
      %v2621 = vadd.f32 %v2070, %v2620
      %v2622 = vpop.f32.mrb[0].mxu0
      %v2623 = vpop.f32.mrb[0].mxu0
      %v2624 = vadd.f32 %v2073, %v2623
      %v2625 = vpop.f32.mrb[0].mxu0
      %2626 = vmatprep.mubr.bf16.mxu0 0
      %2627 = vmatmul.mubr.bf16.gmra.mrb[0].mxu0 %v2389
      %v2628 = vpop.f32.mrb[0].mxu0
      %v2629 = vadd.f32 %v2078, %v2628
      %v2630 = vpop.f32.mrb[0].mxu0
      %v2631 = vpop.f32.mrb[0].mxu0
      %v2632 = vadd.f32 %v2081, %v2631
      %v2633 = vpop.f32.mrb[0].mxu0
      %2634 = vmatprep.mubr.bf16.mxu0 0
      %2635 = vmatmul.mubr.bf16.gmra.mrb[0].mxu0 %v2392
      %v2636 = vpop.f32.mrb[0].mxu0
      %v2637 = vadd.f32 %v2086, %v2636
      %v2638 = vpop.f32.mrb[0].mxu0
      %v2639 = vpop.f32.mrb[0].mxu0
      %v2640 = vadd.f32 %v2089, %v2639
      %v2641 = vpop.f32.mrb[0].mxu0
      %2642 = vmatprep.mubr.bf16.mxu0 0
      %2643 = vmatmul.mubr.bf16.gmra.mrb[0].mxu0 %v2395
      %v2644 = vpop.f32.mrb[0].mxu0
      %v2645 = vadd.f32 %v2094, %v2644
      %v2646 = vpop.f32.mrb[0].mxu0
      %v2647 = vpop.f32.mrb[0].mxu0
      %v2648 = vadd.f32 %v2097, %v2647
      %v2649 = vpop.f32.mrb[0].mxu0
      %2650 = vmatprep.mubr.bf16.mxu0 0
      %2651 = vmatmul.mubr.bf16.gmra.mrb[0].mxu0 %v2398
      %v2652 = vpop.f32.mrb[0].mxu0
      %v2653 = vadd.f32 %v2102, %v2652
      %v2654 = vpop.f32.mrb[0].mxu0
      %v2655 = vpop.f32.mrb[0].mxu0
      %v2656 = vadd.f32 %v2105, %v2655
      %v2657 = vpop.f32.mrb[0].mxu0
      %2658 = vmatprep.mubr.bf16.mxu0 0
      %2659 = vmatmul.mubr.bf16.gmra.mrb[0].mxu0 %v2401
      %v2660 = vpop.f32.mrb[0].mxu0
      %v2661 = vadd.f32 %v2110, %v2660
      %v2662 = vpop.f32.mrb[0].mxu0
      %v2663 = vpop.f32.mrb[0].mxu0
      %v2664 = vadd.f32 %v2113, %v2663
      %v2665 = vpop.f32.mrb[0].mxu0
      %2666 = vmatprep.mubr.bf16.mxu0 0
      %2667 = vmatmul.mubr.bf16.gmra.mrb[0].mxu0 %v2404
      %v2668 = vpop.f32.mrb[0].mxu0
      %v2669 = vadd.f32 %v2118, %v2668
      %v2670 = vpop.f32.mrb[0].mxu0
      %v2671 = vpop.f32.mrb[0].mxu0
      %v2672 = vadd.f32 %v2121, %v2671
      %v2673 = vpop.f32.mrb[0].mxu0
      %2674 = vmatprep.mubr.bf16.mxu0 0
      %2675 = vmatmul.mubr.bf16.gmra.mrb[0].mxu0 %v2407
      %v2676 = vpop.f32.mrb[0].mxu0
      %v2677 = vadd.f32 %v2126, %v2676
      %v2678 = vpop.f32.mrb[0].mxu0
      %v2679 = vpop.f32.mrb[0].mxu0
      %v2680 = vadd.f32 %v2129, %v2679
      %v2681 = vpop.f32.mrb[0].mxu0
      %2682 = vmatprep.mubr.bf16.mxu0 0
      %2683 = vmatmul.mubr.bf16.gmra.mrb[0].mxu0 %v2410
      %v2684 = vpop.f32.mrb[0].mxu0
      %v2685 = vadd.f32 %v2134, %v2684
      %v2686 = vpop.f32.mrb[0].mxu0
      %v2687 = vpop.f32.mrb[0].mxu0
      %v2688 = vadd.f32 %v2137, %v2687
      %v2689 = vpop.f32.mrb[0].mxu0
      %2690 = vmatprep.mubr.bf16.mxu0 0
      %2691 = vmatmul.mubr.bf16.gmra.mrb[0].mxu0 %v2413
      %v2692 = vpop.f32.mrb[0].mxu0
      %v2693 = vadd.f32 %v2142, %v2692
      %v2694 = vpop.f32.mrb[0].mxu0
      %v2695 = vpop.f32.mrb[0].mxu0
      %v2696 = vadd.f32 %v2145, %v2695
      %v2697 = vpop.f32.mrb[0].mxu0
      %2698 = vmatprep.mubr.bf16.mxu0 0
      %2699 = vmatmul.mubr.bf16.gmra.mrb[0].mxu0 %v2416
      %v2700 = vpop.f32.mrb[0].mxu0
      %v2701 = vadd.f32 %v2150, %v2700
      %v2702 = vpop.f32.mrb[0].mxu0
      %v2703 = vpop.f32.mrb[0].mxu0
      %v2704 = vadd.f32 %v2153, %v2703
      %v2705 = vpop.f32.mrb[0].mxu0
      %2706 = vdwg.mxu0
      %v2707 = vmax.f32 %v2453, 0.0
      %v2708 = vmax.f32 %v2456, 0.0
      %v2709 = vmax.f32 %v2461, 0.0
      %v2710 = vmax.f32 %v2464, 0.0
      %v2711 = vmax.f32 %v2469, 0.0
      %v2712 = vmax.f32 %v2472, 0.0
      %v2713 = vmax.f32 %v2477, 0.0
      %v2714 = vmax.f32 %v2480, 0.0
      %v2715 = vmax.f32 %v2485, 0.0
      %v2716 = vmax.f32 %v2488, 0.0
      %v2717 = vmax.f32 %v2493, 0.0
      %v2718 = vmax.f32 %v2496, 0.0
      %v2719 = vmax.f32 %v2501, 0.0
      %v2720 = vmax.f32 %v2504, 0.0
      %v2721 = vmax.f32 %v2509, 0.0
      %v2722 = vmax.f32 %v2512, 0.0
      %v2723 = vmax.f32 %v2517, 0.0
      %v2724 = vmax.f32 %v2520, 0.0
      %v2725 = vmax.f32 %v2525, 0.0
      %v2726 = vmax.f32 %v2528, 0.0
      %v2727 = vmax.f32 %v2533, 0.0
      %v2728 = vmax.f32 %v2536, 0.0
      %v2729 = vmax.f32 %v2541, 0.0
      %v2730 = vmax.f32 %v2544, 0.0
      %v2731 = vmax.f32 %v2549, 0.0
      %v2732 = vmax.f32 %v2552, 0.0
      %v2733 = vmax.f32 %v2557, 0.0
      %v2734 = vmax.f32 %v2560, 0.0
      %v2735 = vmax.f32 %v2565, 0.0
      %v2736 = vmax.f32 %v2568, 0.0
      %v2737 = vmax.f32 %v2573, 0.0
      %v2738 = vmax.f32 %v2576, 0.0
      %v2739 = vmax.f32 %v2581, 0.0
      %v2740 = vmax.f32 %v2584, 0.0
      %v2741 = vmax.f32 %v2589, 0.0
      %v2742 = vmax.f32 %v2592, 0.0
      %v2743 = vmax.f32 %v2597, 0.0
      %v2744 = vmax.f32 %v2600, 0.0
      %v2745 = vmax.f32 %v2605, 0.0
      %v2746 = vmax.f32 %v2608, 0.0
      %v2747 = vmax.f32 %v2613, 0.0
      %v2748 = vmax.f32 %v2616, 0.0
      %v2749 = vmax.f32 %v2621, 0.0
      %v2750 = vmax.f32 %v2624, 0.0
      %v2751 = vmax.f32 %v2629, 0.0
      %v2752 = vmax.f32 %v2632, 0.0
      %v2753 = vmax.f32 %v2637, 0.0
      %v2754 = vmax.f32 %v2640, 0.0
      %v2755 = vmax.f32 %v2645, 0.0
      %v2756 = vmax.f32 %v2648, 0.0
      %v2757 = vmax.f32 %v2653, 0.0
      %v2758 = vmax.f32 %v2656, 0.0
      %v2759 = vmax.f32 %v2661, 0.0
      %v2760 = vmax.f32 %v2664, 0.0
      %v2761 = vmax.f32 %v2669, 0.0
      %v2762 = vmax.f32 %v2672, 0.0
      %v2763 = vmax.f32 %v2677, 0.0
      %v2764 = vmax.f32 %v2680, 0.0
      %v2765 = vmax.f32 %v2685, 0.0
      %v2766 = vmax.f32 %v2688, 0.0
      %v2767 = vmax.f32 %v2693, 0.0
      %v2768 = vmax.f32 %v2696, 0.0
      %v2769 = vmax.f32 %v2701, 0.0
      %v2770 = vmax.f32 %v2704, 0.0
      %v2771 = vpack.c.bf16 %v2708, %v2707
      %v2772 = vpack.c.bf16 %v2710, %v2709
      %v2773 = vpack.c.bf16 %v2712, %v2711
      %v2774 = vpack.c.bf16 %v2714, %v2713
      %v2775 = vpack.c.bf16 %v2716, %v2715
      %v2776 = vpack.c.bf16 %v2718, %v2717
      %v2777 = vpack.c.bf16 %v2720, %v2719
      %v2778 = vpack.c.bf16 %v2722, %v2721
      %v2779 = vpack.c.bf16 %v2724, %v2723
      %v2780 = vpack.c.bf16 %v2726, %v2725
      %v2781 = vpack.c.bf16 %v2728, %v2727
      %v2782 = vpack.c.bf16 %v2730, %v2729
      %v2783 = vpack.c.bf16 %v2732, %v2731
      %v2784 = vpack.c.bf16 %v2734, %v2733
      %v2785 = vpack.c.bf16 %v2736, %v2735
      %v2786 = vpack.c.bf16 %v2738, %v2737
      %v2787 = vpack.c.bf16 %v2740, %v2739
      %v2788 = vpack.c.bf16 %v2742, %v2741
      %v2789 = vpack.c.bf16 %v2744, %v2743
      %v2790 = vpack.c.bf16 %v2746, %v2745
      %v2791 = vpack.c.bf16 %v2748, %v2747
      %v2792 = vpack.c.bf16 %v2750, %v2749
      %v2793 = vpack.c.bf16 %v2752, %v2751
      %v2794 = vpack.c.bf16 %v2754, %v2753
      %v2795 = vpack.c.bf16 %v2756, %v2755
      %v2796 = vpack.c.bf16 %v2758, %v2757
      %v2797 = vpack.c.bf16 %v2760, %v2759
      %v2798 = vpack.c.bf16 %v2762, %v2761
      %v2799 = vpack.c.bf16 %v2764, %v2763
      %v2800 = vpack.c.bf16 %v2766, %v2765
      %v2801 = vpack.c.bf16 %v2768, %v2767
      %v2802 = vpack.c.bf16 %v2770, %v2769
      %v2803 = vld [vmem:[%s6] sm:$0xf]
      %v2804 = vld [vmem:[%s6 + $0x4] sm:$0xf]
      %v2805 = vld [vmem:[%s6 + $0x8] sm:$0xf]
      %v2806 = vld [vmem:[%s6 + $0xc] sm:$0xf]
      %v2807 = vld [vmem:[%s6 + $0x10] sm:$0xf]
      %v2808 = vld [vmem:[%s6 + $0x14] sm:$0xf]
      %v2809 = vld [vmem:[%s6 + $0x18] sm:$0xf]
      %v2810 = vld [vmem:[%s6 + $0x1c] sm:$0xf]
      %v2819 = vunpack.c.l.b16 %v2803
      %v2820 = vunpack.c.l.b16 %v2804
      %v2821 = vunpack.c.l.b16 %v2805
      %v2822 = vunpack.c.l.b16 %v2806
      %v2823 = vunpack.c.l.b16 %v2807
      %v2824 = vunpack.c.l.b16 %v2808
      %v2825 = vunpack.c.l.b16 %v2809
      %v2826 = vunpack.c.l.b16 %v2810
      %v2827 = vpack.c.b16 %v2820, %v2819
      %v2828 = vpack.c.b16 %v2822, %v2821
      %v2829 = vpack.c.b16 %v2824, %v2823
      %v2830 = vpack.c.b16 %v2826, %v2825
      %v2836 = vsel %vm1086, %v2771, 0
      %v2839 = vsel %vm1086, %v2772, 0
      %v2842 = vsel %vm1086, %v2773, 0
      %v2845 = vsel %vm1086, %v2774, 0
      %v2848 = vsel %vm1086, %v2775, 0
      %v2851 = vsel %vm1086, %v2776, 0
      %v2854 = vsel %vm1086, %v2777, 0
      %v2857 = vsel %vm1086, %v2778, 0
      %v2860 = vsel %vm1086, %v2779, 0
      %v2863 = vsel %vm1086, %v2780, 0
      %v2866 = vsel %vm1086, %v2781, 0
      %v2869 = vsel %vm1086, %v2782, 0
      %v2872 = vsel %vm1086, %v2783, 0
      %v2875 = vsel %vm1086, %v2784, 0
      %v2878 = vsel %vm1086, %v2785, 0
      %v2881 = vsel %vm1086, %v2786, 0
      %v2884 = vsel %vm1086, %v2787, 0
      %v2887 = vsel %vm1086, %v2788, 0
      %v2890 = vsel %vm1086, %v2789, 0
      %v2893 = vsel %vm1086, %v2790, 0
      %v2896 = vsel %vm1086, %v2791, 0
      %v2899 = vsel %vm1086, %v2792, 0
      %v2902 = vsel %vm1086, %v2793, 0
      %v2905 = vsel %vm1086, %v2794, 0
      %v2908 = vsel %vm1086, %v2795, 0
      %v2911 = vsel %vm1086, %v2796, 0
      %v2914 = vsel %vm1086, %v2797, 0
      %v2917 = vsel %vm1086, %v2798, 0
      %v2920 = vsel %vm1086, %v2799, 0
      %v2923 = vsel %vm1086, %v2800, 0
      %v2926 = vsel %vm1086, %v2801, 0
      %v2929 = vsel %vm1086, %v2802, 0
      %2931 = vmatprep.subr.bf16.mxu0 0
      %2932 = vmatpush1.bf16.msra.mxu0 %v2827
      %2933 = vmatprep.subr.bf16.mxu0 0
      %2934 = vmatpush1.bf16.msra.mxu0 %v2828
      %2935 = vmatprep.subr.bf16.mxu0 0
      %2936 = vmatpush1.bf16.msra.mxu0 %v2829
      %2937 = vmatprep.subr.bf16.mxu0 0
      %2938 = vmatpush1.bf16.msra.mxu0 %v2830
      %2939 = vmatprep.subr.bf16.mxu0 0
      %2940 = vmatpush1.bf16.msra.mxu0 0
      %2941 = vmatprep.subr.bf16.mxu0 0
      %2942 = vmatpush1.bf16.msra.mxu0 0
      %2943 = vmatprep.subr.bf16.mxu0 0
      %2944 = vmatpush1.bf16.msra.mxu0 0
      %2945 = vmatprep.subr.bf16.mxu0 0
      %2946 = vmatpush1.bf16.msra.mxu0 0
      %2947 = vmatprep.subr.bf16.mxu0 0
      %2948 = vmatpush1.bf16.msra.mxu0 0
      %2949 = vmatprep.subr.bf16.mxu0 0
      %2950 = vmatpush1.bf16.msra.mxu0 0
      %2951 = vmatprep.subr.bf16.mxu0 0
      %2952 = vmatpush1.bf16.msra.mxu0 0
      %2953 = vmatprep.subr.bf16.mxu0 0
      %2954 = vmatpush1.bf16.msra.mxu0 0
      %2955 = vmatprep.subr.bf16.mxu0 0
      %2956 = vmatpush1.bf16.msra.mxu0 0
      %2957 = vmatprep.subr.bf16.mxu0 0
      %2958 = vmatpush1.bf16.msra.mxu0 0
      %2959 = vmatprep.subr.bf16.mxu0 0
      %2960 = vmatpush1.bf16.msra.mxu0 0
      %2961 = vmatprep.subr.bf16.mxu0 0
      %2962 = vmatpush1.bf16.msra.mxu0 0
      %2963 = vmatprep.mubr.bf16.mxu0 0
      %2964 = vmatmul.mubr.bf16.gmra.mrb[0].mxu0 %v2836
      %v2965 = vpop.f32.mrb[0].mxu0
      %v2966 = vadd.f32 0.0, %v2965
      %v2967 = vpop.f32.mrb[0].mxu0
      %v2968 = vpop.f32.mrb[0].mxu0
      %v2969 = vadd.f32 0.0, %v2968
      %v2970 = vpop.f32.mrb[0].mxu0
      %2971 = vmatprep.mubr.bf16.mxu0 0
      %2972 = vmatmul.mubr.bf16.gmra.mrb[0].mxu0 %v2839
      %v2973 = vpop.f32.mrb[0].mxu0
      %v2974 = vadd.f32 0.0, %v2973
      %v2975 = vpop.f32.mrb[0].mxu0
      %v2976 = vpop.f32.mrb[0].mxu0
      %v2977 = vadd.f32 0.0, %v2976
      %v2978 = vpop.f32.mrb[0].mxu0
      %2979 = vmatprep.mubr.bf16.mxu0 0
      %2980 = vmatmul.mubr.bf16.gmra.mrb[0].mxu0 %v2842
      %v2981 = vpop.f32.mrb[0].mxu0
      %v2982 = vadd.f32 0.0, %v2981
      %v2983 = vpop.f32.mrb[0].mxu0
      %v2984 = vpop.f32.mrb[0].mxu0
      %v2985 = vadd.f32 0.0, %v2984
      %v2986 = vpop.f32.mrb[0].mxu0
      %2987 = vmatprep.mubr.bf16.mxu0 0
      %2988 = vmatmul.mubr.bf16.gmra.mrb[0].mxu0 %v2845
      %v2989 = vpop.f32.mrb[0].mxu0
      %v2990 = vadd.f32 0.0, %v2989
      %v2991 = vpop.f32.mrb[0].mxu0
      %v2992 = vpop.f32.mrb[0].mxu0
      %v2993 = vadd.f32 0.0, %v2992
      %v2994 = vpop.f32.mrb[0].mxu0
      %2995 = vmatprep.mubr.bf16.mxu0 0
      %2996 = vmatmul.mubr.bf16.gmra.mrb[0].mxu0 %v2848
      %v2997 = vpop.f32.mrb[0].mxu0
      %v2998 = vadd.f32 0.0, %v2997
      %v2999 = vpop.f32.mrb[0].mxu0
      %v3000 = vpop.f32.mrb[0].mxu0
      %v3001 = vadd.f32 0.0, %v3000
      %v3002 = vpop.f32.mrb[0].mxu0
      %3003 = vmatprep.mubr.bf16.mxu0 0
      %3004 = vmatmul.mubr.bf16.gmra.mrb[0].mxu0 %v2851
      %v3005 = vpop.f32.mrb[0].mxu0
      %v3006 = vadd.f32 0.0, %v3005
      %v3007 = vpop.f32.mrb[0].mxu0
      %v3008 = vpop.f32.mrb[0].mxu0
      %v3009 = vadd.f32 0.0, %v3008
      %v3010 = vpop.f32.mrb[0].mxu0
      %3011 = vmatprep.mubr.bf16.mxu0 0
      %3012 = vmatmul.mubr.bf16.gmra.mrb[0].mxu0 %v2854
      %v3013 = vpop.f32.mrb[0].mxu0
      %v3014 = vadd.f32 0.0, %v3013
      %v3015 = vpop.f32.mrb[0].mxu0
      %v3016 = vpop.f32.mrb[0].mxu0
      %v3017 = vadd.f32 0.0, %v3016
      %v3018 = vpop.f32.mrb[0].mxu0
      %3019 = vmatprep.mubr.bf16.mxu0 0
      %3020 = vmatmul.mubr.bf16.gmra.mrb[0].mxu0 %v2857
      %v3021 = vpop.f32.mrb[0].mxu0
      %v3022 = vadd.f32 0.0, %v3021
      %v3023 = vpop.f32.mrb[0].mxu0
      %v3024 = vpop.f32.mrb[0].mxu0
      %v3025 = vadd.f32 0.0, %v3024
      %v3026 = vpop.f32.mrb[0].mxu0
      %3027 = vmatprep.mubr.bf16.mxu0 0
      %3028 = vmatmul.mubr.bf16.gmra.mrb[0].mxu0 %v2860
      %v3029 = vpop.f32.mrb[0].mxu0
      %v3030 = vadd.f32 0.0, %v3029
      %v3031 = vpop.f32.mrb[0].mxu0
      %v3032 = vpop.f32.mrb[0].mxu0
      %v3033 = vadd.f32 0.0, %v3032
      %v3034 = vpop.f32.mrb[0].mxu0
      %3035 = vmatprep.mubr.bf16.mxu0 0
      %3036 = vmatmul.mubr.bf16.gmra.mrb[0].mxu0 %v2863
      %v3037 = vpop.f32.mrb[0].mxu0
      %v3038 = vadd.f32 0.0, %v3037
      %v3039 = vpop.f32.mrb[0].mxu0
      %v3040 = vpop.f32.mrb[0].mxu0
      %v3041 = vadd.f32 0.0, %v3040
      %v3042 = vpop.f32.mrb[0].mxu0
      %3043 = vmatprep.mubr.bf16.mxu0 0
      %3044 = vmatmul.mubr.bf16.gmra.mrb[0].mxu0 %v2866
      %v3045 = vpop.f32.mrb[0].mxu0
      %v3046 = vadd.f32 0.0, %v3045
      %v3047 = vpop.f32.mrb[0].mxu0
      %v3048 = vpop.f32.mrb[0].mxu0
      %v3049 = vadd.f32 0.0, %v3048
      %v3050 = vpop.f32.mrb[0].mxu0
      %3051 = vmatprep.mubr.bf16.mxu0 0
      %3052 = vmatmul.mubr.bf16.gmra.mrb[0].mxu0 %v2869
      %v3053 = vpop.f32.mrb[0].mxu0
      %v3054 = vadd.f32 0.0, %v3053
      %v3055 = vpop.f32.mrb[0].mxu0
      %v3056 = vpop.f32.mrb[0].mxu0
      %v3057 = vadd.f32 0.0, %v3056
      %v3058 = vpop.f32.mrb[0].mxu0
      %3059 = vmatprep.mubr.bf16.mxu0 0
      %3060 = vmatmul.mubr.bf16.gmra.mrb[0].mxu0 %v2872
      %v3061 = vpop.f32.mrb[0].mxu0
      %v3062 = vadd.f32 0.0, %v3061
      %v3063 = vpop.f32.mrb[0].mxu0
      %v3064 = vpop.f32.mrb[0].mxu0
      %v3065 = vadd.f32 0.0, %v3064
      %v3066 = vpop.f32.mrb[0].mxu0
      %3067 = vmatprep.mubr.bf16.mxu0 0
      %3068 = vmatmul.mubr.bf16.gmra.mrb[0].mxu0 %v2875
      %v3069 = vpop.f32.mrb[0].mxu0
      %v3070 = vadd.f32 0.0, %v3069
      %v3071 = vpop.f32.mrb[0].mxu0
      %v3072 = vpop.f32.mrb[0].mxu0
      %v3073 = vadd.f32 0.0, %v3072
      %v3074 = vpop.f32.mrb[0].mxu0
      %3075 = vmatprep.mubr.bf16.mxu0 0
      %3076 = vmatmul.mubr.bf16.gmra.mrb[0].mxu0 %v2878
      %v3077 = vpop.f32.mrb[0].mxu0
      %v3078 = vadd.f32 0.0, %v3077
      %v3079 = vpop.f32.mrb[0].mxu0
      %v3080 = vpop.f32.mrb[0].mxu0
      %v3081 = vadd.f32 0.0, %v3080
      %v3082 = vpop.f32.mrb[0].mxu0
      %3083 = vmatprep.mubr.bf16.mxu0 0
      %3084 = vmatmul.mubr.bf16.gmra.mrb[0].mxu0 %v2881
      %v3085 = vpop.f32.mrb[0].mxu0
      %v3086 = vadd.f32 0.0, %v3085
      %v3087 = vpop.f32.mrb[0].mxu0
      %v3088 = vpop.f32.mrb[0].mxu0
      %v3089 = vadd.f32 0.0, %v3088
      %v3090 = vpop.f32.mrb[0].mxu0
      %3091 = vmatprep.mubr.bf16.mxu0 0
      %3092 = vmatmul.mubr.bf16.gmra.mrb[0].mxu0 %v2884
      %v3093 = vpop.f32.mrb[0].mxu0
      %v3094 = vadd.f32 0.0, %v3093
      %v3095 = vpop.f32.mrb[0].mxu0
      %v3096 = vpop.f32.mrb[0].mxu0
      %v3097 = vadd.f32 0.0, %v3096
      %v3098 = vpop.f32.mrb[0].mxu0
      %3099 = vmatprep.mubr.bf16.mxu0 0
      %3100 = vmatmul.mubr.bf16.gmra.mrb[0].mxu0 %v2887
      %v3101 = vpop.f32.mrb[0].mxu0
      %v3102 = vadd.f32 0.0, %v3101
      %v3103 = vpop.f32.mrb[0].mxu0
      %v3104 = vpop.f32.mrb[0].mxu0
      %v3105 = vadd.f32 0.0, %v3104
      %v3106 = vpop.f32.mrb[0].mxu0
      %3107 = vmatprep.mubr.bf16.mxu0 0
      %3108 = vmatmul.mubr.bf16.gmra.mrb[0].mxu0 %v2890
      %v3109 = vpop.f32.mrb[0].mxu0
      %v3110 = vadd.f32 0.0, %v3109
      %v3111 = vpop.f32.mrb[0].mxu0
      %v3112 = vpop.f32.mrb[0].mxu0
      %v3113 = vadd.f32 0.0, %v3112
      %v3114 = vpop.f32.mrb[0].mxu0
      %3115 = vmatprep.mubr.bf16.mxu0 0
      %3116 = vmatmul.mubr.bf16.gmra.mrb[0].mxu0 %v2893
      %v3117 = vpop.f32.mrb[0].mxu0
      %v3118 = vadd.f32 0.0, %v3117
      %v3119 = vpop.f32.mrb[0].mxu0
      %v3120 = vpop.f32.mrb[0].mxu0
      %v3121 = vadd.f32 0.0, %v3120
      %v3122 = vpop.f32.mrb[0].mxu0
      %3123 = vmatprep.mubr.bf16.mxu0 0
      %3124 = vmatmul.mubr.bf16.gmra.mrb[0].mxu0 %v2896
      %v3125 = vpop.f32.mrb[0].mxu0
      %v3126 = vadd.f32 0.0, %v3125
      %v3127 = vpop.f32.mrb[0].mxu0
      %v3128 = vpop.f32.mrb[0].mxu0
      %v3129 = vadd.f32 0.0, %v3128
      %v3130 = vpop.f32.mrb[0].mxu0
      %3131 = vmatprep.mubr.bf16.mxu0 0
      %3132 = vmatmul.mubr.bf16.gmra.mrb[0].mxu0 %v2899
      %v3133 = vpop.f32.mrb[0].mxu0
      %v3134 = vadd.f32 0.0, %v3133
      %v3135 = vpop.f32.mrb[0].mxu0
      %v3136 = vpop.f32.mrb[0].mxu0
      %v3137 = vadd.f32 0.0, %v3136
      %v3138 = vpop.f32.mrb[0].mxu0
      %3139 = vmatprep.mubr.bf16.mxu0 0
      %3140 = vmatmul.mubr.bf16.gmra.mrb[0].mxu0 %v2902
      %v3141 = vpop.f32.mrb[0].mxu0
      %v3142 = vadd.f32 0.0, %v3141
      %v3143 = vpop.f32.mrb[0].mxu0
      %v3144 = vpop.f32.mrb[0].mxu0
      %v3145 = vadd.f32 0.0, %v3144
      %v3146 = vpop.f32.mrb[0].mxu0
      %3147 = vmatprep.mubr.bf16.mxu0 0
      %3148 = vmatmul.mubr.bf16.gmra.mrb[0].mxu0 %v2905
      %v3149 = vpop.f32.mrb[0].mxu0
      %v3150 = vadd.f32 0.0, %v3149
      %v3151 = vpop.f32.mrb[0].mxu0
      %v3152 = vpop.f32.mrb[0].mxu0
      %v3153 = vadd.f32 0.0, %v3152
      %v3154 = vpop.f32.mrb[0].mxu0
      %3155 = vmatprep.mubr.bf16.mxu0 0
      %3156 = vmatmul.mubr.bf16.gmra.mrb[0].mxu0 %v2908
      %v3157 = vpop.f32.mrb[0].mxu0
      %v3158 = vadd.f32 0.0, %v3157
      %v3159 = vpop.f32.mrb[0].mxu0
      %v3160 = vpop.f32.mrb[0].mxu0
      %v3161 = vadd.f32 0.0, %v3160
      %v3162 = vpop.f32.mrb[0].mxu0
      %3163 = vmatprep.mubr.bf16.mxu0 0
      %3164 = vmatmul.mubr.bf16.gmra.mrb[0].mxu0 %v2911
      %v3165 = vpop.f32.mrb[0].mxu0
      %v3166 = vadd.f32 0.0, %v3165
      %v3167 = vpop.f32.mrb[0].mxu0
      %v3168 = vpop.f32.mrb[0].mxu0
      %v3169 = vadd.f32 0.0, %v3168
      %v3170 = vpop.f32.mrb[0].mxu0
      %3171 = vmatprep.mubr.bf16.mxu0 0
      %3172 = vmatmul.mubr.bf16.gmra.mrb[0].mxu0 %v2914
      %v3173 = vpop.f32.mrb[0].mxu0
      %v3174 = vadd.f32 0.0, %v3173
      %v3175 = vpop.f32.mrb[0].mxu0
      %v3176 = vpop.f32.mrb[0].mxu0
      %v3177 = vadd.f32 0.0, %v3176
      %v3178 = vpop.f32.mrb[0].mxu0
      %3179 = vmatprep.mubr.bf16.mxu0 0
      %3180 = vmatmul.mubr.bf16.gmra.mrb[0].mxu0 %v2917
      %v3181 = vpop.f32.mrb[0].mxu0
      %v3182 = vadd.f32 0.0, %v3181
      %v3183 = vpop.f32.mrb[0].mxu0
      %v3184 = vpop.f32.mrb[0].mxu0
      %v3185 = vadd.f32 0.0, %v3184
      %v3186 = vpop.f32.mrb[0].mxu0
      %3187 = vmatprep.mubr.bf16.mxu0 0
      %3188 = vmatmul.mubr.bf16.gmra.mrb[0].mxu0 %v2920
      %v3189 = vpop.f32.mrb[0].mxu0
      %v3190 = vadd.f32 0.0, %v3189
      %v3191 = vpop.f32.mrb[0].mxu0
      %v3192 = vpop.f32.mrb[0].mxu0
      %v3193 = vadd.f32 0.0, %v3192
      %v3194 = vpop.f32.mrb[0].mxu0
      %3195 = vmatprep.mubr.bf16.mxu0 0
      %3196 = vmatmul.mubr.bf16.gmra.mrb[0].mxu0 %v2923
      %v3197 = vpop.f32.mrb[0].mxu0
      %v3198 = vadd.f32 0.0, %v3197
      %v3199 = vpop.f32.mrb[0].mxu0
      %v3200 = vpop.f32.mrb[0].mxu0
      %v3201 = vadd.f32 0.0, %v3200
      %v3202 = vpop.f32.mrb[0].mxu0
      %3203 = vmatprep.mubr.bf16.mxu0 0
      %3204 = vmatmul.mubr.bf16.gmra.mrb[0].mxu0 %v2926
      %v3205 = vpop.f32.mrb[0].mxu0
      %v3206 = vadd.f32 0.0, %v3205
      %v3207 = vpop.f32.mrb[0].mxu0
      %v3208 = vpop.f32.mrb[0].mxu0
      %v3209 = vadd.f32 0.0, %v3208
      %v3210 = vpop.f32.mrb[0].mxu0
      %3211 = vmatprep.mubr.bf16.mxu0 0
      %3212 = vmatmul.mubr.bf16.gmra.mrb[0].mxu0 %v2929
      %v3213 = vpop.f32.mrb[0].mxu0
      %v3214 = vadd.f32 0.0, %v3213
      %v3215 = vpop.f32.mrb[0].mxu0
      %v3216 = vpop.f32.mrb[0].mxu0
      %v3217 = vadd.f32 0.0, %v3216
      %v3218 = vpop.f32.mrb[0].mxu0
      %3219 = vdwg.mxu0
      %v3220 = vmax.f32 %v2966, 0.0
      %v3221 = vmax.f32 %v2969, 0.0
      %v3222 = vmax.f32 %v2974, 0.0
      %v3223 = vmax.f32 %v2977, 0.0
      %v3224 = vmax.f32 %v2982, 0.0
      %v3225 = vmax.f32 %v2985, 0.0
      %v3226 = vmax.f32 %v2990, 0.0
      %v3227 = vmax.f32 %v2993, 0.0
      %v3228 = vmax.f32 %v2998, 0.0
      %v3229 = vmax.f32 %v3001, 0.0
      %v3230 = vmax.f32 %v3006, 0.0
      %v3231 = vmax.f32 %v3009, 0.0
      %v3232 = vmax.f32 %v3014, 0.0
      %v3233 = vmax.f32 %v3017, 0.0
      %v3234 = vmax.f32 %v3022, 0.0
      %v3235 = vmax.f32 %v3025, 0.0
      %v3236 = vmax.f32 %v3030, 0.0
      %v3237 = vmax.f32 %v3033, 0.0
      %v3238 = vmax.f32 %v3038, 0.0
      %v3239 = vmax.f32 %v3041, 0.0
      %v3240 = vmax.f32 %v3046, 0.0
      %v3241 = vmax.f32 %v3049, 0.0
      %v3242 = vmax.f32 %v3054, 0.0
      %v3243 = vmax.f32 %v3057, 0.0
      %v3244 = vmax.f32 %v3062, 0.0
      %v3245 = vmax.f32 %v3065, 0.0
      %v3246 = vmax.f32 %v3070, 0.0
      %v3247 = vmax.f32 %v3073, 0.0
      %v3248 = vmax.f32 %v3078, 0.0
      %v3249 = vmax.f32 %v3081, 0.0
      %v3250 = vmax.f32 %v3086, 0.0
      %v3251 = vmax.f32 %v3089, 0.0
      %v3252 = vmax.f32 %v3094, 0.0
      %v3253 = vmax.f32 %v3097, 0.0
      %v3254 = vmax.f32 %v3102, 0.0
      %v3255 = vmax.f32 %v3105, 0.0
      %v3256 = vmax.f32 %v3110, 0.0
      %v3257 = vmax.f32 %v3113, 0.0
      %v3258 = vmax.f32 %v3118, 0.0
      %v3259 = vmax.f32 %v3121, 0.0
      %v3260 = vmax.f32 %v3126, 0.0
      %v3261 = vmax.f32 %v3129, 0.0
      %v3262 = vmax.f32 %v3134, 0.0
      %v3263 = vmax.f32 %v3137, 0.0
      %v3264 = vmax.f32 %v3142, 0.0
      %v3265 = vmax.f32 %v3145, 0.0
      %v3266 = vmax.f32 %v3150, 0.0
      %v3267 = vmax.f32 %v3153, 0.0
      %v3268 = vmax.f32 %v3158, 0.0
      %v3269 = vmax.f32 %v3161, 0.0
      %v3270 = vmax.f32 %v3166, 0.0
      %v3271 = vmax.f32 %v3169, 0.0
      %v3272 = vmax.f32 %v3174, 0.0
      %v3273 = vmax.f32 %v3177, 0.0
      %v3274 = vmax.f32 %v3182, 0.0
      %v3275 = vmax.f32 %v3185, 0.0
      %v3276 = vmax.f32 %v3190, 0.0
      %v3277 = vmax.f32 %v3193, 0.0
      %v3278 = vmax.f32 %v3198, 0.0
      %v3279 = vmax.f32 %v3201, 0.0
      %v3280 = vmax.f32 %v3206, 0.0
      %v3281 = vmax.f32 %v3209, 0.0
      %v3282 = vmax.f32 %v3214, 0.0
      %v3283 = vmax.f32 %v3217, 0.0
      %v3284 = vpack.c.bf16 %v3221, %v3220
      %v3285 = vpack.c.bf16 %v3223, %v3222
      %v3286 = vpack.c.bf16 %v3225, %v3224
      %v3287 = vpack.c.bf16 %v3227, %v3226
      %v3288 = vpack.c.bf16 %v3229, %v3228
      %v3289 = vpack.c.bf16 %v3231, %v3230
      %v3290 = vpack.c.bf16 %v3233, %v3232
      %v3291 = vpack.c.bf16 %v3235, %v3234
      %v3292 = vpack.c.bf16 %v3237, %v3236
      %v3293 = vpack.c.bf16 %v3239, %v3238
      %v3294 = vpack.c.bf16 %v3241, %v3240
      %v3295 = vpack.c.bf16 %v3243, %v3242
      %v3296 = vpack.c.bf16 %v3245, %v3244
      %v3297 = vpack.c.bf16 %v3247, %v3246
      %v3298 = vpack.c.bf16 %v3249, %v3248
      %v3299 = vpack.c.bf16 %v3251, %v3250
      %v3300 = vpack.c.bf16 %v3253, %v3252
      %v3301 = vpack.c.bf16 %v3255, %v3254
      %v3302 = vpack.c.bf16 %v3257, %v3256
      %v3303 = vpack.c.bf16 %v3259, %v3258
      %v3304 = vpack.c.bf16 %v3261, %v3260
      %v3305 = vpack.c.bf16 %v3263, %v3262
      %v3306 = vpack.c.bf16 %v3265, %v3264
      %v3307 = vpack.c.bf16 %v3267, %v3266
      %v3308 = vpack.c.bf16 %v3269, %v3268
      %v3309 = vpack.c.bf16 %v3271, %v3270
      %v3310 = vpack.c.bf16 %v3273, %v3272
      %v3311 = vpack.c.bf16 %v3275, %v3274
      %v3312 = vpack.c.bf16 %v3277, %v3276
      %v3313 = vpack.c.bf16 %v3279, %v3278
      %v3314 = vpack.c.bf16 %v3281, %v3280
      %v3315 = vpack.c.bf16 %v3283, %v3282
      %v3316 = vld [vmem:[%s7] sm:$0xf]
      %v3317 = vld [vmem:[%s7 + $0x4] sm:$0xf]
      %v3318 = vld [vmem:[%s7 + $0x8] sm:$0xf]
      %v3319 = vld [vmem:[%s7 + $0xc] sm:$0xf]
      %v3320 = vld [vmem:[%s7 + $0x10] sm:$0xf]
      %v3321 = vld [vmem:[%s7 + $0x14] sm:$0xf]
      %v3322 = vld [vmem:[%s7 + $0x18] sm:$0xf]
      %v3323 = vld [vmem:[%s7 + $0x1c] sm:$0xf]
      %v3332 = vunpack.c.l.b16 %v3316
      %v3333 = vunpack.c.l.b16 %v3317
      %v3334 = vunpack.c.l.b16 %v3318
      %v3335 = vunpack.c.l.b16 %v3319
      %v3336 = vunpack.c.l.b16 %v3320
      %v3337 = vunpack.c.l.b16 %v3321
      %v3338 = vunpack.c.l.b16 %v3322
      %v3339 = vunpack.c.l.b16 %v3323
      %v3340 = vpack.c.b16 %v3333, %v3332
      %v3341 = vpack.c.b16 %v3335, %v3334
      %v3342 = vpack.c.b16 %v3337, %v3336
      %v3343 = vpack.c.b16 %v3339, %v3338
      %v3349 = vsel %vm1086, %v3284, 0
      %v3352 = vsel %vm1086, %v3285, 0
      %v3355 = vsel %vm1086, %v3286, 0
      %v3358 = vsel %vm1086, %v3287, 0
      %v3361 = vsel %vm1086, %v3288, 0
      %v3364 = vsel %vm1086, %v3289, 0
      %v3367 = vsel %vm1086, %v3290, 0
      %v3370 = vsel %vm1086, %v3291, 0
      %v3373 = vsel %vm1086, %v3292, 0
      %v3376 = vsel %vm1086, %v3293, 0
      %v3379 = vsel %vm1086, %v3294, 0
      %v3382 = vsel %vm1086, %v3295, 0
      %v3385 = vsel %vm1086, %v3296, 0
      %v3388 = vsel %vm1086, %v3297, 0
      %v3391 = vsel %vm1086, %v3298, 0
      %v3394 = vsel %vm1086, %v3299, 0
      %v3397 = vsel %vm1086, %v3300, 0
      %v3400 = vsel %vm1086, %v3301, 0
      %v3403 = vsel %vm1086, %v3302, 0
      %v3406 = vsel %vm1086, %v3303, 0
      %v3409 = vsel %vm1086, %v3304, 0
      %v3412 = vsel %vm1086, %v3305, 0
      %v3415 = vsel %vm1086, %v3306, 0
      %v3418 = vsel %vm1086, %v3307, 0
      %v3421 = vsel %vm1086, %v3308, 0
      %v3424 = vsel %vm1086, %v3309, 0
      %v3427 = vsel %vm1086, %v3310, 0
      %v3430 = vsel %vm1086, %v3311, 0
      %v3433 = vsel %vm1086, %v3312, 0
      %v3436 = vsel %vm1086, %v3313, 0
      %v3439 = vsel %vm1086, %v3314, 0
      %v3442 = vsel %vm1086, %v3315, 0
      %3444 = vmatprep.subr.bf16.mxu0 0
      %3445 = vmatpush1.bf16.msra.mxu0 %v3340
      %3446 = vmatprep.subr.bf16.mxu0 0
      %3447 = vmatpush1.bf16.msra.mxu0 %v3341
      %3448 = vmatprep.subr.bf16.mxu0 0
      %3449 = vmatpush1.bf16.msra.mxu0 %v3342
      %3450 = vmatprep.subr.bf16.mxu0 0
      %3451 = vmatpush1.bf16.msra.mxu0 %v3343
      %3452 = vmatprep.subr.bf16.mxu0 0
      %3453 = vmatpush1.bf16.msra.mxu0 0
      %3454 = vmatprep.subr.bf16.mxu0 0
      %3455 = vmatpush1.bf16.msra.mxu0 0
      %3456 = vmatprep.subr.bf16.mxu0 0
      %3457 = vmatpush1.bf16.msra.mxu0 0
      %3458 = vmatprep.subr.bf16.mxu0 0
      %3459 = vmatpush1.bf16.msra.mxu0 0
      %3460 = vmatprep.subr.bf16.mxu0 0
      %3461 = vmatpush1.bf16.msra.mxu0 0
      %3462 = vmatprep.subr.bf16.mxu0 0
      %3463 = vmatpush1.bf16.msra.mxu0 0
      %3464 = vmatprep.subr.bf16.mxu0 0
      %3465 = vmatpush1.bf16.msra.mxu0 0
      %3466 = vmatprep.subr.bf16.mxu0 0
      %3467 = vmatpush1.bf16.msra.mxu0 0
      %3468 = vmatprep.subr.bf16.mxu0 0
      %3469 = vmatpush1.bf16.msra.mxu0 0
      %3470 = vmatprep.subr.bf16.mxu0 0
      %3471 = vmatpush1.bf16.msra.mxu0 0
      %3472 = vmatprep.subr.bf16.mxu0 0
      %3473 = vmatpush1.bf16.msra.mxu0 0
      %3474 = vmatprep.subr.bf16.mxu0 0
      %3475 = vmatpush1.bf16.msra.mxu0 0
      %3476 = vmatprep.mubr.bf16.mxu0 0
      %3477 = vmatmul.mubr.bf16.gmra.mrb[0].mxu0 %v3349
      %v3478 = vpop.f32.mrb[0].mxu0
      %v3479 = vadd.f32 0.0, %v3478
      %v3480 = vpop.f32.mrb[0].mxu0
      %v3481 = vpop.f32.mrb[0].mxu0
      %v3482 = vadd.f32 0.0, %v3481
      %v3483 = vpop.f32.mrb[0].mxu0
      %3484 = vmatprep.mubr.bf16.mxu0 0
      %3485 = vmatmul.mubr.bf16.gmra.mrb[0].mxu0 %v3352
      %v3486 = vpop.f32.mrb[0].mxu0
      %v3487 = vadd.f32 0.0, %v3486
      %v3488 = vpop.f32.mrb[0].mxu0
      %v3489 = vpop.f32.mrb[0].mxu0
      %v3490 = vadd.f32 0.0, %v3489
      %v3491 = vpop.f32.mrb[0].mxu0
      %3492 = vmatprep.mubr.bf16.mxu0 0
      %3493 = vmatmul.mubr.bf16.gmra.mrb[0].mxu0 %v3355
      %v3494 = vpop.f32.mrb[0].mxu0
      %v3495 = vadd.f32 0.0, %v3494
      %v3496 = vpop.f32.mrb[0].mxu0
      %v3497 = vpop.f32.mrb[0].mxu0
      %v3498 = vadd.f32 0.0, %v3497
      %v3499 = vpop.f32.mrb[0].mxu0
      %3500 = vmatprep.mubr.bf16.mxu0 0
      %3501 = vmatmul.mubr.bf16.gmra.mrb[0].mxu0 %v3358
      %v3502 = vpop.f32.mrb[0].mxu0
      %v3503 = vadd.f32 0.0, %v3502
      %v3504 = vpop.f32.mrb[0].mxu0
      %v3505 = vpop.f32.mrb[0].mxu0
      %v3506 = vadd.f32 0.0, %v3505
      %v3507 = vpop.f32.mrb[0].mxu0
      %3508 = vmatprep.mubr.bf16.mxu0 0
      %3509 = vmatmul.mubr.bf16.gmra.mrb[0].mxu0 %v3361
      %v3510 = vpop.f32.mrb[0].mxu0
      %v3511 = vadd.f32 0.0, %v3510
      %v3512 = vpop.f32.mrb[0].mxu0
      %v3513 = vpop.f32.mrb[0].mxu0
      %v3514 = vadd.f32 0.0, %v3513
      %v3515 = vpop.f32.mrb[0].mxu0
      %3516 = vmatprep.mubr.bf16.mxu0 0
      %3517 = vmatmul.mubr.bf16.gmra.mrb[0].mxu0 %v3364
      %v3518 = vpop.f32.mrb[0].mxu0
      %v3519 = vadd.f32 0.0, %v3518
      %v3520 = vpop.f32.mrb[0].mxu0
      %v3521 = vpop.f32.mrb[0].mxu0
      %v3522 = vadd.f32 0.0, %v3521
      %v3523 = vpop.f32.mrb[0].mxu0
      %3524 = vmatprep.mubr.bf16.mxu0 0
      %3525 = vmatmul.mubr.bf16.gmra.mrb[0].mxu0 %v3367
      %v3526 = vpop.f32.mrb[0].mxu0
      %v3527 = vadd.f32 0.0, %v3526
      %v3528 = vpop.f32.mrb[0].mxu0
      %v3529 = vpop.f32.mrb[0].mxu0
      %v3530 = vadd.f32 0.0, %v3529
      %v3531 = vpop.f32.mrb[0].mxu0
      %3532 = vmatprep.mubr.bf16.mxu0 0
      %3533 = vmatmul.mubr.bf16.gmra.mrb[0].mxu0 %v3370
      %v3534 = vpop.f32.mrb[0].mxu0
      %v3535 = vadd.f32 0.0, %v3534
      %v3536 = vpop.f32.mrb[0].mxu0
      %v3537 = vpop.f32.mrb[0].mxu0
      %v3538 = vadd.f32 0.0, %v3537
      %v3539 = vpop.f32.mrb[0].mxu0
      %3540 = vmatprep.mubr.bf16.mxu0 0
      %3541 = vmatmul.mubr.bf16.gmra.mrb[0].mxu0 %v3373
      %v3542 = vpop.f32.mrb[0].mxu0
      %v3543 = vadd.f32 0.0, %v3542
      %v3544 = vpop.f32.mrb[0].mxu0
      %v3545 = vpop.f32.mrb[0].mxu0
      %v3546 = vadd.f32 0.0, %v3545
      %v3547 = vpop.f32.mrb[0].mxu0
      %3548 = vmatprep.mubr.bf16.mxu0 0
      %3549 = vmatmul.mubr.bf16.gmra.mrb[0].mxu0 %v3376
      %v3550 = vpop.f32.mrb[0].mxu0
      %v3551 = vadd.f32 0.0, %v3550
      %v3552 = vpop.f32.mrb[0].mxu0
      %v3553 = vpop.f32.mrb[0].mxu0
      %v3554 = vadd.f32 0.0, %v3553
      %v3555 = vpop.f32.mrb[0].mxu0
      %3556 = vmatprep.mubr.bf16.mxu0 0
      %3557 = vmatmul.mubr.bf16.gmra.mrb[0].mxu0 %v3379
      %v3558 = vpop.f32.mrb[0].mxu0
      %v3559 = vadd.f32 0.0, %v3558
      %v3560 = vpop.f32.mrb[0].mxu0
      %v3561 = vpop.f32.mrb[0].mxu0
      %v3562 = vadd.f32 0.0, %v3561
      %v3563 = vpop.f32.mrb[0].mxu0
      %3564 = vmatprep.mubr.bf16.mxu0 0
      %3565 = vmatmul.mubr.bf16.gmra.mrb[0].mxu0 %v3382
      %v3566 = vpop.f32.mrb[0].mxu0
      %v3567 = vadd.f32 0.0, %v3566
      %v3568 = vpop.f32.mrb[0].mxu0
      %v3569 = vpop.f32.mrb[0].mxu0
      %v3570 = vadd.f32 0.0, %v3569
      %v3571 = vpop.f32.mrb[0].mxu0
      %3572 = vmatprep.mubr.bf16.mxu0 0
      %3573 = vmatmul.mubr.bf16.gmra.mrb[0].mxu0 %v3385
      %v3574 = vpop.f32.mrb[0].mxu0
      %v3575 = vadd.f32 0.0, %v3574
      %v3576 = vpop.f32.mrb[0].mxu0
      %v3577 = vpop.f32.mrb[0].mxu0
      %v3578 = vadd.f32 0.0, %v3577
      %v3579 = vpop.f32.mrb[0].mxu0
      %3580 = vmatprep.mubr.bf16.mxu0 0
      %3581 = vmatmul.mubr.bf16.gmra.mrb[0].mxu0 %v3388
      %v3582 = vpop.f32.mrb[0].mxu0
      %v3583 = vadd.f32 0.0, %v3582
      %v3584 = vpop.f32.mrb[0].mxu0
      %v3585 = vpop.f32.mrb[0].mxu0
      %v3586 = vadd.f32 0.0, %v3585
      %v3587 = vpop.f32.mrb[0].mxu0
      %3588 = vmatprep.mubr.bf16.mxu0 0
      %3589 = vmatmul.mubr.bf16.gmra.mrb[0].mxu0 %v3391
      %v3590 = vpop.f32.mrb[0].mxu0
      %v3591 = vadd.f32 0.0, %v3590
      %v3592 = vpop.f32.mrb[0].mxu0
      %v3593 = vpop.f32.mrb[0].mxu0
      %v3594 = vadd.f32 0.0, %v3593
      %v3595 = vpop.f32.mrb[0].mxu0
      %3596 = vmatprep.mubr.bf16.mxu0 0
      %3597 = vmatmul.mubr.bf16.gmra.mrb[0].mxu0 %v3394
      %v3598 = vpop.f32.mrb[0].mxu0
      %v3599 = vadd.f32 0.0, %v3598
      %v3600 = vpop.f32.mrb[0].mxu0
      %v3601 = vpop.f32.mrb[0].mxu0
      %v3602 = vadd.f32 0.0, %v3601
      %v3603 = vpop.f32.mrb[0].mxu0
      %3604 = vmatprep.mubr.bf16.mxu0 0
      %3605 = vmatmul.mubr.bf16.gmra.mrb[0].mxu0 %v3397
      %v3606 = vpop.f32.mrb[0].mxu0
      %v3607 = vadd.f32 0.0, %v3606
      %v3608 = vpop.f32.mrb[0].mxu0
      %v3609 = vpop.f32.mrb[0].mxu0
      %v3610 = vadd.f32 0.0, %v3609
      %v3611 = vpop.f32.mrb[0].mxu0
      %3612 = vmatprep.mubr.bf16.mxu0 0
      %3613 = vmatmul.mubr.bf16.gmra.mrb[0].mxu0 %v3400
      %v3614 = vpop.f32.mrb[0].mxu0
      %v3615 = vadd.f32 0.0, %v3614
      %v3616 = vpop.f32.mrb[0].mxu0
      %v3617 = vpop.f32.mrb[0].mxu0
      %v3618 = vadd.f32 0.0, %v3617
      %v3619 = vpop.f32.mrb[0].mxu0
      %3620 = vmatprep.mubr.bf16.mxu0 0
      %3621 = vmatmul.mubr.bf16.gmra.mrb[0].mxu0 %v3403
      %v3622 = vpop.f32.mrb[0].mxu0
      %v3623 = vadd.f32 0.0, %v3622
      %v3624 = vpop.f32.mrb[0].mxu0
      %v3625 = vpop.f32.mrb[0].mxu0
      %v3626 = vadd.f32 0.0, %v3625
      %v3627 = vpop.f32.mrb[0].mxu0
      %3628 = vmatprep.mubr.bf16.mxu0 0
      %3629 = vmatmul.mubr.bf16.gmra.mrb[0].mxu0 %v3406
      %v3630 = vpop.f32.mrb[0].mxu0
      %v3631 = vadd.f32 0.0, %v3630
      %v3632 = vpop.f32.mrb[0].mxu0
      %v3633 = vpop.f32.mrb[0].mxu0
      %v3634 = vadd.f32 0.0, %v3633
      %v3635 = vpop.f32.mrb[0].mxu0
      %3636 = vmatprep.mubr.bf16.mxu0 0
      %3637 = vmatmul.mubr.bf16.gmra.mrb[0].mxu0 %v3409
      %v3638 = vpop.f32.mrb[0].mxu0
      %v3639 = vadd.f32 0.0, %v3638
      %v3640 = vpop.f32.mrb[0].mxu0
      %v3641 = vpop.f32.mrb[0].mxu0
      %v3642 = vadd.f32 0.0, %v3641
      %v3643 = vpop.f32.mrb[0].mxu0
      %3644 = vmatprep.mubr.bf16.mxu0 0
      %3645 = vmatmul.mubr.bf16.gmra.mrb[0].mxu0 %v3412
      %v3646 = vpop.f32.mrb[0].mxu0
      %v3647 = vadd.f32 0.0, %v3646
      %v3648 = vpop.f32.mrb[0].mxu0
      %v3649 = vpop.f32.mrb[0].mxu0
      %v3650 = vadd.f32 0.0, %v3649
      %v3651 = vpop.f32.mrb[0].mxu0
      %3652 = vmatprep.mubr.bf16.mxu0 0
      %3653 = vmatmul.mubr.bf16.gmra.mrb[0].mxu0 %v3415
      %v3654 = vpop.f32.mrb[0].mxu0
      %v3655 = vadd.f32 0.0, %v3654
      %v3656 = vpop.f32.mrb[0].mxu0
      %v3657 = vpop.f32.mrb[0].mxu0
      %v3658 = vadd.f32 0.0, %v3657
      %v3659 = vpop.f32.mrb[0].mxu0
      %3660 = vmatprep.mubr.bf16.mxu0 0
      %3661 = vmatmul.mubr.bf16.gmra.mrb[0].mxu0 %v3418
      %v3662 = vpop.f32.mrb[0].mxu0
      %v3663 = vadd.f32 0.0, %v3662
      %v3664 = vpop.f32.mrb[0].mxu0
      %v3665 = vpop.f32.mrb[0].mxu0
      %v3666 = vadd.f32 0.0, %v3665
      %v3667 = vpop.f32.mrb[0].mxu0
      %3668 = vmatprep.mubr.bf16.mxu0 0
      %3669 = vmatmul.mubr.bf16.gmra.mrb[0].mxu0 %v3421
      %v3670 = vpop.f32.mrb[0].mxu0
      %v3671 = vadd.f32 0.0, %v3670
      %v3672 = vpop.f32.mrb[0].mxu0
      %v3673 = vpop.f32.mrb[0].mxu0
      %v3674 = vadd.f32 0.0, %v3673
      %v3675 = vpop.f32.mrb[0].mxu0
      %3676 = vmatprep.mubr.bf16.mxu0 0
      %3677 = vmatmul.mubr.bf16.gmra.mrb[0].mxu0 %v3424
      %v3678 = vpop.f32.mrb[0].mxu0
      %v3679 = vadd.f32 0.0, %v3678
      %v3680 = vpop.f32.mrb[0].mxu0
      %v3681 = vpop.f32.mrb[0].mxu0
      %v3682 = vadd.f32 0.0, %v3681
      %v3683 = vpop.f32.mrb[0].mxu0
      %3684 = vmatprep.mubr.bf16.mxu0 0
      %3685 = vmatmul.mubr.bf16.gmra.mrb[0].mxu0 %v3427
      %v3686 = vpop.f32.mrb[0].mxu0
      %v3687 = vadd.f32 0.0, %v3686
      %v3688 = vpop.f32.mrb[0].mxu0
      %v3689 = vpop.f32.mrb[0].mxu0
      %v3690 = vadd.f32 0.0, %v3689
      %v3691 = vpop.f32.mrb[0].mxu0
      %3692 = vmatprep.mubr.bf16.mxu0 0
      %3693 = vmatmul.mubr.bf16.gmra.mrb[0].mxu0 %v3430
      %v3694 = vpop.f32.mrb[0].mxu0
      %v3695 = vadd.f32 0.0, %v3694
      %v3696 = vpop.f32.mrb[0].mxu0
      %v3697 = vpop.f32.mrb[0].mxu0
      %v3698 = vadd.f32 0.0, %v3697
      %v3699 = vpop.f32.mrb[0].mxu0
      %3700 = vmatprep.mubr.bf16.mxu0 0
      %3701 = vmatmul.mubr.bf16.gmra.mrb[0].mxu0 %v3433
      %v3702 = vpop.f32.mrb[0].mxu0
      %v3703 = vadd.f32 0.0, %v3702
      %v3704 = vpop.f32.mrb[0].mxu0
      %v3705 = vpop.f32.mrb[0].mxu0
      %v3706 = vadd.f32 0.0, %v3705
      %v3707 = vpop.f32.mrb[0].mxu0
      %3708 = vmatprep.mubr.bf16.mxu0 0
      %3709 = vmatmul.mubr.bf16.gmra.mrb[0].mxu0 %v3436
      %v3710 = vpop.f32.mrb[0].mxu0
      %v3711 = vadd.f32 0.0, %v3710
      %v3712 = vpop.f32.mrb[0].mxu0
      %v3713 = vpop.f32.mrb[0].mxu0
      %v3714 = vadd.f32 0.0, %v3713
      %v3715 = vpop.f32.mrb[0].mxu0
      %3716 = vmatprep.mubr.bf16.mxu0 0
      %3717 = vmatmul.mubr.bf16.gmra.mrb[0].mxu0 %v3439
      %v3718 = vpop.f32.mrb[0].mxu0
      %v3719 = vadd.f32 0.0, %v3718
      %v3720 = vpop.f32.mrb[0].mxu0
      %v3721 = vpop.f32.mrb[0].mxu0
      %v3722 = vadd.f32 0.0, %v3721
      %v3723 = vpop.f32.mrb[0].mxu0
      %3724 = vmatprep.mubr.bf16.mxu0 0
      %3725 = vmatmul.mubr.bf16.gmra.mrb[0].mxu0 %v3442
      %v3726 = vpop.f32.mrb[0].mxu0
      %v3727 = vadd.f32 0.0, %v3726
      %v3728 = vpop.f32.mrb[0].mxu0
      %v3729 = vpop.f32.mrb[0].mxu0
      %v3730 = vadd.f32 0.0, %v3729
      %v3731 = vpop.f32.mrb[0].mxu0
      %3732 = vdwg.mxu0
      %v3733 = vxor.u32 %v3479, 2147483648
      %v3734 = vxor.u32 %v3482, 2147483648
      %v3735 = vxor.u32 %v3487, 2147483648
      %v3736 = vxor.u32 %v3490, 2147483648
      %v3737 = vxor.u32 %v3495, 2147483648
      %v3738 = vxor.u32 %v3498, 2147483648
      %v3739 = vxor.u32 %v3503, 2147483648
      %v3740 = vxor.u32 %v3506, 2147483648
      %v3741 = vxor.u32 %v3511, 2147483648
      %v3742 = vxor.u32 %v3514, 2147483648
      %v3743 = vxor.u32 %v3519, 2147483648
      %v3744 = vxor.u32 %v3522, 2147483648
      %v3745 = vxor.u32 %v3527, 2147483648
      %v3746 = vxor.u32 %v3530, 2147483648
      %v3747 = vxor.u32 %v3535, 2147483648
      %v3748 = vxor.u32 %v3538, 2147483648
      %v3749 = vxor.u32 %v3543, 2147483648
      %v3750 = vxor.u32 %v3546, 2147483648
      %v3751 = vxor.u32 %v3551, 2147483648
      %v3752 = vxor.u32 %v3554, 2147483648
      %v3753 = vxor.u32 %v3559, 2147483648
      %v3754 = vxor.u32 %v3562, 2147483648
      %v3755 = vxor.u32 %v3567, 2147483648
      %v3756 = vxor.u32 %v3570, 2147483648
      %v3757 = vxor.u32 %v3575, 2147483648
      %v3758 = vxor.u32 %v3578, 2147483648
      %v3759 = vxor.u32 %v3583, 2147483648
      %v3760 = vxor.u32 %v3586, 2147483648
      %v3761 = vxor.u32 %v3591, 2147483648
      %v3762 = vxor.u32 %v3594, 2147483648
      %v3763 = vxor.u32 %v3599, 2147483648
      %v3764 = vxor.u32 %v3602, 2147483648
      %v3765 = vxor.u32 %v3607, 2147483648
      %v3766 = vxor.u32 %v3610, 2147483648
      %v3767 = vxor.u32 %v3615, 2147483648
      %v3768 = vxor.u32 %v3618, 2147483648
      %v3769 = vxor.u32 %v3623, 2147483648
      %v3770 = vxor.u32 %v3626, 2147483648
      %v3771 = vxor.u32 %v3631, 2147483648
      %v3772 = vxor.u32 %v3634, 2147483648
      %v3773 = vxor.u32 %v3639, 2147483648
      %v3774 = vxor.u32 %v3642, 2147483648
      %v3775 = vxor.u32 %v3647, 2147483648
      %v3776 = vxor.u32 %v3650, 2147483648
      %v3777 = vxor.u32 %v3655, 2147483648
      %v3778 = vxor.u32 %v3658, 2147483648
      %v3779 = vxor.u32 %v3663, 2147483648
      %v3780 = vxor.u32 %v3666, 2147483648
      %v3781 = vxor.u32 %v3671, 2147483648
      %v3782 = vxor.u32 %v3674, 2147483648
      %v3783 = vxor.u32 %v3679, 2147483648
      %v3784 = vxor.u32 %v3682, 2147483648
      %v3785 = vxor.u32 %v3687, 2147483648
      %v3786 = vxor.u32 %v3690, 2147483648
      %v3787 = vxor.u32 %v3695, 2147483648
      %v3788 = vxor.u32 %v3698, 2147483648
      %v3789 = vxor.u32 %v3703, 2147483648
      %v3790 = vxor.u32 %v3706, 2147483648
      %v3791 = vxor.u32 %v3711, 2147483648
      %v3792 = vxor.u32 %v3714, 2147483648
      %v3793 = vxor.u32 %v3719, 2147483648
      %v3794 = vxor.u32 %v3722, 2147483648
      %v3795 = vxor.u32 %v3727, 2147483648
      %v3796 = vxor.u32 %v3730, 2147483648
      %v3797 = vmul.f32 %v3733, 1.442695
      %v3798 = vpow.pop %v3797
      %v3799 = vmul.f32 %v3734, 1.442695
      %v3800 = vpow.pop %v3799
      %v3801 = vmul.f32 %v3735, 1.442695
      %v3802 = vpow.pop %v3801
      %v3803 = vmul.f32 %v3736, 1.442695
      %v3804 = vpow.pop %v3803
      %v3805 = vmul.f32 %v3737, 1.442695
      %v3806 = vpow.pop %v3805
      %v3807 = vmul.f32 %v3738, 1.442695
      %v3808 = vpow.pop %v3807
      %v3809 = vmul.f32 %v3739, 1.442695
      %v3810 = vpow.pop %v3809
      %v3811 = vmul.f32 %v3740, 1.442695
      %v3812 = vpow.pop %v3811
      %v3813 = vmul.f32 %v3741, 1.442695
      %v3814 = vpow.pop %v3813
      %v3815 = vmul.f32 %v3742, 1.442695
      %v3816 = vpow.pop %v3815
      %v3817 = vmul.f32 %v3743, 1.442695
      %v3818 = vpow.pop %v3817
      %v3819 = vmul.f32 %v3744, 1.442695
      %v3820 = vpow.pop %v3819
      %v3821 = vmul.f32 %v3745, 1.442695
      %v3822 = vpow.pop %v3821
      %v3823 = vmul.f32 %v3746, 1.442695
      %v3824 = vpow.pop %v3823
      %v3825 = vmul.f32 %v3747, 1.442695
      %v3826 = vpow.pop %v3825
      %v3827 = vmul.f32 %v3748, 1.442695
      %v3828 = vpow.pop %v3827
      %v3829 = vmul.f32 %v3749, 1.442695
      %v3830 = vpow.pop %v3829
      %v3831 = vmul.f32 %v3750, 1.442695
      %v3832 = vpow.pop %v3831
      %v3833 = vmul.f32 %v3751, 1.442695
      %v3834 = vpow.pop %v3833
      %v3835 = vmul.f32 %v3752, 1.442695
      %v3836 = vpow.pop %v3835
      %v3837 = vmul.f32 %v3753, 1.442695
      %v3838 = vpow.pop %v3837
      %v3839 = vmul.f32 %v3754, 1.442695
      %v3840 = vpow.pop %v3839
      %v3841 = vmul.f32 %v3755, 1.442695
      %v3842 = vpow.pop %v3841
      %v3843 = vmul.f32 %v3756, 1.442695
      %v3844 = vpow.pop %v3843
      %v3845 = vmul.f32 %v3757, 1.442695
      %v3846 = vpow.pop %v3845
      %v3847 = vmul.f32 %v3758, 1.442695
      %v3848 = vpow.pop %v3847
      %v3849 = vmul.f32 %v3759, 1.442695
      %v3850 = vpow.pop %v3849
      %v3851 = vmul.f32 %v3760, 1.442695
      %v3852 = vpow.pop %v3851
      %v3853 = vmul.f32 %v3761, 1.442695
      %v3854 = vpow.pop %v3853
      %v3855 = vmul.f32 %v3762, 1.442695
      %v3856 = vpow.pop %v3855
      %v3857 = vmul.f32 %v3763, 1.442695
      %v3858 = vpow.pop %v3857
      %v3859 = vmul.f32 %v3764, 1.442695
      %v3860 = vpow.pop %v3859
      %v3861 = vmul.f32 %v3765, 1.442695
      %v3862 = vpow.pop %v3861
      %v3863 = vmul.f32 %v3766, 1.442695
      %v3864 = vpow.pop %v3863
      %v3865 = vmul.f32 %v3767, 1.442695
      %v3866 = vpow.pop %v3865
      %v3867 = vmul.f32 %v3768, 1.442695
      %v3868 = vpow.pop %v3867
      %v3869 = vmul.f32 %v3769, 1.442695
      %v3870 = vpow.pop %v3869
      %v3871 = vmul.f32 %v3770, 1.442695
      %v3872 = vpow.pop %v3871
      %v3873 = vmul.f32 %v3771, 1.442695
      %v3874 = vpow.pop %v3873
      %v3875 = vmul.f32 %v3772, 1.442695
      %v3876 = vpow.pop %v3875
      %v3877 = vmul.f32 %v3773, 1.442695
      %v3878 = vpow.pop %v3877
      %v3879 = vmul.f32 %v3774, 1.442695
      %v3880 = vpow.pop %v3879
      %v3881 = vmul.f32 %v3775, 1.442695
      %v3882 = vpow.pop %v3881
      %v3883 = vmul.f32 %v3776, 1.442695
      %v3884 = vpow.pop %v3883
      %v3885 = vmul.f32 %v3777, 1.442695
      %v3886 = vpow.pop %v3885
      %v3887 = vmul.f32 %v3778, 1.442695
      %v3888 = vpow.pop %v3887
      %v3889 = vmul.f32 %v3779, 1.442695
      %v3890 = vpow.pop %v3889
      %v3891 = vmul.f32 %v3780, 1.442695
      %v3892 = vpow.pop %v3891
      %v3893 = vmul.f32 %v3781, 1.442695
      %v3894 = vpow.pop %v3893
      %v3895 = vmul.f32 %v3782, 1.442695
      %v3896 = vpow.pop %v3895
      %v3897 = vmul.f32 %v3783, 1.442695
      %v3898 = vpow.pop %v3897
      %v3899 = vmul.f32 %v3784, 1.442695
      %v3900 = vpow.pop %v3899
      %v3901 = vmul.f32 %v3785, 1.442695
      %v3902 = vpow.pop %v3901
      %v3903 = vmul.f32 %v3786, 1.442695
      %v3904 = vpow.pop %v3903
      %v3905 = vmul.f32 %v3787, 1.442695
      %v3906 = vpow.pop %v3905
      %v3907 = vmul.f32 %v3788, 1.442695
      %v3908 = vpow.pop %v3907
      %v3909 = vmul.f32 %v3789, 1.442695
      %v3910 = vpow.pop %v3909
      %v3911 = vmul.f32 %v3790, 1.442695
      %v3912 = vpow.pop %v3911
      %v3913 = vmul.f32 %v3791, 1.442695
      %v3914 = vpow.pop %v3913
      %v3915 = vmul.f32 %v3792, 1.442695
      %v3916 = vpow.pop %v3915
      %v3917 = vmul.f32 %v3793, 1.442695
      %v3918 = vpow.pop %v3917
      %v3919 = vmul.f32 %v3794, 1.442695
      %v3920 = vpow.pop %v3919
      %v3921 = vmul.f32 %v3795, 1.442695
      %v3922 = vpow.pop %v3921
      %v3923 = vmul.f32 %v3796, 1.442695
      %v3924 = vpow.pop %v3923
      %v3925 = vadd.f32 %v3798, 1.0
      %v3926 = vadd.f32 %v3800, 1.0
      %v3927 = vadd.f32 %v3802, 1.0
      %v3928 = vadd.f32 %v3804, 1.0
      %v3929 = vadd.f32 %v3806, 1.0
      %v3930 = vadd.f32 %v3808, 1.0
      %v3931 = vadd.f32 %v3810, 1.0
      %v3932 = vadd.f32 %v3812, 1.0
      %v3933 = vadd.f32 %v3814, 1.0
      %v3934 = vadd.f32 %v3816, 1.0
      %v3935 = vadd.f32 %v3818, 1.0
      %v3936 = vadd.f32 %v3820, 1.0
      %v3937 = vadd.f32 %v3822, 1.0
      %v3938 = vadd.f32 %v3824, 1.0
      %v3939 = vadd.f32 %v3826, 1.0
      %v3940 = vadd.f32 %v3828, 1.0
      %v3941 = vadd.f32 %v3830, 1.0
      %v3942 = vadd.f32 %v3832, 1.0
      %v3943 = vadd.f32 %v3834, 1.0
      %v3944 = vadd.f32 %v3836, 1.0
      %v3945 = vadd.f32 %v3838, 1.0
      %v3946 = vadd.f32 %v3840, 1.0
      %v3947 = vadd.f32 %v3842, 1.0
      %v3948 = vadd.f32 %v3844, 1.0
      %v3949 = vadd.f32 %v3846, 1.0
      %v3950 = vadd.f32 %v3848, 1.0
      %v3951 = vadd.f32 %v3850, 1.0
      %v3952 = vadd.f32 %v3852, 1.0
      %v3953 = vadd.f32 %v3854, 1.0
      %v3954 = vadd.f32 %v3856, 1.0
      %v3955 = vadd.f32 %v3858, 1.0
      %v3956 = vadd.f32 %v3860, 1.0
      %v3957 = vadd.f32 %v3862, 1.0
      %v3958 = vadd.f32 %v3864, 1.0
      %v3959 = vadd.f32 %v3866, 1.0
      %v3960 = vadd.f32 %v3868, 1.0
      %v3961 = vadd.f32 %v3870, 1.0
      %v3962 = vadd.f32 %v3872, 1.0
      %v3963 = vadd.f32 %v3874, 1.0
      %v3964 = vadd.f32 %v3876, 1.0
      %v3965 = vadd.f32 %v3878, 1.0
      %v3966 = vadd.f32 %v3880, 1.0
      %v3967 = vadd.f32 %v3882, 1.0
      %v3968 = vadd.f32 %v3884, 1.0
      %v3969 = vadd.f32 %v3886, 1.0
      %v3970 = vadd.f32 %v3888, 1.0
      %v3971 = vadd.f32 %v3890, 1.0
      %v3972 = vadd.f32 %v3892, 1.0
      %v3973 = vadd.f32 %v3894, 1.0
      %v3974 = vadd.f32 %v3896, 1.0
      %v3975 = vadd.f32 %v3898, 1.0
      %v3976 = vadd.f32 %v3900, 1.0
      %v3977 = vadd.f32 %v3902, 1.0
      %v3978 = vadd.f32 %v3904, 1.0
      %v3979 = vadd.f32 %v3906, 1.0
      %v3980 = vadd.f32 %v3908, 1.0
      %v3981 = vadd.f32 %v3910, 1.0
      %v3982 = vadd.f32 %v3912, 1.0
      %v3983 = vadd.f32 %v3914, 1.0
      %v3984 = vadd.f32 %v3916, 1.0
      %v3985 = vadd.f32 %v3918, 1.0
      %v3986 = vadd.f32 %v3920, 1.0
      %v3987 = vadd.f32 %v3922, 1.0
      %v3988 = vadd.f32 %v3924, 1.0
      %v3989 = vrcp.pop %v3925
      %v3990 = vmul.f32 1.0, %v3989
      %v3991 = vrcp.pop %v3926
      %v3992 = vmul.f32 1.0, %v3991
      %v3993 = vrcp.pop %v3927
      %v3994 = vmul.f32 1.0, %v3993
      %v3995 = vrcp.pop %v3928
      %v3996 = vmul.f32 1.0, %v3995
      %v3997 = vrcp.pop %v3929
      %v3998 = vmul.f32 1.0, %v3997
      %v3999 = vrcp.pop %v3930
      %v4000 = vmul.f32 1.0, %v3999
      %v4001 = vrcp.pop %v3931
      %v4002 = vmul.f32 1.0, %v4001
      %v4003 = vrcp.pop %v3932
      %v4004 = vmul.f32 1.0, %v4003
      %v4005 = vrcp.pop %v3933
      %v4006 = vmul.f32 1.0, %v4005
      %v4007 = vrcp.pop %v3934
      %v4008 = vmul.f32 1.0, %v4007
      %v4009 = vrcp.pop %v3935
      %v4010 = vmul.f32 1.0, %v4009
      %v4011 = vrcp.pop %v3936
      %v4012 = vmul.f32 1.0, %v4011
      %v4013 = vrcp.pop %v3937
      %v4014 = vmul.f32 1.0, %v4013
      %v4015 = vrcp.pop %v3938
      %v4016 = vmul.f32 1.0, %v4015
      %v4017 = vrcp.pop %v3939
      %v4018 = vmul.f32 1.0, %v4017
      %v4019 = vrcp.pop %v3940
      %v4020 = vmul.f32 1.0, %v4019
      %v4021 = vrcp.pop %v3941
      %v4022 = vmul.f32 1.0, %v4021
      %v4023 = vrcp.pop %v3942
      %v4024 = vmul.f32 1.0, %v4023
      %v4025 = vrcp.pop %v3943
      %v4026 = vmul.f32 1.0, %v4025
      %v4027 = vrcp.pop %v3944
      %v4028 = vmul.f32 1.0, %v4027
      %v4029 = vrcp.pop %v3945
      %v4030 = vmul.f32 1.0, %v4029
      %v4031 = vrcp.pop %v3946
      %v4032 = vmul.f32 1.0, %v4031
      %v4033 = vrcp.pop %v3947
      %v4034 = vmul.f32 1.0, %v4033
      %v4035 = vrcp.pop %v3948
      %v4036 = vmul.f32 1.0, %v4035
      %v4037 = vrcp.pop %v3949
      %v4038 = vmul.f32 1.0, %v4037
      %v4039 = vrcp.pop %v3950
      %v4040 = vmul.f32 1.0, %v4039
      %v4041 = vrcp.pop %v3951
      %v4042 = vmul.f32 1.0, %v4041
      %v4043 = vrcp.pop %v3952
      %v4044 = vmul.f32 1.0, %v4043
      %v4045 = vrcp.pop %v3953
      %v4046 = vmul.f32 1.0, %v4045
      %v4047 = vrcp.pop %v3954
      %v4048 = vmul.f32 1.0, %v4047
      %v4049 = vrcp.pop %v3955
      %v4050 = vmul.f32 1.0, %v4049
      %v4051 = vrcp.pop %v3956
      %v4052 = vmul.f32 1.0, %v4051
      %v4053 = vrcp.pop %v3957
      %v4054 = vmul.f32 1.0, %v4053
      %v4055 = vrcp.pop %v3958
      %v4056 = vmul.f32 1.0, %v4055
      %v4057 = vrcp.pop %v3959
      %v4058 = vmul.f32 1.0, %v4057
      %v4059 = vrcp.pop %v3960
      %v4060 = vmul.f32 1.0, %v4059
      %v4061 = vrcp.pop %v3961
      %v4062 = vmul.f32 1.0, %v4061
      %v4063 = vrcp.pop %v3962
      %v4064 = vmul.f32 1.0, %v4063
      %v4065 = vrcp.pop %v3963
      %v4066 = vmul.f32 1.0, %v4065
      %v4067 = vrcp.pop %v3964
      %v4068 = vmul.f32 1.0, %v4067
      %v4069 = vrcp.pop %v3965
      %v4070 = vmul.f32 1.0, %v4069
      %v4071 = vrcp.pop %v3966
      %v4072 = vmul.f32 1.0, %v4071
      %v4073 = vrcp.pop %v3967
      %v4074 = vmul.f32 1.0, %v4073
      %v4075 = vrcp.pop %v3968
      %v4076 = vmul.f32 1.0, %v4075
      %v4077 = vrcp.pop %v3969
      %v4078 = vmul.f32 1.0, %v4077
      %v4079 = vrcp.pop %v3970
      %v4080 = vmul.f32 1.0, %v4079
      %v4081 = vrcp.pop %v3971
      %v4082 = vmul.f32 1.0, %v4081
      %v4083 = vrcp.pop %v3972
      %v4084 = vmul.f32 1.0, %v4083
      %v4085 = vrcp.pop %v3973
      %v4086 = vmul.f32 1.0, %v4085
      %v4087 = vrcp.pop %v3974
      %v4088 = vmul.f32 1.0, %v4087
      %v4089 = vrcp.pop %v3975
      %v4090 = vmul.f32 1.0, %v4089
      %v4091 = vrcp.pop %v3976
      %v4092 = vmul.f32 1.0, %v4091
      %v4093 = vrcp.pop %v3977
      %v4094 = vmul.f32 1.0, %v4093
      %v4095 = vrcp.pop %v3978
      %v4096 = vmul.f32 1.0, %v4095
      %v4097 = vrcp.pop %v3979
      %v4098 = vmul.f32 1.0, %v4097
      %v4099 = vrcp.pop %v3980
      %v4100 = vmul.f32 1.0, %v4099
      %v4101 = vrcp.pop %v3981
      %v4102 = vmul.f32 1.0, %v4101
      %v4103 = vrcp.pop %v3982
      %v4104 = vmul.f32 1.0, %v4103
      %v4105 = vrcp.pop %v3983
      %v4106 = vmul.f32 1.0, %v4105
      %v4107 = vrcp.pop %v3984
      %v4108 = vmul.f32 1.0, %v4107
      %v4109 = vrcp.pop %v3985
      %v4110 = vmul.f32 1.0, %v4109
      %v4111 = vrcp.pop %v3986
      %v4112 = vmul.f32 1.0, %v4111
      %v4113 = vrcp.pop %v3987
      %v4114 = vmul.f32 1.0, %v4113
      %v4115 = vrcp.pop %v3988
      %v4116 = vmul.f32 1.0, %v4115
      %4181 = vrot.lane.b32.xlu0 %v1537, 3
      %v4182 = vpop.permute.xlu0 %4181
      %4183 = vrot.lane.b32.xlu0 %v1539, 3
      %v4184 = vpop.permute.xlu0 %4183
      %4185 = vrot.lane.b32.xlu0 %v1541, 3
      %v4186 = vpop.permute.xlu0 %4185
      %4187 = vrot.lane.b32.xlu0 %v1543, 3
      %v4188 = vpop.permute.xlu0 %4187
      %4189 = vrot.lane.b32.xlu0 %v1545, 3
      %v4190 = vpop.permute.xlu0 %4189
      %4191 = vrot.lane.b32.xlu0 %v1547, 3
      %v4192 = vpop.permute.xlu0 %4191
      %4193 = vrot.lane.b32.xlu0 %v1549, 3
      %v4194 = vpop.permute.xlu0 %4193
      %4195 = vrot.lane.b32.xlu0 %v1551, 3
      %v4196 = vpop.permute.xlu0 %4195
      %4197 = vrot.lane.b32.xlu0 %v1553, 3
      %v4198 = vpop.permute.xlu0 %4197
      %4199 = vrot.lane.b32.xlu0 %v1555, 3
      %v4200 = vpop.permute.xlu0 %4199
      %4201 = vrot.lane.b32.xlu0 %v1557, 3
      %v4202 = vpop.permute.xlu0 %4201
      %4203 = vrot.lane.b32.xlu0 %v1559, 3
      %v4204 = vpop.permute.xlu0 %4203
      %4205 = vrot.lane.b32.xlu0 %v1561, 3
      %v4206 = vpop.permute.xlu0 %4205
      %4207 = vrot.lane.b32.xlu0 %v1563, 3
      %v4208 = vpop.permute.xlu0 %4207
      %4209 = vrot.lane.b32.xlu0 %v1565, 3
      %v4210 = vpop.permute.xlu0 %4209
      %4211 = vrot.lane.b32.xlu0 %v1567, 3
      %v4212 = vpop.permute.xlu0 %4211
      %4213 = vrot.lane.b32.xlu0 %v1569, 3
      %v4214 = vpop.permute.xlu0 %4213
      %4215 = vrot.lane.b32.xlu0 %v1571, 3
      %v4216 = vpop.permute.xlu0 %4215
      %4217 = vrot.lane.b32.xlu0 %v1573, 3
      %v4218 = vpop.permute.xlu0 %4217
      %4219 = vrot.lane.b32.xlu0 %v1575, 3
      %v4220 = vpop.permute.xlu0 %4219
      %4221 = vrot.lane.b32.xlu0 %v1577, 3
      %v4222 = vpop.permute.xlu0 %4221
      %4223 = vrot.lane.b32.xlu0 %v1579, 3
      %v4224 = vpop.permute.xlu0 %4223
      %4225 = vrot.lane.b32.xlu0 %v1581, 3
      %v4226 = vpop.permute.xlu0 %4225
      %4227 = vrot.lane.b32.xlu0 %v1583, 3
      %v4228 = vpop.permute.xlu0 %4227
      %4229 = vrot.lane.b32.xlu0 %v1585, 3
      %v4230 = vpop.permute.xlu0 %4229
      %4231 = vrot.lane.b32.xlu0 %v1587, 3
      %v4232 = vpop.permute.xlu0 %4231
      %4233 = vrot.lane.b32.xlu0 %v1589, 3
      %v4234 = vpop.permute.xlu0 %4233
      %4235 = vrot.lane.b32.xlu0 %v1591, 3
      %v4236 = vpop.permute.xlu0 %4235
      %4237 = vrot.lane.b32.xlu0 %v1593, 3
      %v4238 = vpop.permute.xlu0 %4237
      %4239 = vrot.lane.b32.xlu0 %v1595, 3
      %v4240 = vpop.permute.xlu0 %4239
      %4241 = vrot.lane.b32.xlu0 %v1597, 3
      %v4242 = vpop.permute.xlu0 %4241
      %4243 = vrot.lane.b32.xlu0 %v1599, 3
      %v4244 = vpop.permute.xlu0 %4243
      %4245 = vrot.lane.b32.xlu0 %v1601, 3
      %v4246 = vpop.permute.xlu0 %4245
      %4247 = vrot.lane.b32.xlu0 %v1603, 3
      %v4248 = vpop.permute.xlu0 %4247
      %4249 = vrot.lane.b32.xlu0 %v1605, 3
      %v4250 = vpop.permute.xlu0 %4249
      %4251 = vrot.lane.b32.xlu0 %v1607, 3
      %v4252 = vpop.permute.xlu0 %4251
      %4253 = vrot.lane.b32.xlu0 %v1609, 3
      %v4254 = vpop.permute.xlu0 %4253
      %4255 = vrot.lane.b32.xlu0 %v1611, 3
      %v4256 = vpop.permute.xlu0 %4255
      %4257 = vrot.lane.b32.xlu0 %v1613, 3
      %v4258 = vpop.permute.xlu0 %4257
      %4259 = vrot.lane.b32.xlu0 %v1615, 3
      %v4260 = vpop.permute.xlu0 %4259
      %4261 = vrot.lane.b32.xlu0 %v1617, 3
      %v4262 = vpop.permute.xlu0 %4261
      %4263 = vrot.lane.b32.xlu0 %v1619, 3
      %v4264 = vpop.permute.xlu0 %4263
      %4265 = vrot.lane.b32.xlu0 %v1621, 3
      %v4266 = vpop.permute.xlu0 %4265
      %4267 = vrot.lane.b32.xlu0 %v1623, 3
      %v4268 = vpop.permute.xlu0 %4267
      %4269 = vrot.lane.b32.xlu0 %v1625, 3
      %v4270 = vpop.permute.xlu0 %4269
      %4271 = vrot.lane.b32.xlu0 %v1627, 3
      %v4272 = vpop.permute.xlu0 %4271
      %4273 = vrot.lane.b32.xlu0 %v1629, 3
      %v4274 = vpop.permute.xlu0 %4273
      %4275 = vrot.lane.b32.xlu0 %v1631, 3
      %v4276 = vpop.permute.xlu0 %4275
      %4277 = vrot.lane.b32.xlu0 %v1633, 3
      %v4278 = vpop.permute.xlu0 %4277
      %4279 = vrot.lane.b32.xlu0 %v1635, 3
      %v4280 = vpop.permute.xlu0 %4279
      %4281 = vrot.lane.b32.xlu0 %v1637, 3
      %v4282 = vpop.permute.xlu0 %4281
      %4283 = vrot.lane.b32.xlu0 %v1639, 3
      %v4284 = vpop.permute.xlu0 %4283
      %4285 = vrot.lane.b32.xlu0 %v1641, 3
      %v4286 = vpop.permute.xlu0 %4285
      %4287 = vrot.lane.b32.xlu0 %v1643, 3
      %v4288 = vpop.permute.xlu0 %4287
      %4289 = vrot.lane.b32.xlu0 %v1645, 3
      %v4290 = vpop.permute.xlu0 %4289
      %4291 = vrot.lane.b32.xlu0 %v1647, 3
      %v4292 = vpop.permute.xlu0 %4291
      %4293 = vrot.lane.b32.xlu0 %v1649, 3
      %v4294 = vpop.permute.xlu0 %4293
      %4295 = vrot.lane.b32.xlu0 %v1651, 3
      %v4296 = vpop.permute.xlu0 %4295
      %4297 = vrot.lane.b32.xlu0 %v1653, 3
      %v4298 = vpop.permute.xlu0 %4297
      %4299 = vrot.lane.b32.xlu0 %v1655, 3
      %v4300 = vpop.permute.xlu0 %4299
      %4301 = vrot.lane.b32.xlu0 %v1657, 3
      %v4302 = vpop.permute.xlu0 %4301
      %4303 = vrot.lane.b32.xlu0 %v1659, 3
      %v4304 = vpop.permute.xlu0 %4303
      %4305 = vrot.lane.b32.xlu0 %v1661, 3
      %v4306 = vpop.permute.xlu0 %4305
      %4307 = vrot.lane.b32.xlu0 %v1663, 3
      %v4308 = vpop.permute.xlu0 %4307
      %vm4373 = vcmask 23552
      %v4374 = vsel %vm4373, %v3990, %v4182
      %v4375 = vsel %vm4373, %v3992, %v4184
      %v4376 = vsel %vm4373, %v3994, %v4186
      %v4377 = vsel %vm4373, %v3996, %v4188
      %v4378 = vsel %vm4373, %v3998, %v4190
      %v4379 = vsel %vm4373, %v4000, %v4192
      %v4380 = vsel %vm4373, %v4002, %v4194
      %v4381 = vsel %vm4373, %v4004, %v4196
      %v4382 = vsel %vm4373, %v4006, %v4198
      %v4383 = vsel %vm4373, %v4008, %v4200
      %v4384 = vsel %vm4373, %v4010, %v4202
      %v4385 = vsel %vm4373, %v4012, %v4204
      %v4386 = vsel %vm4373, %v4014, %v4206
      %v4387 = vsel %vm4373, %v4016, %v4208
      %v4388 = vsel %vm4373, %v4018, %v4210
      %v4389 = vsel %vm4373, %v4020, %v4212
      %v4390 = vsel %vm4373, %v4022, %v4214
      %v4391 = vsel %vm4373, %v4024, %v4216
      %v4392 = vsel %vm4373, %v4026, %v4218
      %v4393 = vsel %vm4373, %v4028, %v4220
      %v4394 = vsel %vm4373, %v4030, %v4222
      %v4395 = vsel %vm4373, %v4032, %v4224
      %v4396 = vsel %vm4373, %v4034, %v4226
      %v4397 = vsel %vm4373, %v4036, %v4228
      %v4398 = vsel %vm4373, %v4038, %v4230
      %v4399 = vsel %vm4373, %v4040, %v4232
      %v4400 = vsel %vm4373, %v4042, %v4234
      %v4401 = vsel %vm4373, %v4044, %v4236
      %v4402 = vsel %vm4373, %v4046, %v4238
      %v4403 = vsel %vm4373, %v4048, %v4240
      %v4404 = vsel %vm4373, %v4050, %v4242
      %v4405 = vsel %vm4373, %v4052, %v4244
      %v4406 = vsel %vm4373, %v4054, %v4246
      %v4407 = vsel %vm4373, %v4056, %v4248
      %v4408 = vsel %vm4373, %v4058, %v4250
      %v4409 = vsel %vm4373, %v4060, %v4252
      %v4410 = vsel %vm4373, %v4062, %v4254
      %v4411 = vsel %vm4373, %v4064, %v4256
      %v4412 = vsel %vm4373, %v4066, %v4258
      %v4413 = vsel %vm4373, %v4068, %v4260
      %v4414 = vsel %vm4373, %v4070, %v4262
      %v4415 = vsel %vm4373, %v4072, %v4264
      %v4416 = vsel %vm4373, %v4074, %v4266
      %v4417 = vsel %vm4373, %v4076, %v4268
      %v4418 = vsel %vm4373, %v4078, %v4270
      %v4419 = vsel %vm4373, %v4080, %v4272
      %v4420 = vsel %vm4373, %v4082, %v4274
      %v4421 = vsel %vm4373, %v4084, %v4276
      %v4422 = vsel %vm4373, %v4086, %v4278
      %v4423 = vsel %vm4373, %v4088, %v4280
      %v4424 = vsel %vm4373, %v4090, %v4282
      %v4425 = vsel %vm4373, %v4092, %v4284
      %v4426 = vsel %vm4373, %v4094, %v4286
      %v4427 = vsel %vm4373, %v4096, %v4288
      %v4428 = vsel %vm4373, %v4098, %v4290
      %v4429 = vsel %vm4373, %v4100, %v4292
      %v4430 = vsel %vm4373, %v4102, %v4294
      %v4431 = vsel %vm4373, %v4104, %v4296
      %v4432 = vsel %vm4373, %v4106, %v4298
      %v4433 = vsel %vm4373, %v4108, %v4300
      %v4434 = vsel %vm4373, %v4110, %v4302
      %v4435 = vsel %vm4373, %v4112, %v4304
      %v4436 = vsel %vm4373, %v4114, %v4306
      %v4437 = vsel %vm4373, %v4116, %v4308
      %vm4438 = vcmask 31744
      %4439 = vst.msk [vmem:[%s329] sm:$0xff] %vm4438, %v4374
      %4440 = vst.msk [vmem:[%s329 + $0x8] sm:$0xff] %vm4438, %v4375
      %4441 = vst.msk [vmem:[%s329 + $0x10] sm:$0xff] %vm4438, %v4376
      %4442 = vst.msk [vmem:[%s329 + $0x18] sm:$0xff] %vm4438, %v4377
      %4443 = vst.msk [vmem:[%s329 + $0x20] sm:$0xff] %vm4438, %v4378
      %4444 = vst.msk [vmem:[%s329 + $0x28] sm:$0xff] %vm4438, %v4379
      %4445 = vst.msk [vmem:[%s329 + $0x30] sm:$0xff] %vm4438, %v4380
      %4446 = vst.msk [vmem:[%s329 + $0x38] sm:$0xff] %vm4438, %v4381
      %4447 = vst.msk [vmem:[%s329 + $0x40] sm:$0xff] %vm4438, %v4382
      %4448 = vst.msk [vmem:[%s329 + $0x48] sm:$0xff] %vm4438, %v4383
      %4449 = vst.msk [vmem:[%s329 + $0x50] sm:$0xff] %vm4438, %v4384
      %4450 = vst.msk [vmem:[%s329 + $0x58] sm:$0xff] %vm4438, %v4385
      %4451 = vst.msk [vmem:[%s329 + $0x60] sm:$0xff] %vm4438, %v4386
      %4452 = vst.msk [vmem:[%s329 + $0x68] sm:$0xff] %vm4438, %v4387
      %4453 = vst.msk [vmem:[%s329 + $0x70] sm:$0xff] %vm4438, %v4388
      %4454 = vst.msk [vmem:[%s329 + $0x78] sm:$0xff] %vm4438, %v4389
      %4455 = vst.msk [vmem:[%s329 + $0x80] sm:$0xff] %vm4438, %v4390
      %4456 = vst.msk [vmem:[%s329 + $0x88] sm:$0xff] %vm4438, %v4391
      %4457 = vst.msk [vmem:[%s329 + $0x90] sm:$0xff] %vm4438, %v4392
      %4458 = vst.msk [vmem:[%s329 + $0x98] sm:$0xff] %vm4438, %v4393
      %4459 = vst.msk [vmem:[%s329 + $0xa0] sm:$0xff] %vm4438, %v4394
      %4460 = vst.msk [vmem:[%s329 + $0xa8] sm:$0xff] %vm4438, %v4395
      %4461 = vst.msk [vmem:[%s329 + $0xb0] sm:$0xff] %vm4438, %v4396
      %4462 = vst.msk [vmem:[%s329 + $0xb8] sm:$0xff] %vm4438, %v4397
      %4463 = vst.msk [vmem:[%s329 + $0xc0] sm:$0xff] %vm4438, %v4398
      %4464 = vst.msk [vmem:[%s329 + $0xc8] sm:$0xff] %vm4438, %v4399
      %4465 = vst.msk [vmem:[%s329 + $0xd0] sm:$0xff] %vm4438, %v4400
      %4466 = vst.msk [vmem:[%s329 + $0xd8] sm:$0xff] %vm4438, %v4401
      %4467 = vst.msk [vmem:[%s329 + $0xe0] sm:$0xff] %vm4438, %v4402
      %4468 = vst.msk [vmem:[%s329 + $0xe8] sm:$0xff] %vm4438, %v4403
      %4469 = vst.msk [vmem:[%s329 + $0xf0] sm:$0xff] %vm4438, %v4404
      %4470 = vst.msk [vmem:[%s329 + $0xf8] sm:$0xff] %vm4438, %v4405
      %4471 = vst.msk [vmem:[%s329 + $0x100] sm:$0xff] %vm4438, %v4406
      %4472 = vst.msk [vmem:[%s329 + $0x108] sm:$0xff] %vm4438, %v4407
      %4473 = vst.msk [vmem:[%s329 + $0x110] sm:$0xff] %vm4438, %v4408
      %4474 = vst.msk [vmem:[%s329 + $0x118] sm:$0xff] %vm4438, %v4409
      %4475 = vst.msk [vmem:[%s329 + $0x120] sm:$0xff] %vm4438, %v4410
      %4476 = vst.msk [vmem:[%s329 + $0x128] sm:$0xff] %vm4438, %v4411
      %4477 = vst.msk [vmem:[%s329 + $0x130] sm:$0xff] %vm4438, %v4412
      %4478 = vst.msk [vmem:[%s329 + $0x138] sm:$0xff] %vm4438, %v4413
      %4479 = vst.msk [vmem:[%s329 + $0x140] sm:$0xff] %vm4438, %v4414
      %4480 = vst.msk [vmem:[%s329 + $0x148] sm:$0xff] %vm4438, %v4415
      %4481 = vst.msk [vmem:[%s329 + $0x150] sm:$0xff] %vm4438, %v4416
      %4482 = vst.msk [vmem:[%s329 + $0x158] sm:$0xff] %vm4438, %v4417
      %4483 = vst.msk [vmem:[%s329 + $0x160] sm:$0xff] %vm4438, %v4418
      %4484 = vst.msk [vmem:[%s329 + $0x168] sm:$0xff] %vm4438, %v4419
      %4485 = vst.msk [vmem:[%s329 + $0x170] sm:$0xff] %vm4438, %v4420
      %4486 = vst.msk [vmem:[%s329 + $0x178] sm:$0xff] %vm4438, %v4421
      %4487 = vst.msk [vmem:[%s329 + $0x180] sm:$0xff] %vm4438, %v4422
      %4488 = vst.msk [vmem:[%s329 + $0x188] sm:$0xff] %vm4438, %v4423
      %4489 = vst.msk [vmem:[%s329 + $0x190] sm:$0xff] %vm4438, %v4424
      %4490 = vst.msk [vmem:[%s329 + $0x198] sm:$0xff] %vm4438, %v4425
      %4491 = vst.msk [vmem:[%s329 + $0x1a0] sm:$0xff] %vm4438, %v4426
      %4492 = vst.msk [vmem:[%s329 + $0x1a8] sm:$0xff] %vm4438, %v4427
      %4493 = vst.msk [vmem:[%s329 + $0x1b0] sm:$0xff] %vm4438, %v4428
      %4494 = vst.msk [vmem:[%s329 + $0x1b8] sm:$0xff] %vm4438, %v4429
      %4495 = vst.msk [vmem:[%s329 + $0x1c0] sm:$0xff] %vm4438, %v4430
      %4496 = vst.msk [vmem:[%s329 + $0x1c8] sm:$0xff] %vm4438, %v4431
      %4497 = vst.msk [vmem:[%s329 + $0x1d0] sm:$0xff] %vm4438, %v4432
      %4498 = vst.msk [vmem:[%s329 + $0x1d8] sm:$0xff] %vm4438, %v4433
      %4499 = vst.msk [vmem:[%s329 + $0x1e0] sm:$0xff] %vm4438, %v4434
      %4500 = vst.msk [vmem:[%s329 + $0x1e8] sm:$0xff] %vm4438, %v4435
      %4501 = vst.msk [vmem:[%s329 + $0x1f0] sm:$0xff] %vm4438, %v4436
      %4502 = vst.msk [vmem:[%s329 + $0x1f8] sm:$0xff] %vm4438, %v4437
      %s4503 = smul.u32 64, %s19
      %p4504 = scmp.lt.s32.totalorder %s4503, 511
      %s4505 = scalar_select %p4504, %s4503, 511
      %s4506 = smul.addr %s4505, 8
      %s4507 = scalar_lea.vmem %s8, %s4506
      // Predicated region
      $region53: #{baradiance_field_forward.1} parent=51 // pred_check
        %p4508 = pneg %p215
      $region54: #{baradiance_field_forward.1} parent=51 // pred_check_branch
        %4510 = sbr.rel (%p4508) target = $region56
      $region55: #{baradiance_field_forward.1} parent=51 // pred_region
        %s4511 = smul.u32 64, %s19
      $region56: #{baradiance_field_forward.1} parent=51 // pred_fallthru
        _
    $region52: #{baradiance_field_forward.1} parent=5 // pred_fallthru
      _
    %p4512 = scmp.le.s32.totalorder 2, %s14
    // Predicated region
    $region57: #{baradiance_field_forward.1} parent=5 // pred_check
      %p4513 = pneg %p4512
    $region58: #{baradiance_field_forward.1} parent=5 // pred_check_branch
      %4515 = sbr.rel (%p4513) target = $region60
    $region59: #{baradiance_field_forward.1} parent=5 // pred_region
      %s4516 = ssub.s32 %s14, 2
      // Predicated region
      $region61: #{baradiance_field_forward.1} parent=59 // pred_check
        %p4517 = pneg %p221
      $region62: #{baradiance_field_forward.1} parent=59 // pred_check_branch
        %4519 = sbr.rel (%p4517) target = $region64
      $region63: #{baradiance_field_forward.1} parent=59 // pred_region
        %s4520 = smul.u32 64, %s20
        %p4521 = scmp.lt.s32.totalorder %s4520, 511
        %s4522 = scalar_select %p4521, %s4520, 511
        %s4523 = smul.addr %s4522, 8
        %s4524 = scalar_lea.vmem %s8, %s4523
      $region64: #{baradiance_field_forward.1} parent=59 // pred_fallthru
        _
    $region60: #{baradiance_field_forward.1} parent=5 // pred_fallthru
      _
  $region6: #{baradiance_field_forward.1} parent=0 // loop_footer
    %s18 = sadd.s32 1, %s14
  $region7: #{baradiance_field_forward.1} parent=0 // loop_footer_branch
    %13 = sbr.rel target = $region3
  $region8: #{baradiance_field_forward.1} parent=0 // loop_exit
    _

</llo_original>
